<compile_context>
chip_gen: v7x
topology: tpu7x:2x2x1
jax: 0.10.0
libtpu: 0.0.40
codegen_flags: <defaults>
</compile_context>

<pallas_src>
import functools

import jax
import jax.numpy as jnp
from jax.experimental import pallas as pl
from jax.experimental.pallas import tpu as pltpu


_VMEM_LIMIT = 48 * 1024 * 1024          # comfortable on 128 MiB v5e/v6e,
                                        # leaves headroom under v7x's 64 MiB.

# (name, kernel, stride, out_channels) of the three conv layers.
_CONV_SPECS = (("c1", 8, 4, 32), ("c2", 4, 2, 64), ("c3", 3, 1, 64))


def _round_up(x, m):
    return (x + m - 1) // m * m


def _choose_tm(m, cap):
    """Sublane-aligned (x16 for bf16) row tile, aiming for >=2 grid steps so
    both v7x TensorCores get work; capped by `cap` / VMEM budget."""
    half = _round_up(max((m + 1) // 2, 1), 16)
    return max(16, min(cap, half))


# ---------------------------------------------------------------------------
# Optional single-buffering of constant-index (resident) blocks.
# ---------------------------------------------------------------------------
def _probe_resident_mode():
    """Return pl.Buffered(1) if this Pallas supports it, else None."""
    try:
        mode = pl.Buffered(1)

        def _k(x_ref, o_ref):
            o_ref[...] = x_ref[...]

        x = jnp.zeros((8, 128), jnp.float32)
        out = pl.pallas_call(
            _k,
            out_shape=jax.ShapeDtypeStruct((8, 128), jnp.float32),
            grid=(1,),
            in_specs=[pl.BlockSpec((8, 128), lambda i: (0, 0),
                                   pipeline_mode=mode)],
            out_specs=pl.BlockSpec((8, 128), lambda i: (0, 0)),
        )(x)
        jax.block_until_ready(out)
        return mode
    except Exception:
        return None


_RESIDENT_MODE = _probe_resident_mode()


def _resident_spec(shape):
    """BlockSpec for a weight/bias that stays in VMEM across the M grid;
    single-buffered when supported (halves its VMEM footprint)."""
    if _RESIDENT_MODE is not None:
        return pl.BlockSpec(shape, lambda *_: (0, 0),
                            pipeline_mode=_RESIDENT_MODE)
    return pl.BlockSpec(shape, lambda *_: (0, 0))


# ---------------------------------------------------------------------------
# Pallas kernels.
# ---------------------------------------------------------------------------
def _mm_bias_kernel(x_ref, w_ref, b_ref, o_ref, *, relu):
    """(TM,Kp) @ (Kp,Np) + bias [+ReLU]; bf16 MXU operands, f32 epilogue."""
    acc = jnp.dot(x_ref[...], w_ref[...], preferred_element_type=jnp.float32)
    acc = acc + b_ref[...]
    if relu:
        acc = jnp.maximum(acc, 0.0)
    o_ref[...] = acc.astype(o_ref.dtype)


def _fc_fused_kernel(x_ref, w1_ref, b1_ref, w2_ref, b2_ref, o_ref):
    """relu(x@w1+b1) @ w2 + b2 in one kernel: the (TM,1024) hidden tile stays
    on-chip instead of round-tripping HBM between two launches."""
    h = jnp.dot(x_ref[...], w1_ref[...], preferred_element_type=jnp.float32)
    h = jnp.maximum(h + b1_ref[...], 0.0)
    out = jnp.dot(h.astype(jnp.bfloat16), w2_ref[...],
                  preferred_element_type=jnp.float32)
    o_ref[...] = (out + b2_ref[...]).astype(o_ref.dtype)


# ---------------------------------------------------------------------------
# Pallas wrappers (weights arrive prepacked: bf16, K/N already 128-padded).
# ---------------------------------------------------------------------------
def matmul_bias(x, w, b, *, relu, out_dtype=jnp.bfloat16, tm=2048):
    """x: (M,K) bf16, w: (Kp,Np) bf16, b: (1,Np) f32 -> padded (Mp,Np)."""
    x = x.astype(jnp.bfloat16)          # no-op on the bf16 path
    M, K = x.shape
    Kp, Np = w.shape
    if Kp != K:                          # pad fuses into the im2col producer
        x = jnp.pad(x, ((0, 0), (0, Kp - K)))
    TM = _choose_tm(M, tm)
    Mp = _round_up(M, TM)
    if Mp != M:
        x = jnp.pad(x, ((0, Mp - M), (0, 0)))

    kernel = functools.partial(_mm_bias_kernel, relu=relu)
    return pl.pallas_call(
        kernel,
        out_shape=jax.ShapeDtypeStruct((Mp, Np), out_dtype),
        grid_spec=pltpu.PrefetchScalarGridSpec(
            num_scalar_prefetch=0,
            grid=(Mp // TM,),
            in_specs=[
                pl.BlockSpec((TM, Kp), lambda i: (i, 0)),   # streamed rows
                _resident_spec((Kp, Np)),                   # resident weight
                _resident_spec((1, Np)),                    # resident bias
            ],
            out_specs=pl.BlockSpec((TM, Np), lambda i: (i, 0)),
        ),
        compiler_params=pltpu.CompilerParams(
            dimension_semantics=("parallel",),
            vmem_limit_bytes=_VMEM_LIMIT,
        ),
    )(x, w, b)


def fc_heads(flat, w1, b1, w2, b2, *, tm=256):
    """Fused FC1(+ReLU)+heads: flat (M,K) bf16 -> (M, N2p) f32."""
    flat = flat.astype(jnp.bfloat16)
    M, K = flat.shape
    K1p, Hd = w1.shape
    _, N2p = w2.shape
    if K1p != K:
        flat = jnp.pad(flat, ((0, 0), (0, K1p - K)))
    TM = _choose_tm(M, tm)
    Mp = _round_up(M, TM)
    if Mp != M:
        flat = jnp.pad(flat, ((0, Mp - M), (0, 0)))

    out = pl.pallas_call(
        _fc_fused_kernel,
        out_shape=jax.ShapeDtypeStruct((Mp, N2p), jnp.float32),
        grid_spec=pltpu.PrefetchScalarGridSpec(
            num_scalar_prefetch=0,
            grid=(Mp // TM,),
            in_specs=[
                pl.BlockSpec((TM, K1p), lambda i: (i, 0)),  # streamed rows
                _resident_spec((K1p, Hd)),                  # FC1 weight
                _resident_spec((1, Hd)),                    # FC1 bias
                _resident_spec((Hd, N2p)),                  # head weight
                _resident_spec((1, N2p)),                   # head bias
            ],
            out_specs=pl.BlockSpec((TM, N2p), lambda i: (i, 0)),
        ),
        compiler_params=pltpu.CompilerParams(
            dimension_semantics=("parallel",),
            vmem_limit_bytes=_VMEM_LIMIT,
        ),
    )(flat, w1, b1, w2, b2)
    return out[:M]


# ---------------------------------------------------------------------------
# Trace-time glue: bf16 im2col with the channel slice fused into the gather.
# ---------------------------------------------------------------------------
def im2col_nhwc(x, kh, kw, stride, cin):
    """x: (B,H,W,Cpad) NHWC; only the first `cin` channels are gathered.
    Returns ((B*oh*ow, kh*kw*cin), oh, ow)."""
    B, H, W, _ = x.shape
    oh = (H - kh) // stride + 1
    ow = (W - kw) // stride + 1
    cols = []
    for i in range(kh):
        for j in range(kw):
            cols.append(x[:, i:i + stride * oh:stride,
                          j:j + stride * ow:stride, :cin])
    p = jnp.stack(cols, axis=3)                     # (B, oh, ow, kh*kw, cin)
    return p.reshape(B * oh * ow, kh * kw * cin), oh, ow


# ---------------------------------------------------------------------------
# One-time weight prepacking (hoisted out of the per-step forward).
# ---------------------------------------------------------------------------
def prepack_params(params, input_shape, n_actions):
    C, H, W = input_shape
    weights = {}

    h, w, cin = H, W, C
    for idx, (name, k, s, cout) in enumerate(_CONV_SPECS):
        wgt, bias = params[name]
        # (Cout,Cin,kh,kw) -> (kh*kw*Cin, Cout), K order (ki,kj,ci) = im2col.
        wm = jnp.transpose(wgt, (0, 2, 3, 1)).reshape(cout, -1).T
        if idx == 0:
            wm = wm * (1.0 / 255.0)                 # fold x/255 into conv1
        K = wm.shape[0]
        Kp = _round_up(K, 128)
        Np = _round_up(cout, 128)
        wm = jnp.pad(wm, ((0, Kp - K), (0, Np - cout))).astype(jnp.bfloat16)
        bp = jnp.pad(bias, (0, Np - cout)).reshape(1, Np).astype(jnp.float32)
        weights[name] = (wm, bp)
        h, w = (h - k) // s + 1, (w - k) // s + 1
        cin = cout

    oh3, ow3, c3 = h, w, cin
    pw1, pb1 = params["p1"]
    pw2, pb2 = params["p2"]
    vw1, vb1 = params["v1"]
    vw2, vb2 = params["v2"]

    def perm(wfc):      # NCHW-flatten columns -> NHWC-flatten columns
        return wfc.reshape(wfc.shape[0], c3, oh3, ow3).transpose(
            0, 2, 3, 1).reshape(wfc.shape[0], -1)

    w1 = jnp.concatenate([perm(pw1), perm(vw1)], axis=0).T   # (conv_out, 1024)
    K1 = w1.shape[0]
    K1p = _round_up(K1, 128)
    w1 = jnp.pad(w1, ((0, K1p - K1), (0, 0))).astype(jnp.bfloat16)
    b1 = jnp.concatenate([pb1, vb1]).reshape(1, -1).astype(jnp.float32)

    n2 = n_actions + 1
    N2p = _round_up(n2, 128)
    w2 = jnp.zeros((1024, N2p), jnp.float32)
    w2 = w2.at[:512, :n_actions].set(pw2.T)
    w2 = w2.at[512:, n_actions:n2].set(vw2.T)
    b2 = jnp.zeros((1, N2p), jnp.float32)
    b2 = b2.at[0, :n_actions].set(pb2)
    b2 = b2.at[0, n_actions:n2].set(vb2)
    weights["fc"] = (w1, b1, w2.astype(jnp.bfloat16), b2)
    return weights


# ---------------------------------------------------------------------------
# Forward (Pallas path).  `weights` are the prepacked matrices.
# ---------------------------------------------------------------------------
def make_forward(n_actions):
    def forward(x_nchw, weights):
        x = jnp.transpose(x_nchw, (0, 2, 3, 1)).astype(jnp.bfloat16)   # NHWC, bf16 early
        B = x.shape[0]
        h, cin = x, x.shape[-1]
        for name, k, s, cout in _CONV_SPECS:
            wmat, bias = weights[name]
            cols, oh, ow = im2col_nhwc(h, k, k, s, cin)
            out = matmul_bias(cols, wmat, bias, relu=True,
                              out_dtype=jnp.bfloat16, tm=2048)
            # keep the channel-padded lane-dense layout; slice lazily downstream
            h = out[:B * oh * ow].reshape(B, oh, ow, wmat.shape[1])
            cin = cout

        oh3, ow3 = h.shape[1], h.shape[2]
        flat = h[..., :cin].reshape(B, oh3 * ow3 * cin)   # NHWC flatten
        w1, b1, w2, b2 = weights["fc"]
        out = fc_heads(flat, w1, b1, w2, b2, tm=256)
        return out[:, :n_actions], out[:, n_actions:n_actions + 1]
    return forward


# ---------------------------------------------------------------------------
# Pure-JAX f32 reference (mirrors PyTorch exactly) for the correctness check.
# ---------------------------------------------------------------------------
def forward_ref(x_nchw, params):
    h = x_nchw.astype(jnp.float32) / 255.0
    for name, s in (("c1", 4), ("c2", 2), ("c3", 1)):
        w, b = params[name]
        h = jax.lax.conv_general_dilated(
            h, w, (s, s), "VALID",
            dimension_numbers=("NCHW", "OIHW", "NCHW"))
        h = jnp.maximum(h + b[None, :, None, None], 0.0)
    flat = h.reshape(h.shape[0], -1)
    pw1, pb1 = params["p1"]
    pw2, pb2 = params["p2"]
    vw1, vb1 = params["v1"]
    vw2, vb2 = params["v2"]
    policy = jnp.maximum(flat @ pw1.T + pb1, 0.0) @ pw2.T + pb2
    value = jnp.maximum(flat @ vw1.T + vb1, 0.0) @ vw2.T + vb2
    return policy, value


# ---------------------------------------------------------------------------
# Deterministic synthetic parameters (shapes from ActorCriticNet.__init__).
# ---------------------------------------------------------------------------
def init_params(key, in_ch, conv_out, n_actions):
    ks = jax.random.split(key, 14)
    s = 0.05

    def n(k, shape):
        return jax.random.normal(k, shape, jnp.float32) * s

    return {
        "c1": (n(ks[0], (32, in_ch, 8, 8)), n(ks[1], (32,))),
        "c2": (n(ks[2], (64, 32, 4, 4)),    n(ks[3], (64,))),
        "c3": (n(ks[4], (64, 64, 3, 3)),    n(ks[5], (64,))),
        "p1": (n(ks[6], (512, conv_out)),   n(ks[7], (512,))),
        "p2": (n(ks[8], (n_actions, 512)),  n(ks[9], (n_actions,))),
        "v1": (n(ks[10], (512, conv_out)),  n(ks[11], (512,))),
        "v2": (n(ks[12], (1, 512)),         n(ks[13], (1,))),
    }


if __name__ == "__main__":
    # Small but valid shape: 44x44 input -> conv spatial 44 -> 10 -> 4 -> 2,
    # so conv_out = 64 * 2 * 2 = 256 features.
    B, C, H, W = 2, 4, 44, 44
    n_actions = 6
    conv_out = 64 * 2 * 2

    key = jax.random.PRNGKey(0)
    kx, kp = jax.random.split(key)
    x = jax.random.uniform(kx, (B, C, H, W), jnp.float32, 0.0, 255.0)
    params = init_params(kp, C, conv_out, n_actions)

    # One-time weight repacking, hoisted out of the per-step jit.
    weights = prepack_params(params, (C, H, W), n_actions)
    forward = jax.jit(make_forward(n_actions))

    policy, value = forward(x, weights)
    policy = jax.block_until_ready(policy)
    value = jax.block_until_ready(value)

    assert policy.shape == (B, n_actions) and value.shape == (B, 1)

    # bf16 MXU operands + bf16 inter-layer activations => loosened tolerance
    # vs. the f32 reference (f32 accumulation keeps the error small).
    p_ref, v_ref = jax.jit(forward_ref)(x, params)
    assert jnp.allclose(policy, p_ref, atol=5e-2, rtol=5e-2)
    assert jnp.allclose(value, v_ref, atol=5e-2, rtol=5e-2)

    print("KERNEL_OK")
</pallas_src>

<mosaic_0001>
module attributes {stable_mosaic.version = 11 : i64} {
  func.func @_k(%arg0: i32, %arg1: memref<8x128xf32, #tpu.memory_space<vmem>>, %arg2: memref<8x128xf32, #tpu.memory_space<vmem>>) attributes {dimension_semantics = [#tpu.dimension_semantics<arbitrary>], iteration_bounds = array<i64: 1>, scalar_prefetch = 0 : i64, scratch_operands = 0 : i64, tpu.core_type = #tpu.core_type<tc>, window_params = [{pipeline_mode = #tpu.pipeline_mode<synchronous>, transform_indices = @transform_0, window_bounds = array<i64: 8, 128>}, {pipeline_mode = #tpu.pipeline_mode<synchronous>, transform_indices = @transform_1, window_bounds = array<i64: 8, 128>}]} {
    %c0 = arith.constant 0 : index
    %c0_0 = arith.constant 0 : index
    %0 = vector.load %arg1[%c0, %c0_0] : memref<8x128xf32, #tpu.memory_space<vmem>>, vector<8x128xf32>
    %c0_1 = arith.constant 0 : index
    %c0_2 = arith.constant 0 : index
    %1 = vector.load %arg2[%c0_1, %c0_2] : memref<8x128xf32, #tpu.memory_space<vmem>>, vector<8x128xf32>
    tpu.vector_store %arg2[%c0_1, %c0_2], %0 {strides = array<i32>} : memref<8x128xf32, #tpu.memory_space<vmem>>, vector<8x128xf32>,
    return
  }
  func.func @transform_0(%arg0: i32) -> (i32, i32) {
    %c0_i32 = arith.constant 0 : i32
    %c0_i32_0 = arith.constant 0 : i32
    %c0_i32_1 = arith.constant 0 : i32
    return %c0_i32, %c0_i32_0 : i32, i32
  }
  func.func @transform_1(%arg0: i32) -> (i32, i32) {
    %c0_i32 = arith.constant 0 : i32
    %c0_i32_0 = arith.constant 0 : i32
    %c0_i32_1 = arith.constant 0 : i32
    return %c0_i32, %c0_i32_0 : i32, i32
  }
}

module attributes {stable_mosaic.version = 11 : i64} {
  func.func @_mm_bias_kernel(%arg0: i32, %arg1: memref<112x256xbf16, #tpu.memory_space<vmem>>, %arg2: memref<256x128xbf16, #tpu.memory_space<vmem>>, %arg3: memref<1x128xf32, #tpu.memory_space<vmem>>, %arg4: memref<112x128xbf16, #tpu.memory_space<vmem>>) attributes {dimension_semantics = [#tpu.dimension_semantics<parallel>], iteration_bounds = array<i64: 2>, scalar_prefetch = 0 : i64, scratch_operands = 0 : i64, tpu.core_type = #tpu.core_type<tc>, window_params = [{transform_indices = @transform_0, window_bounds = array<i64: 112, 256>}, {pipeline_mode = #tpu.pipeline_mode<synchronous>, transform_indices = @transform_1, window_bounds = array<i64: 256, 128>}, {pipeline_mode = #tpu.pipeline_mode<synchronous>, transform_indices = @transform_2, window_bounds = array<i64: 1, 128>}, {transform_indices = @transform_3, window_bounds = array<i64: 112, 128>}]} {
    %c0 = arith.constant 0 : index
    %c0_0 = arith.constant 0 : index
    %0 = vector.load %arg1[%c0, %c0_0] : memref<112x256xbf16, #tpu.memory_space<vmem>>, vector<112x256xbf16>
    %c0_1 = arith.constant 0 : index
    %c0_2 = arith.constant 0 : index
    %1 = vector.load %arg2[%c0_1, %c0_2] : memref<256x128xbf16, #tpu.memory_space<vmem>>, vector<256x128xbf16>
    %cst = arith.constant dense<0.000000e+00> : vector<112x128xf32>
    %2 = tpu.matmul %0, %1, %cst {dimension_numbers = #tpu.dot_dimension_numbers<[1], [0], [0], [1], [0, 0, 1, 1], [], []>} : vector<112x256xbf16>, vector<256x128xbf16>, vector<112x128xf32> -> vector<112x128xf32>
    %c0_3 = arith.constant 0 : index
    %c0_4 = arith.constant 0 : index
    %3 = vector.load %arg3[%c0_3, %c0_4] : memref<1x128xf32, #tpu.memory_space<vmem>>, vector<1x128xf32>
    %4 = vector.broadcast %3 : vector<1x128xf32> to vector<112x128xf32>
    %5 = arith.addf %2, %4 : vector<112x128xf32>
    %cst_5 = arith.constant 0.000000e+00 : f32
    %6 = vector.broadcast %cst_5 : f32 to vector<112x128xf32>
    %7 = arith.maximumf %5, %6 : vector<112x128xf32>
    %8 = arith.truncf %7 : vector<112x128xf32> to vector<112x128xbf16>
    %c0_6 = arith.constant 0 : index
    %c0_7 = arith.constant 0 : index
    %9 = vector.load %arg4[%c0_6, %c0_7] : memref<112x128xbf16, #tpu.memory_space<vmem>>, vector<112x128xbf16>
    tpu.vector_store %arg4[%c0_6, %c0_7], %8 {strides = array<i32>} : memref<112x128xbf16, #tpu.memory_space<vmem>>, vector<112x128xbf16>,
    return
  }
  func.func @transform_0(%arg0: i32) -> (i32, i32) {
    %c0_i32 = arith.constant 0 : i32
    %c0_i32_0 = arith.constant 0 : i32
    return %arg0, %c0_i32 : i32, i32
  }
  func.func @transform_1(%arg0: i32) -> (i32, i32) {
    %c0_i32 = arith.constant 0 : i32
    %c0_i32_0 = arith.constant 0 : i32
    %c0_i32_1 = arith.constant 0 : i32
    return %c0_i32, %c0_i32_0 : i32, i32
  }
  func.func @transform_2(%arg0: i32) -> (i32, i32) {
    %c0_i32 = arith.constant 0 : i32
    %c0_i32_0 = arith.constant 0 : i32
    %c0_i32_1 = arith.constant 0 : i32
    return %c0_i32, %c0_i32_0 : i32, i32
  }
  func.func @transform_3(%arg0: i32) -> (i32, i32) {
    %c0_i32 = arith.constant 0 : i32
    %c0_i32_0 = arith.constant 0 : i32
    return %arg0, %c0_i32 : i32, i32
  }
}

module attributes {stable_mosaic.version = 11 : i64} {
  func.func @_mm_bias_kernel(%arg0: i32, %arg1: memref<16x512xbf16, #tpu.memory_space<vmem>>, %arg2: memref<512x128xbf16, #tpu.memory_space<vmem>>, %arg3: memref<1x128xf32, #tpu.memory_space<vmem>>, %arg4: memref<16x128xbf16, #tpu.memory_space<vmem>>) attributes {dimension_semantics = [#tpu.dimension_semantics<parallel>], iteration_bounds = array<i64: 2>, scalar_prefetch = 0 : i64, scratch_operands = 0 : i64, tpu.core_type = #tpu.core_type<tc>, window_params = [{transform_indices = @transform_0, window_bounds = array<i64: 16, 512>}, {pipeline_mode = #tpu.pipeline_mode<synchronous>, transform_indices = @transform_1, window_bounds = array<i64: 512, 128>}, {pipeline_mode = #tpu.pipeline_mode<synchronous>, transform_indices = @transform_2, window_bounds = array<i64: 1, 128>}, {transform_indices = @transform_3, window_bounds = array<i64: 16, 128>}]} {
    %c0 = arith.constant 0 : index
    %c0_0 = arith.constant 0 : index
    %0 = vector.load %arg1[%c0, %c0_0] : memref<16x512xbf16, #tpu.memory_space<vmem>>, vector<16x512xbf16>
    %c0_1 = arith.constant 0 : index
    %c0_2 = arith.constant 0 : index
    %1 = vector.load %arg2[%c0_1, %c0_2] : memref<512x128xbf16, #tpu.memory_space<vmem>>, vector<512x128xbf16>
    %cst = arith.constant dense<0.000000e+00> : vector<16x128xf32>
    %2 = tpu.matmul %0, %1, %cst {dimension_numbers = #tpu.dot_dimension_numbers<[1], [0], [0], [1], [0, 0, 1, 1], [], []>} : vector<16x512xbf16>, vector<512x128xbf16>, vector<16x128xf32> -> vector<16x128xf32>
    %c0_3 = arith.constant 0 : index
    %c0_4 = arith.constant 0 : index
    %3 = vector.load %arg3[%c0_3, %c0_4] : memref<1x128xf32, #tpu.memory_space<vmem>>, vector<1x128xf32>
    %4 = vector.broadcast %3 : vector<1x128xf32> to vector<16x128xf32>
    %5 = arith.addf %2, %4 : vector<16x128xf32>
    %cst_5 = arith.constant 0.000000e+00 : f32
    %6 = vector.broadcast %cst_5 : f32 to vector<16x128xf32>
    %7 = arith.maximumf %5, %6 : vector<16x128xf32>
    %8 = arith.truncf %7 : vector<16x128xf32> to vector<16x128xbf16>
    %c0_6 = arith.constant 0 : index
    %c0_7 = arith.constant 0 : index
    %9 = vector.load %arg4[%c0_6, %c0_7] : memref<16x128xbf16, #tpu.memory_space<vmem>>, vector<16x128xbf16>
    tpu.vector_store %arg4[%c0_6, %c0_7], %8 {strides = array<i32>} : memref<16x128xbf16, #tpu.memory_space<vmem>>, vector<16x128xbf16>,
    return
  }
  func.func @transform_0(%arg0: i32) -> (i32, i32) {
    %c0_i32 = arith.constant 0 : i32
    %c0_i32_0 = arith.constant 0 : i32
    return %arg0, %c0_i32 : i32, i32
  }
  func.func @transform_1(%arg0: i32) -> (i32, i32) {
    %c0_i32 = arith.constant 0 : i32
    %c0_i32_0 = arith.constant 0 : i32
    %c0_i32_1 = arith.constant 0 : i32
    return %c0_i32, %c0_i32_0 : i32, i32
  }
  func.func @transform_2(%arg0: i32) -> (i32, i32) {
    %c0_i32 = arith.constant 0 : i32
    %c0_i32_0 = arith.constant 0 : i32
    %c0_i32_1 = arith.constant 0 : i32
    return %c0_i32, %c0_i32_0 : i32, i32
  }
  func.func @transform_3(%arg0: i32) -> (i32, i32) {
    %c0_i32 = arith.constant 0 : i32
    %c0_i32_0 = arith.constant 0 : i32
    return %arg0, %c0_i32 : i32, i32
  }
}

module attributes {stable_mosaic.version = 11 : i64} {
  func.func @_fc_fused_kernel(%arg0: i32, %arg1: memref<16x256xbf16, #tpu.memory_space<vmem>>, %arg2: memref<256x1024xbf16, #tpu.memory_space<vmem>>, %arg3: memref<1x1024xf32, #tpu.memory_space<vmem>>, %arg4: memref<1024x128xbf16, #tpu.memory_space<vmem>>, %arg5: memref<1x128xf32, #tpu.memory_space<vmem>>, %arg6: memref<16x128xf32, #tpu.memory_space<vmem>>) attributes {dimension_semantics = [#tpu.dimension_semantics<parallel>], iteration_bounds = array<i64: 1>, scalar_prefetch = 0 : i64, scratch_operands = 0 : i64, tpu.core_type = #tpu.core_type<tc>, window_params = [{transform_indices = @transform_0, window_bounds = array<i64: 16, 256>}, {pipeline_mode = #tpu.pipeline_mode<synchronous>, transform_indices = @transform_1, window_bounds = array<i64: 256, 1024>}, {pipeline_mode = #tpu.pipeline_mode<synchronous>, transform_indices = @transform_2, window_bounds = array<i64: 1, 1024>}, {pipeline_mode = #tpu.pipeline_mode<synchronous>, transform_indices = @transform_3, window_bounds = array<i64: 1024, 128>}, {pipeline_mode = #tpu.pipeline_mode<synchronous>, transform_indices = @transform_4, window_bounds = array<i64: 1, 128>}, {transform_indices = @transform_5, window_bounds = array<i64: 16, 128>}]} {
    %c0 = arith.constant 0 : index
    %c0_0 = arith.constant 0 : index
    %0 = vector.load %arg1[%c0, %c0_0] : memref<16x256xbf16, #tpu.memory_space<vmem>>, vector<16x256xbf16>
    %c0_1 = arith.constant 0 : index
    %c0_2 = arith.constant 0 : index
    %1 = vector.load %arg2[%c0_1, %c0_2] : memref<256x1024xbf16, #tpu.memory_space<vmem>>, vector<256x1024xbf16>
    %cst = arith.constant dense<0.000000e+00> : vector<16x1024xf32>
    %2 = tpu.matmul %0, %1, %cst {dimension_numbers = #tpu.dot_dimension_numbers<[1], [0], [0], [1], [0, 0, 1, 1], [], []>} : vector<16x256xbf16>, vector<256x1024xbf16>, vector<16x1024xf32> -> vector<16x1024xf32>
    %c0_3 = arith.constant 0 : index
    %c0_4 = arith.constant 0 : index
    %3 = vector.load %arg3[%c0_3, %c0_4] : memref<1x1024xf32, #tpu.memory_space<vmem>>, vector<1x1024xf32>
    %4 = vector.broadcast %3 : vector<1x1024xf32> to vector<16x1024xf32>
    %5 = arith.addf %2, %4 : vector<16x1024xf32>
    %cst_5 = arith.constant 0.000000e+00 : f32
    %6 = vector.broadcast %cst_5 : f32 to vector<16x1024xf32>
    %7 = arith.maximumf %5, %6 : vector<16x1024xf32>
    %8 = arith.truncf %7 : vector<16x1024xf32> to vector<16x1024xbf16>
    %c0_6 = arith.constant 0 : index
    %c0_7 = arith.constant 0 : index
    %9 = vector.load %arg4[%c0_6, %c0_7] : memref<1024x128xbf16, #tpu.memory_space<vmem>>, vector<1024x128xbf16>
    %cst_8 = arith.constant dense<0.000000e+00> : vector<16x128xf32>
    %10 = tpu.matmul %8, %9, %cst_8 {dimension_numbers = #tpu.dot_dimension_numbers<[1], [0], [0], [1], [0, 0, 1, 1], [], []>} : vector<16x1024xbf16>, vector<1024x128xbf16>, vector<16x128xf32> -> vector<16x128xf32>
    %c0_9 = arith.constant 0 : index
    %c0_10 = arith.constant 0 : index
    %11 = vector.load %arg5[%c0_9, %c0_10] : memref<1x128xf32, #tpu.memory_space<vmem>>, vector<1x128xf32>
    %12 = vector.broadcast %11 : vector<1x128xf32> to vector<16x128xf32>
    %13 = arith.addf %10, %12 : vector<16x128xf32>
    %c0_11 = arith.constant 0 : index
    %c0_12 = arith.constant 0 : index
    %14 = vector.load %arg6[%c0_11, %c0_12] : memref<16x128xf32, #tpu.memory_space<vmem>>, vector<16x128xf32>
    tpu.vector_store %arg6[%c0_11, %c0_12], %13 {strides = array<i32>} : memref<16x128xf32, #tpu.memory_space<vmem>>, vector<16x128xf32>,
    return
  }
  func.func @transform_0(%arg0: i32) -> (i32, i32) {
    %c0_i32 = arith.constant 0 : i32
    %c0_i32_0 = arith.constant 0 : i32
    return %arg0, %c0_i32 : i32, i32
  }
  func.func @transform_1(%arg0: i32) -> (i32, i32) {
    %c0_i32 = arith.constant 0 : i32
    %c0_i32_0 = arith.constant 0 : i32
    %c0_i32_1 = arith.constant 0 : i32
    return %c0_i32, %c0_i32_0 : i32, i32
  }
  func.func @transform_2(%arg0: i32) -> (i32, i32) {
    %c0_i32 = arith.constant 0 : i32
    %c0_i32_0 = arith.constant 0 : i32
    %c0_i32_1 = arith.constant 0 : i32
    return %c0_i32, %c0_i32_0 : i32, i32
  }
  func.func @transform_3(%arg0: i32) -> (i32, i32) {
    %c0_i32 = arith.constant 0 : i32
    %c0_i32_0 = arith.constant 0 : i32
    %c0_i32_1 = arith.constant 0 : i32
    return %c0_i32, %c0_i32_0 : i32, i32
  }
  func.func @transform_4(%arg0: i32) -> (i32, i32) {
    %c0_i32 = arith.constant 0 : i32
    %c0_i32_0 = arith.constant 0 : i32
    %c0_i32_1 = arith.constant 0 : i32
    return %c0_i32, %c0_i32_0 : i32, i32
  }
  func.func @transform_5(%arg0: i32) -> (i32, i32) {
    %c0_i32 = arith.constant 0 : i32
    %c0_i32_0 = arith.constant 0 : i32
    return %arg0, %c0_i32 : i32, i32
  }
}

module attributes {stable_mosaic.version = 11 : i64} {
  func.func @_mm_bias_kernel(%arg0: i32, %arg1: memref<16x640xbf16, #tpu.memory_space<vmem>>, %arg2: memref<640x128xbf16, #tpu.memory_space<vmem>>, %arg3: memref<1x128xf32, #tpu.memory_space<vmem>>, %arg4: memref<16x128xbf16, #tpu.memory_space<vmem>>) attributes {dimension_semantics = [#tpu.dimension_semantics<parallel>], iteration_bounds = array<i64: 1>, scalar_prefetch = 0 : i64, scratch_operands = 0 : i64, tpu.core_type = #tpu.core_type<tc>, window_params = [{transform_indices = @transform_0, window_bounds = array<i64: 16, 640>}, {pipeline_mode = #tpu.pipeline_mode<synchronous>, transform_indices = @transform_1, window_bounds = array<i64: 640, 128>}, {pipeline_mode = #tpu.pipeline_mode<synchronous>, transform_indices = @transform_2, window_bounds = array<i64: 1, 128>}, {transform_indices = @transform_3, window_bounds = array<i64: 16, 128>}]} {
    %c0 = arith.constant 0 : index
    %c0_0 = arith.constant 0 : index
    %0 = vector.load %arg1[%c0, %c0_0] : memref<16x640xbf16, #tpu.memory_space<vmem>>, vector<16x640xbf16>
    %c0_1 = arith.constant 0 : index
    %c0_2 = arith.constant 0 : index
    %1 = vector.load %arg2[%c0_1, %c0_2] : memref<640x128xbf16, #tpu.memory_space<vmem>>, vector<640x128xbf16>
    %cst = arith.constant dense<0.000000e+00> : vector<16x128xf32>
    %2 = tpu.matmul %0, %1, %cst {dimension_numbers = #tpu.dot_dimension_numbers<[1], [0], [0], [1], [0, 0, 1, 1], [], []>} : vector<16x640xbf16>, vector<640x128xbf16>, vector<16x128xf32> -> vector<16x128xf32>
    %c0_3 = arith.constant 0 : index
    %c0_4 = arith.constant 0 : index
    %3 = vector.load %arg3[%c0_3, %c0_4] : memref<1x128xf32, #tpu.memory_space<vmem>>, vector<1x128xf32>
    %4 = vector.broadcast %3 : vector<1x128xf32> to vector<16x128xf32>
    %5 = arith.addf %2, %4 : vector<16x128xf32>
    %cst_5 = arith.constant 0.000000e+00 : f32
    %6 = vector.broadcast %cst_5 : f32 to vector<16x128xf32>
    %7 = arith.maximumf %5, %6 : vector<16x128xf32>
    %8 = arith.truncf %7 : vector<16x128xf32> to vector<16x128xbf16>
    %c0_6 = arith.constant 0 : index
    %c0_7 = arith.constant 0 : index
    %9 = vector.load %arg4[%c0_6, %c0_7] : memref<16x128xbf16, #tpu.memory_space<vmem>>, vector<16x128xbf16>
    tpu.vector_store %arg4[%c0_6, %c0_7], %8 {strides = array<i32>} : memref<16x128xbf16, #tpu.memory_space<vmem>>, vector<16x128xbf16>,
    return
  }
  func.func @transform_0(%arg0: i32) -> (i32, i32) {
    %c0_i32 = arith.constant 0 : i32
    %c0_i32_0 = arith.constant 0 : i32
    return %arg0, %c0_i32 : i32, i32
  }
  func.func @transform_1(%arg0: i32) -> (i32, i32) {
    %c0_i32 = arith.constant 0 : i32
    %c0_i32_0 = arith.constant 0 : i32
    %c0_i32_1 = arith.constant 0 : i32
    return %c0_i32, %c0_i32_0 : i32, i32
  }
  func.func @transform_2(%arg0: i32) -> (i32, i32) {
    %c0_i32 = arith.constant 0 : i32
    %c0_i32_0 = arith.constant 0 : i32
    %c0_i32_1 = arith.constant 0 : i32
    return %c0_i32, %c0_i32_0 : i32, i32
  }
  func.func @transform_3(%arg0: i32) -> (i32, i32) {
    %c0_i32 = arith.constant 0 : i32
    %c0_i32_0 = arith.constant 0 : i32
    return %arg0, %c0_i32 : i32, i32
  }
}

</mosaic_0001>

<llo_original>
// kernel: tpu_custom_call.1
$region0: #{tpu_custom_call.1}
  #allocation0 [shape = 'u32[]', space=smem, size = 0x4, offset = 0x4, fixed_abs, tag = 'smem constant byte address 0x4 - core index']
  #allocation1 [shape = 'u32[144,128]{1,0:T(1,128)}', space=vmem, size = 0x12000, scoped, tag = 'internal scratch']
  %s0 = inlined_call_operand.hbm [shape: f32[8,128], index: 0, kind: input, shape index: {}]
  %s1 = inlined_call_operand.hbm [shape: f32[8,128], index: 1, kind: output, shape index: {}]
  %s2 = sld [smem:[#allocation0]]
  $region18: #{tpu_custom_call.1} parent=0
    _
  %s4 = ssub.s32 1, %s2
  %s5 = scalar_select 0, %s4, %s2
  $region1: #{tpu_custom_call.1} parent=0
    #allocation2 [shape = 'u8[4096]{0}', space=vmem, size = 0x1000, scoped, tag = 'input window, operand 0, single buffered']
    #allocation3 [shape = 's32[1]{0}', space=sflag, size = 0x4, scoped, tag = 'scoped memory for tpu_custom_call.1']
    #allocation4 [shape = 's32[1]{0}', space=sflag, size = 0x4, scoped, tag = 'scoped memory for tpu_custom_call.1']
    #allocation5 [shape = 'u8[4096]{0}', space=vmem, size = 0x1000, scoped, tag = 'output window, operand 0, single buffered']
    %6 = vsyncpa [#allocation3], 0
    %7 = vsyncpa [#allocation4], 0
    // Predicated region
    $region2: #{tpu_custom_call.1} parent=1 // pred_check
      _
    $region3: #{tpu_custom_call.1} parent=1 // pred_check_branch
      %9 = sbr.rel (0) target = $region5
    $region4: #{tpu_custom_call.1} parent=1 // pred_region
      %s11 = ssub.s32 128, 128
      %12 = vsyncadd [#allocation3], %s11
      %s14 = sshll.u32 [#allocation2], 4
      %s15 = int_to_ptr.vmem [resolvable:$true] %s14
      %17 = dma.hbm_to_vmem [thread:$0]  %s0, 128, %s15, [#allocation3]
    $region5: #{tpu_custom_call.1} parent=1 // pred_fallthru
      _
    // Predicated region
    $region6: #{tpu_custom_call.1} parent=1 // pred_check
      _
    $region7: #{tpu_custom_call.1} parent=1 // pred_check_branch
      %19 = sbr.rel (0) target = $region9
    $region8: #{tpu_custom_call.1} parent=1 // pred_region
      %20 = dma.done [#allocation3], 128
    $region9: #{tpu_custom_call.1} parent=1 // pred_fallthru
      _
    %v21 = vld [vmem:[#allocation2] sm:$0xff]
    %22 = vst [vmem:[#allocation5] sm:$0xff] %v21
    // Predicated region
    $region10: #{tpu_custom_call.1} parent=1 // pred_check
      _
    $region11: #{tpu_custom_call.1} parent=1 // pred_check_branch
      %24 = sbr.rel (0) target = $region13
    $region12: #{tpu_custom_call.1} parent=1 // pred_region
      %s26 = ssub.s32 128, 128
      %27 = vsyncadd [#allocation4], %s26
      %s29 = sshll.u32 [#allocation5], 4
      %s30 = int_to_ptr.vmem [resolvable:$true] %s29
      %32 = dma.vmem_to_hbm [thread:$0]  %s30, 128, %s1, [#allocation4]
    $region13: #{tpu_custom_call.1} parent=1 // pred_fallthru
      _
    // Predicated region
    $region14: #{tpu_custom_call.1} parent=1 // pred_check
      _
    $region15: #{tpu_custom_call.1} parent=1 // pred_check_branch
      %34 = sbr.rel (0) target = $region17
    $region16: #{tpu_custom_call.1} parent=1 // pred_region
      %35 = dma.done [#allocation4], 128
    $region17: #{tpu_custom_call.1} parent=1 // pred_fallthru
      _
    %36 = vsyncpa [#allocation3], 1
    %37 = vsyncpa [#allocation4], 1

// kernel: forward.4
$region0: #{forward.4}
  #allocation0 [shape = 'u32[]', space=smem, size = 0x4, offset = 0x4, fixed_abs, tag = 'smem constant byte address 0x4 - core index']
  #allocation1 [shape = 'u32[144,128]{1,0:T(1,128)}', space=vmem, size = 0x12000, scoped, tag = 'internal scratch']
  %s0 = inlined_call_operand.vmem [shape: bf16[224,256], index: 0, kind: input, shape index: {}]
  %s1 = inlined_call_operand.vmem [shape: bf16[256,128], index: 1, kind: input, shape index: {}]
  %s2 = inlined_call_operand.vmem [shape: f32[1,128], index: 2, kind: input, shape index: {}]
  %s3 = inlined_call_operand.vmem [shape: bf16[224,128], index: 3, kind: output, shape index: {}]
  %s4 = sld [smem:[#allocation0]]
  $region45: #{forward.4} parent=0
    _
  %s6 = ssub.s32 1, %s4
  %s7 = scalar_select 0, %s6, %s4
  loop: start=0, step=1, limit=4
  $region2: #{forward.4} parent=0 // loop_pre_header
    _
  $region3: #{forward.4} parent=0 // loop_header
    %s9 = sphi 0, %s13
    %p10 = scmp.ge.s32.totalorder %s9, 4
    %s19 = sphi 0, %s21
    %s22 = sphi 0, %s19
    %s23 = sphi 0, %s22
    %s39 = sphi 0, %s23
    %s43 = sphi 0, %s43
    %s45 = sphi 0, %s43
    %s46 = sphi 0, %s45
    %s60 = sphi 0, %s46
    %s64 = sphi 0, %s64
    %s66 = sphi 0, %s64
    %s67 = sphi 0, %s66
    %s81 = sphi 0, %s67
    %s87 = sphi 0, %s89
    %s90 = sphi 0, %s87
    %s91 = sphi 0, %s90
    %s107 = sphi 0, %s91
  $region4: #{forward.4} parent=0 // loop_header_branch
    %12 = sbr.rel (%p10) target = $region8
  $region5: #{forward.4} parent=0 // loop_body
    %s14 = ssub.s32 %s9, 1
    %s15 = ssub.s32 %s9, 2
    %s16 = sadd.s32 %s9, 1
    %s17 = ssub.s32 %s9, %s16
    %p18 = scmp.eq.s32.totalorder %s17, 0
    %s20 = sadd.s32 %s19, 1
    %s21 = scalar_select %p18, %s19, %s20
    %p24 = pneg %p18
    %p25 = scmp.eq.s32.totalorder %s9, 1
    %p26 = por %p24, %p25
    %p27 = scmp.ne.s32.totalorder %s19, %s22
    %p28 = scmp.eq.s32.totalorder %s9, 0
    %p29 = por %p27, %p28
    %p30 = scmp.ne.s32.totalorder %s19, %s22
    %p31 = scmp.eq.s32.totalorder %s14, 1
    %p32 = por %p30, %p31
    %p33 = scmp.ne.s32.totalorder %s22, %s23
    %p34 = scmp.eq.s32.totalorder %s14, 0
    %p35 = por %p33, %p34
    %p36 = scmp.ne.s32.totalorder %s22, %s23
    %p37 = scmp.eq.s32.totalorder %s15, 1
    %p38 = por %p36, %p37
    %p40 = scmp.ne.s32.totalorder %s23, %s39
    %p41 = scmp.eq.s32.totalorder %s15, 0
    %p42 = por %p40, %p41
    %s44 = sadd.s32 %s43, 1
    %p47 = scmp.eq.s32.totalorder %s9, 1
    %p48 = scmp.ne.s32.totalorder %s43, %s45
    %p49 = scmp.eq.s32.totalorder %s9, 0
    %p50 = por %p48, %p49
    %p51 = scmp.ne.s32.totalorder %s43, %s45
    %p52 = scmp.eq.s32.totalorder %s14, 1
    %p53 = por %p51, %p52
    %p54 = scmp.ne.s32.totalorder %s45, %s46
    %p55 = scmp.eq.s32.totalorder %s14, 0
    %p56 = por %p54, %p55
    %p57 = scmp.ne.s32.totalorder %s45, %s46
    %p58 = scmp.eq.s32.totalorder %s15, 1
    %p59 = por %p57, %p58
    %p61 = scmp.ne.s32.totalorder %s46, %s60
    %p62 = scmp.eq.s32.totalorder %s15, 0
    %p63 = por %p61, %p62
    %s65 = sadd.s32 %s64, 1
    %p68 = scmp.eq.s32.totalorder %s9, 1
    %p69 = scmp.ne.s32.totalorder %s64, %s66
    %p70 = scmp.eq.s32.totalorder %s9, 0
    %p71 = por %p69, %p70
    %p72 = scmp.ne.s32.totalorder %s64, %s66
    %p73 = scmp.eq.s32.totalorder %s14, 1
    %p74 = por %p72, %p73
    %p75 = scmp.ne.s32.totalorder %s66, %s67
    %p76 = scmp.eq.s32.totalorder %s14, 0
    %p77 = por %p75, %p76
    %p78 = scmp.ne.s32.totalorder %s66, %s67
    %p79 = scmp.eq.s32.totalorder %s15, 1
    %p80 = por %p78, %p79
    %p82 = scmp.ne.s32.totalorder %s67, %s81
    %p83 = scmp.eq.s32.totalorder %s15, 0
    %p84 = por %p82, %p83
    %s85 = ssub.s32 %s9, %s16
    %p86 = scmp.eq.s32.totalorder %s85, 0
    %s88 = sadd.s32 %s87, 1
    %s89 = scalar_select %p86, %s87, %s88
    %p92 = pneg %p86
    %p93 = scmp.eq.s32.totalorder %s9, 1
    %p94 = por %p92, %p93
    %p95 = scmp.ne.s32.totalorder %s87, %s90
    %p96 = scmp.eq.s32.totalorder %s9, 0
    %p97 = por %p95, %p96
    %p98 = scmp.ne.s32.totalorder %s87, %s90
    %p99 = scmp.eq.s32.totalorder %s14, 1
    %p100 = por %p98, %p99
    %p101 = scmp.ne.s32.totalorder %s90, %s91
    %p102 = scmp.eq.s32.totalorder %s14, 0
    %p103 = por %p101, %p102
    %p104 = scmp.ne.s32.totalorder %s90, %s91
    %p105 = scmp.eq.s32.totalorder %s15, 1
    %p106 = por %p104, %p105
    %p108 = scmp.ne.s32.totalorder %s91, %s107
    %p109 = scmp.eq.s32.totalorder %s15, 0
    %p110 = por %p108, %p109
    %p111 = scmp.le.s32.totalorder 1, %s9
    %p112 = scmp.lt.s32.totalorder %s9, 3
    %p113 = pnand %p111, %p112
    %p114 = pneg %p113
    // Predicated region
    $region9: #{forward.4} parent=5 // pred_check
      _
    $region10: #{forward.4} parent=5 // pred_check_branch
      %116 = sbr.rel (%p113) target = $region12
    $region11: #{forward.4} parent=5 // pred_region
      %s117 = ssub.s32 %s9, 1
      // Predicated region
      $region13: #{forward.4} parent=11 // pred_check
        %p118 = pneg %p56
      $region14: #{forward.4} parent=11 // pred_check_branch
        %120 = sbr.rel (%p118) target = $region16
      $region15: #{forward.4} parent=11 // pred_region
        _
      $region16: #{forward.4} parent=11 // pred_fallthru
        _
      // Predicated region
      $region17: #{forward.4} parent=11 // pred_check
        %p121 = pneg %p77
      $region18: #{forward.4} parent=11 // pred_check_branch
        %123 = sbr.rel (%p121) target = $region20
      $region19: #{forward.4} parent=11 // pred_region
        _
      $region20: #{forward.4} parent=11 // pred_fallthru
        _
    $region12: #{forward.4} parent=5 // pred_fallthru
      _
    %p124 = scmp.lt.s32.totalorder %s9, 2
    // Predicated region
    $region21: #{forward.4} parent=5 // pred_check
      %p125 = pneg %p124
    $region22: #{forward.4} parent=5 // pred_check_branch
      %127 = sbr.rel (%p125) target = $region24
    $region23: #{forward.4} parent=5 // pred_region
      // Predicated region
      $region25: #{forward.4} parent=23 // pred_check
        %p128 = pneg %p29
      $region26: #{forward.4} parent=23 // pred_check_branch
        %130 = sbr.rel (%p128) target = $region28
      $region27: #{forward.4} parent=23 // pred_region
        %s131 = smul.u32 14, %s9
        %p132 = scmp.lt.s32.totalorder %s131, 27
        %s133 = scalar_select %p132, %s131, 27
        %s134 = smul.addr %s133, 2
        %s135 = smul.addr %s134, 4
        %s136 = scalar_lea.vmem %s0, %s135
        %s137 = smul.u32 14, %s9
      $region28: #{forward.4} parent=23 // pred_fallthru
        _
    $region24: #{forward.4} parent=5 // pred_fallthru
      _
    %p138 = scmp.le.s32.totalorder 1, %s9
    %p139 = scmp.lt.s32.totalorder %s9, 3
    %p140 = pnand %p138, %p139
    %p141 = pneg %p140
    // Predicated region
    $region29: #{forward.4} parent=5 // pred_check
      _
    $region30: #{forward.4} parent=5 // pred_check_branch
      %143 = sbr.rel (%p140) target = $region32
    $region31: #{forward.4} parent=5 // pred_region
      %s144 = ssub.s32 %s9, 1
      %s145 = smul.u32 14, %s14
      %p146 = scmp.lt.s32.totalorder %s145, 27
      %s147 = scalar_select %p146, %s145, 27
      %s148 = smul.addr %s147, 2
      %s149 = smul.addr %s148, 4
      %s150 = scalar_lea.vmem %s0, %s149
      %p151 = pneg %p35
      %p152 = pneg %p32
      %p153 = pneg %p56
      %p154 = pneg %p53
      %p155 = pneg %p77
      %p156 = pneg %p74
      %p157 = pneg %p103
      %p158 = pneg %p100
      %s159 = smul.u32 14, %s14
      %p160 = scmp.lt.s32.totalorder %s159, 27
      %s161 = scalar_select %p160, %s159, 27
      %s162 = smul.addr %s161, 4
      %s163 = scalar_lea.vmem %s3, %s162
      %s164 = smul.u32 14, %s14
      %p165 = scmp.lt.s32.totalorder %s164, 27
      %s166 = scalar_select %p165, %s164, 27
      %s167 = smul.addr %s166, 2
      %s168 = smul.addr %s167, 4
      %s169 = scalar_lea.vmem %s0, %s168
      %s170 = smul.u32 14, %s14
      %s171 = smul.u32 14, %s14
      %p172 = scmp.lt.s32.totalorder %s171, 27
      %s173 = scalar_select %p172, %s171, 27
      %s174 = smul.addr %s173, 4
      %s175 = scalar_lea.vmem %s3, %s174
      %s176 = smul.u32 14, %s14
      %v178 = vld [vmem:[%s169] sm:$0xff]
      %v179 = vld [vmem:[%s169 + $0x8] sm:$0xff]
      %v180 = vld [vmem:[%s169 + $0x10] sm:$0xff]
      %v181 = vld [vmem:[%s169 + $0x18] sm:$0xff]
      %v182 = vld [vmem:[%s169 + $0x20] sm:$0xff]
      %v183 = vld [vmem:[%s169 + $0x28] sm:$0xff]
      %v184 = vld [vmem:[%s169 + $0x30] sm:$0xff]
      %v185 = vld [vmem:[%s169 + $0x38] sm:$0xff]
      %v186 = vld [vmem:[%s169 + $0x40] sm:$0xff]
      %v187 = vld [vmem:[%s169 + $0x48] sm:$0xff]
      %v188 = vld [vmem:[%s169 + $0x50] sm:$0xff]
      %v189 = vld [vmem:[%s169 + $0x58] sm:$0xff]
      %v190 = vld [vmem:[%s169 + $0x60] sm:$0xff]
      %v191 = vld [vmem:[%s169 + $0x68] sm:$0xff]
      %v192 = vld [vmem:[%s1] sm:$0xf]
      %v193 = vld [vmem:[%s1 + $0x4] sm:$0xf]
      %v194 = vld [vmem:[%s1 + $0x8] sm:$0xf]
      %v195 = vld [vmem:[%s1 + $0xc] sm:$0xf]
      %v196 = vld [vmem:[%s1 + $0x10] sm:$0xf]
      %v197 = vld [vmem:[%s1 + $0x14] sm:$0xf]
      %v198 = vld [vmem:[%s1 + $0x18] sm:$0xf]
      %v199 = vld [vmem:[%s1 + $0x1c] sm:$0xf]
      %v200 = vld [vmem:[%s1 + $0x20] sm:$0xf]
      %v201 = vld [vmem:[%s1 + $0x24] sm:$0xf]
      %v202 = vld [vmem:[%s1 + $0x28] sm:$0xf]
      %v203 = vld [vmem:[%s1 + $0x2c] sm:$0xf]
      %v204 = vld [vmem:[%s1 + $0x30] sm:$0xf]
      %v205 = vld [vmem:[%s1 + $0x34] sm:$0xf]
      %v206 = vld [vmem:[%s1 + $0x38] sm:$0xf]
      %v207 = vld [vmem:[%s1 + $0x3c] sm:$0xf]
      %v208 = vld [vmem:[%s1 + $0x40] sm:$0xf]
      %v209 = vld [vmem:[%s1 + $0x44] sm:$0xf]
      %v210 = vld [vmem:[%s1 + $0x48] sm:$0xf]
      %v211 = vld [vmem:[%s1 + $0x4c] sm:$0xf]
      %v212 = vld [vmem:[%s1 + $0x50] sm:$0xf]
      %v213 = vld [vmem:[%s1 + $0x54] sm:$0xf]
      %v214 = vld [vmem:[%s1 + $0x58] sm:$0xf]
      %v215 = vld [vmem:[%s1 + $0x5c] sm:$0xf]
      %v216 = vld [vmem:[%s1 + $0x60] sm:$0xf]
      %v217 = vld [vmem:[%s1 + $0x64] sm:$0xf]
      %v218 = vld [vmem:[%s1 + $0x68] sm:$0xf]
      %v219 = vld [vmem:[%s1 + $0x6c] sm:$0xf]
      %v220 = vld [vmem:[%s1 + $0x70] sm:$0xf]
      %v221 = vld [vmem:[%s1 + $0x74] sm:$0xf]
      %v222 = vld [vmem:[%s1 + $0x78] sm:$0xf]
      %v223 = vld [vmem:[%s1 + $0x7c] sm:$0xf]
      %v224 = vld [vmem:[%s2] sm:$0x1]
      %v226 = vlaneseq
      %v227 = vshrl.u32 %v226, 7
      %v228 = vsub.s32 0, %v227
      %v229 = vrot.slane %v224, %v228
      %v245 = vunpack.c.l.b16 %v178
      %v246 = vunpack.c.h.b16 %v178
      %v247 = vunpack.c.l.b16 %v179
      %v248 = vunpack.c.h.b16 %v179
      %v249 = vunpack.c.l.b16 %v180
      %v250 = vunpack.c.h.b16 %v180
      %v251 = vunpack.c.l.b16 %v181
      %v252 = vunpack.c.h.b16 %v181
      %v253 = vunpack.c.l.b16 %v182
      %v254 = vunpack.c.h.b16 %v182
      %v255 = vunpack.c.l.b16 %v183
      %v256 = vunpack.c.h.b16 %v183
      %v257 = vunpack.c.l.b16 %v184
      %v258 = vunpack.c.h.b16 %v184
      %v259 = vunpack.c.l.b16 %v185
      %v260 = vunpack.c.h.b16 %v185
      %v261 = vunpack.c.l.b16 %v186
      %v262 = vunpack.c.h.b16 %v186
      %v263 = vunpack.c.l.b16 %v187
      %v264 = vunpack.c.h.b16 %v187
      %v265 = vunpack.c.l.b16 %v188
      %v266 = vunpack.c.h.b16 %v188
      %v267 = vunpack.c.l.b16 %v189
      %v268 = vunpack.c.h.b16 %v189
      %v269 = vunpack.c.l.b16 %v190
      %v270 = vunpack.c.h.b16 %v190
      %v271 = vunpack.c.l.b16 %v191
      %v272 = vunpack.c.h.b16 %v191
      %v273 = vpack.c.b16 %v247, %v245
      %v274 = vpack.c.b16 %v248, %v246
      %v275 = vpack.c.b16 %v251, %v249
      %v276 = vpack.c.b16 %v252, %v250
      %v277 = vpack.c.b16 %v255, %v253
      %v278 = vpack.c.b16 %v256, %v254
      %v279 = vpack.c.b16 %v259, %v257
      %v280 = vpack.c.b16 %v260, %v258
      %v281 = vpack.c.b16 %v263, %v261
      %v282 = vpack.c.b16 %v264, %v262
      %v283 = vpack.c.b16 %v267, %v265
      %v284 = vpack.c.b16 %v268, %v266
      %v285 = vpack.c.b16 %v271, %v269
      %v286 = vpack.c.b16 %v272, %v270
      %v333 = vunpack.c.l.b16 %v192
      %v334 = vunpack.c.l.b16 %v193
      %v335 = vunpack.c.l.b16 %v194
      %v336 = vunpack.c.l.b16 %v195
      %v337 = vunpack.c.l.b16 %v196
      %v338 = vunpack.c.l.b16 %v197
      %v339 = vunpack.c.l.b16 %v198
      %v340 = vunpack.c.l.b16 %v199
      %v341 = vunpack.c.l.b16 %v200
      %v342 = vunpack.c.l.b16 %v201
      %v343 = vunpack.c.l.b16 %v202
      %v344 = vunpack.c.l.b16 %v203
      %v345 = vunpack.c.l.b16 %v204
      %v346 = vunpack.c.l.b16 %v205
      %v347 = vunpack.c.l.b16 %v206
      %v348 = vunpack.c.l.b16 %v207
      %v349 = vunpack.c.l.b16 %v208
      %v350 = vunpack.c.l.b16 %v209
      %v351 = vunpack.c.l.b16 %v210
      %v352 = vunpack.c.l.b16 %v211
      %v353 = vunpack.c.l.b16 %v212
      %v354 = vunpack.c.l.b16 %v213
      %v355 = vunpack.c.l.b16 %v214
      %v356 = vunpack.c.l.b16 %v215
      %v357 = vunpack.c.l.b16 %v216
      %v358 = vunpack.c.l.b16 %v217
      %v359 = vunpack.c.l.b16 %v218
      %v360 = vunpack.c.l.b16 %v219
      %v361 = vunpack.c.l.b16 %v220
      %v362 = vunpack.c.l.b16 %v221
      %v363 = vunpack.c.l.b16 %v222
      %v364 = vunpack.c.l.b16 %v223
      %v365 = vpack.c.b16 %v334, %v333
      %v366 = vpack.c.b16 %v336, %v335
      %v367 = vpack.c.b16 %v338, %v337
      %v368 = vpack.c.b16 %v340, %v339
      %v369 = vpack.c.b16 %v342, %v341
      %v370 = vpack.c.b16 %v344, %v343
      %v371 = vpack.c.b16 %v346, %v345
      %v372 = vpack.c.b16 %v348, %v347
      %v373 = vpack.c.b16 %v350, %v349
      %v374 = vpack.c.b16 %v352, %v351
      %v375 = vpack.c.b16 %v354, %v353
      %v376 = vpack.c.b16 %v356, %v355
      %v377 = vpack.c.b16 %v358, %v357
      %v378 = vpack.c.b16 %v360, %v359
      %v379 = vpack.c.b16 %v362, %v361
      %v380 = vpack.c.b16 %v364, %v363
      %397 = vmatprep.subr.bf16.mxu0 0
      %398 = vmatpush1.bf16.msra.mxu0 %v365
      %399 = vmatprep.subr.bf16.mxu0 0
      %400 = vmatpush1.bf16.msra.mxu0 %v366
      %401 = vmatprep.subr.bf16.mxu0 0
      %402 = vmatpush1.bf16.msra.mxu0 %v367
      %403 = vmatprep.subr.bf16.mxu0 0
      %404 = vmatpush1.bf16.msra.mxu0 %v368
      %405 = vmatprep.subr.bf16.mxu0 0
      %406 = vmatpush1.bf16.msra.mxu0 %v369
      %407 = vmatprep.subr.bf16.mxu0 0
      %408 = vmatpush1.bf16.msra.mxu0 %v370
      %409 = vmatprep.subr.bf16.mxu0 0
      %410 = vmatpush1.bf16.msra.mxu0 %v371
      %411 = vmatprep.subr.bf16.mxu0 0
      %412 = vmatpush1.bf16.msra.mxu0 %v372
      %413 = vmatprep.subr.bf16.mxu0 0
      %414 = vmatpush1.bf16.msra.mxu0 %v373
      %415 = vmatprep.subr.bf16.mxu0 0
      %416 = vmatpush1.bf16.msra.mxu0 %v374
      %417 = vmatprep.subr.bf16.mxu0 0
      %418 = vmatpush1.bf16.msra.mxu0 %v375
      %419 = vmatprep.subr.bf16.mxu0 0
      %420 = vmatpush1.bf16.msra.mxu0 %v376
      %421 = vmatprep.subr.bf16.mxu0 0
      %422 = vmatpush1.bf16.msra.mxu0 %v377
      %423 = vmatprep.subr.bf16.mxu0 0
      %424 = vmatpush1.bf16.msra.mxu0 %v378
      %425 = vmatprep.subr.bf16.mxu0 0
      %426 = vmatpush1.bf16.msra.mxu0 %v379
      %427 = vmatprep.subr.bf16.mxu0 0
      %428 = vmatpush1.bf16.msra.mxu0 %v380
      %429 = vmatprep.mubr.bf16.mxu0 %v274
      %430 = vmatmul.mubr.bf16.gmra.mrb[0].mxu0 %v273
      %v431 = vpop.f32.mrb[0].mxu0
      %v432 = vadd.f32 %v229, %v431
      %v433 = vpop.f32.mrb[0].mxu0
      %v434 = vpop.f32.mrb[0].mxu0
      %v435 = vadd.f32 %v229, %v434
      %v436 = vpop.f32.mrb[0].mxu0
      %437 = vmatprep.mubr.bf16.mxu0 %v276
      %438 = vmatmul.mubr.bf16.gmra.mrb[0].mxu0 %v275
      %v439 = vpop.f32.mrb[0].mxu0
      %v440 = vadd.f32 %v229, %v439
      %v441 = vpop.f32.mrb[0].mxu0
      %v442 = vpop.f32.mrb[0].mxu0
      %v443 = vadd.f32 %v229, %v442
      %v444 = vpop.f32.mrb[0].mxu0
      %445 = vmatprep.mubr.bf16.mxu0 %v278
      %446 = vmatmul.mubr.bf16.gmra.mrb[0].mxu0 %v277
      %v447 = vpop.f32.mrb[0].mxu0
      %v448 = vadd.f32 %v229, %v447
      %v449 = vpop.f32.mrb[0].mxu0
      %v450 = vpop.f32.mrb[0].mxu0
      %v451 = vadd.f32 %v229, %v450
      %v452 = vpop.f32.mrb[0].mxu0
      %453 = vmatprep.mubr.bf16.mxu0 %v280
      %454 = vmatmul.mubr.bf16.gmra.mrb[0].mxu0 %v279
      %v455 = vpop.f32.mrb[0].mxu0
      %v456 = vadd.f32 %v229, %v455
      %v457 = vpop.f32.mrb[0].mxu0
      %v458 = vpop.f32.mrb[0].mxu0
      %v459 = vadd.f32 %v229, %v458
      %v460 = vpop.f32.mrb[0].mxu0
      %461 = vmatprep.mubr.bf16.mxu0 %v282
      %462 = vmatmul.mubr.bf16.gmra.mrb[0].mxu0 %v281
      %v463 = vpop.f32.mrb[0].mxu0
      %v464 = vadd.f32 %v229, %v463
      %v465 = vpop.f32.mrb[0].mxu0
      %v466 = vpop.f32.mrb[0].mxu0
      %v467 = vadd.f32 %v229, %v466
      %v468 = vpop.f32.mrb[0].mxu0
      %469 = vmatprep.mubr.bf16.mxu0 %v284
      %470 = vmatmul.mubr.bf16.gmra.mrb[0].mxu0 %v283
      %v471 = vpop.f32.mrb[0].mxu0
      %v472 = vadd.f32 %v229, %v471
      %v473 = vpop.f32.mrb[0].mxu0
      %v474 = vpop.f32.mrb[0].mxu0
      %v475 = vadd.f32 %v229, %v474
      %v476 = vpop.f32.mrb[0].mxu0
      %477 = vmatprep.mubr.bf16.mxu0 %v286
      %478 = vmatmul.mubr.bf16.gmra.mrb[0].mxu0 %v285
      %v479 = vpop.f32.mrb[0].mxu0
      %v480 = vadd.f32 %v229, %v479
      %v481 = vpop.f32.mrb[0].mxu0
      %v482 = vpop.f32.mrb[0].mxu0
      %v483 = vadd.f32 %v229, %v482
      %v484 = vpop.f32.mrb[0].mxu0
      %485 = vdwg.mxu0
      %v486 = vmax.f32 %v432, 0.0
      %v487 = vmax.f32 %v435, 0.0
      %v488 = vmax.f32 %v440, 0.0
      %v489 = vmax.f32 %v443, 0.0
      %v490 = vmax.f32 %v448, 0.0
      %v491 = vmax.f32 %v451, 0.0
      %v492 = vmax.f32 %v456, 0.0
      %v493 = vmax.f32 %v459, 0.0
      %v494 = vmax.f32 %v464, 0.0
      %v495 = vmax.f32 %v467, 0.0
      %v496 = vmax.f32 %v472, 0.0
      %v497 = vmax.f32 %v475, 0.0
      %v498 = vmax.f32 %v480, 0.0
      %v499 = vmax.f32 %v483, 0.0
      %v500 = vpack.c.bf16 %v487, %v486
      %v501 = vpack.c.bf16 %v489, %v488
      %v502 = vpack.c.bf16 %v491, %v490
      %v503 = vpack.c.bf16 %v493, %v492
      %v504 = vpack.c.bf16 %v495, %v494
      %v505 = vpack.c.bf16 %v497, %v496
      %v506 = vpack.c.bf16 %v499, %v498
      %v514 = vunpack.c.l.b16 %v500
      %v515 = vunpack.c.h.b16 %v500
      %v516 = vunpack.c.l.b16 %v501
      %v517 = vunpack.c.h.b16 %v501
      %v518 = vunpack.c.l.b16 %v502
      %v519 = vunpack.c.h.b16 %v502
      %v520 = vunpack.c.l.b16 %v503
      %v521 = vunpack.c.h.b16 %v503
      %v522 = vunpack.c.l.b16 %v504
      %v523 = vunpack.c.h.b16 %v504
      %v524 = vunpack.c.l.b16 %v505
      %v525 = vunpack.c.h.b16 %v505
      %v526 = vunpack.c.l.b16 %v506
      %v527 = vunpack.c.h.b16 %v506
      %v528 = vpack.c.b16 %v514, %v514
      %v529 = vpack.c.b16 %v515, %v515
      %v530 = vpack.c.b16 %v516, %v516
      %v531 = vpack.c.b16 %v517, %v517
      %v532 = vpack.c.b16 %v518, %v518
      %v533 = vpack.c.b16 %v519, %v519
      %v534 = vpack.c.b16 %v520, %v520
      %v535 = vpack.c.b16 %v521, %v521
      %v536 = vpack.c.b16 %v522, %v522
      %v537 = vpack.c.b16 %v523, %v523
      %v538 = vpack.c.b16 %v524, %v524
      %v539 = vpack.c.b16 %v525, %v525
      %v540 = vpack.c.b16 %v526, %v526
      %v541 = vpack.c.b16 %v527, %v527
      %556 = vst [vmem:[%s175] sm:$0xf] %v528
      %557 = vst [vmem:[%s175 + $0x4] sm:$0xf] %v529
      %558 = vst [vmem:[%s175 + $0x8] sm:$0xf] %v530
      %559 = vst [vmem:[%s175 + $0xc] sm:$0xf] %v531
      %560 = vst [vmem:[%s175 + $0x10] sm:$0xf] %v532
      %561 = vst [vmem:[%s175 + $0x14] sm:$0xf] %v533
      %562 = vst [vmem:[%s175 + $0x18] sm:$0xf] %v534
      %563 = vst [vmem:[%s175 + $0x1c] sm:$0xf] %v535
      %564 = vst [vmem:[%s175 + $0x20] sm:$0xf] %v536
      %565 = vst [vmem:[%s175 + $0x24] sm:$0xf] %v537
      %566 = vst [vmem:[%s175 + $0x28] sm:$0xf] %v538
      %567 = vst [vmem:[%s175 + $0x2c] sm:$0xf] %v539
      %568 = vst [vmem:[%s175 + $0x30] sm:$0xf] %v540
      %569 = vst [vmem:[%s175 + $0x34] sm:$0xf] %v541
      %s570 = smul.u32 14, %s14
      %p571 = scmp.lt.s32.totalorder %s570, 27
      %s572 = scalar_select %p571, %s570, 27
      %s573 = smul.addr %s572, 4
      %s574 = scalar_lea.vmem %s3, %s573
      // Predicated region
      $region33: #{forward.4} parent=31 // pred_check
        %p575 = pneg %p100
      $region34: #{forward.4} parent=31 // pred_check_branch
        %577 = sbr.rel (%p575) target = $region36
      $region35: #{forward.4} parent=31 // pred_region
        %s578 = smul.u32 14, %s14
      $region36: #{forward.4} parent=31 // pred_fallthru
        _
    $region32: #{forward.4} parent=5 // pred_fallthru
      _
    %p579 = scmp.le.s32.totalorder 2, %s9
    // Predicated region
    $region37: #{forward.4} parent=5 // pred_check
      %p580 = pneg %p579
    $region38: #{forward.4} parent=5 // pred_check_branch
      %582 = sbr.rel (%p580) target = $region40
    $region39: #{forward.4} parent=5 // pred_region
      %s583 = ssub.s32 %s9, 2
      // Predicated region
      $region41: #{forward.4} parent=39 // pred_check
        %p584 = pneg %p106
      $region42: #{forward.4} parent=39 // pred_check_branch
        %586 = sbr.rel (%p584) target = $region44
      $region43: #{forward.4} parent=39 // pred_region
        %s587 = smul.u32 14, %s15
        %p588 = scmp.lt.s32.totalorder %s587, 27
        %s589 = scalar_select %p588, %s587, 27
        %s590 = smul.addr %s589, 4
        %s591 = scalar_lea.vmem %s3, %s590
      $region44: #{forward.4} parent=39 // pred_fallthru
        _
    $region40: #{forward.4} parent=5 // pred_fallthru
      _
  $region6: #{forward.4} parent=0 // loop_footer
    %s13 = sadd.s32 1, %s9
  $region7: #{forward.4} parent=0 // loop_footer_branch
    %8 = sbr.rel target = $region3
  $region8: #{forward.4} parent=0 // loop_exit
    _

// kernel: forward.5
$region0: #{forward.5}
  #allocation0 [shape = 'u32[]', space=smem, size = 0x4, offset = 0x4, fixed_abs, tag = 'smem constant byte address 0x4 - core index']
  #allocation1 [shape = 'u32[144,128]{1,0:T(1,128)}', space=vmem, size = 0x12000, scoped, tag = 'internal scratch']
  %s0 = inlined_call_operand.vmem [shape: bf16[32,512], index: 0, kind: input, shape index: {}]
  %s1 = inlined_call_operand.vmem [shape: bf16[512,128], index: 1, kind: input, shape index: {}]
  %s2 = inlined_call_operand.vmem [shape: f32[1,128], index: 2, kind: input, shape index: {}]
  %s3 = inlined_call_operand.vmem [shape: bf16[32,128], index: 3, kind: output, shape index: {}]
  %s4 = sld [smem:[#allocation0]]
  $region45: #{forward.5} parent=0
    _
  %s6 = ssub.s32 1, %s4
  %s7 = scalar_select 0, %s6, %s4
  loop: start=0, step=1, limit=4
  $region2: #{forward.5} parent=0 // loop_pre_header
    _
  $region3: #{forward.5} parent=0 // loop_header
    %s9 = sphi 0, %s13
    %p10 = scmp.ge.s32.totalorder %s9, 4
    %s19 = sphi 0, %s21
    %s22 = sphi 0, %s19
    %s23 = sphi 0, %s22
    %s39 = sphi 0, %s23
    %s43 = sphi 0, %s43
    %s45 = sphi 0, %s43
    %s46 = sphi 0, %s45
    %s60 = sphi 0, %s46
    %s64 = sphi 0, %s64
    %s66 = sphi 0, %s64
    %s67 = sphi 0, %s66
    %s81 = sphi 0, %s67
    %s87 = sphi 0, %s89
    %s90 = sphi 0, %s87
    %s91 = sphi 0, %s90
    %s107 = sphi 0, %s91
  $region4: #{forward.5} parent=0 // loop_header_branch
    %12 = sbr.rel (%p10) target = $region8
  $region5: #{forward.5} parent=0 // loop_body
    %s14 = ssub.s32 %s9, 1
    %s15 = ssub.s32 %s9, 2
    %s16 = sadd.s32 %s9, 1
    %s17 = ssub.s32 %s9, %s16
    %p18 = scmp.eq.s32.totalorder %s17, 0
    %s20 = sadd.s32 %s19, 1
    %s21 = scalar_select %p18, %s19, %s20
    %p24 = pneg %p18
    %p25 = scmp.eq.s32.totalorder %s9, 1
    %p26 = por %p24, %p25
    %p27 = scmp.ne.s32.totalorder %s19, %s22
    %p28 = scmp.eq.s32.totalorder %s9, 0
    %p29 = por %p27, %p28
    %p30 = scmp.ne.s32.totalorder %s19, %s22
    %p31 = scmp.eq.s32.totalorder %s14, 1
    %p32 = por %p30, %p31
    %p33 = scmp.ne.s32.totalorder %s22, %s23
    %p34 = scmp.eq.s32.totalorder %s14, 0
    %p35 = por %p33, %p34
    %p36 = scmp.ne.s32.totalorder %s22, %s23
    %p37 = scmp.eq.s32.totalorder %s15, 1
    %p38 = por %p36, %p37
    %p40 = scmp.ne.s32.totalorder %s23, %s39
    %p41 = scmp.eq.s32.totalorder %s15, 0
    %p42 = por %p40, %p41
    %s44 = sadd.s32 %s43, 1
    %p47 = scmp.eq.s32.totalorder %s9, 1
    %p48 = scmp.ne.s32.totalorder %s43, %s45
    %p49 = scmp.eq.s32.totalorder %s9, 0
    %p50 = por %p48, %p49
    %p51 = scmp.ne.s32.totalorder %s43, %s45
    %p52 = scmp.eq.s32.totalorder %s14, 1
    %p53 = por %p51, %p52
    %p54 = scmp.ne.s32.totalorder %s45, %s46
    %p55 = scmp.eq.s32.totalorder %s14, 0
    %p56 = por %p54, %p55
    %p57 = scmp.ne.s32.totalorder %s45, %s46
    %p58 = scmp.eq.s32.totalorder %s15, 1
    %p59 = por %p57, %p58
    %p61 = scmp.ne.s32.totalorder %s46, %s60
    %p62 = scmp.eq.s32.totalorder %s15, 0
    %p63 = por %p61, %p62
    %s65 = sadd.s32 %s64, 1
    %p68 = scmp.eq.s32.totalorder %s9, 1
    %p69 = scmp.ne.s32.totalorder %s64, %s66
    %p70 = scmp.eq.s32.totalorder %s9, 0
    %p71 = por %p69, %p70
    %p72 = scmp.ne.s32.totalorder %s64, %s66
    %p73 = scmp.eq.s32.totalorder %s14, 1
    %p74 = por %p72, %p73
    %p75 = scmp.ne.s32.totalorder %s66, %s67
    %p76 = scmp.eq.s32.totalorder %s14, 0
    %p77 = por %p75, %p76
    %p78 = scmp.ne.s32.totalorder %s66, %s67
    %p79 = scmp.eq.s32.totalorder %s15, 1
    %p80 = por %p78, %p79
    %p82 = scmp.ne.s32.totalorder %s67, %s81
    %p83 = scmp.eq.s32.totalorder %s15, 0
    %p84 = por %p82, %p83
    %s85 = ssub.s32 %s9, %s16
    %p86 = scmp.eq.s32.totalorder %s85, 0
    %s88 = sadd.s32 %s87, 1
    %s89 = scalar_select %p86, %s87, %s88
    %p92 = pneg %p86
    %p93 = scmp.eq.s32.totalorder %s9, 1
    %p94 = por %p92, %p93
    %p95 = scmp.ne.s32.totalorder %s87, %s90
    %p96 = scmp.eq.s32.totalorder %s9, 0
    %p97 = por %p95, %p96
    %p98 = scmp.ne.s32.totalorder %s87, %s90
    %p99 = scmp.eq.s32.totalorder %s14, 1
    %p100 = por %p98, %p99
    %p101 = scmp.ne.s32.totalorder %s90, %s91
    %p102 = scmp.eq.s32.totalorder %s14, 0
    %p103 = por %p101, %p102
    %p104 = scmp.ne.s32.totalorder %s90, %s91
    %p105 = scmp.eq.s32.totalorder %s15, 1
    %p106 = por %p104, %p105
    %p108 = scmp.ne.s32.totalorder %s91, %s107
    %p109 = scmp.eq.s32.totalorder %s15, 0
    %p110 = por %p108, %p109
    %p111 = scmp.le.s32.totalorder 1, %s9
    %p112 = scmp.lt.s32.totalorder %s9, 3
    %p113 = pnand %p111, %p112
    %p114 = pneg %p113
    // Predicated region
    $region9: #{forward.5} parent=5 // pred_check
      _
    $region10: #{forward.5} parent=5 // pred_check_branch
      %116 = sbr.rel (%p113) target = $region12
    $region11: #{forward.5} parent=5 // pred_region
      %s117 = ssub.s32 %s9, 1
      // Predicated region
      $region13: #{forward.5} parent=11 // pred_check
        %p118 = pneg %p56
      $region14: #{forward.5} parent=11 // pred_check_branch
        %120 = sbr.rel (%p118) target = $region16
      $region15: #{forward.5} parent=11 // pred_region
        _
      $region16: #{forward.5} parent=11 // pred_fallthru
        _
      // Predicated region
      $region17: #{forward.5} parent=11 // pred_check
        %p121 = pneg %p77
      $region18: #{forward.5} parent=11 // pred_check_branch
        %123 = sbr.rel (%p121) target = $region20
      $region19: #{forward.5} parent=11 // pred_region
        _
      $region20: #{forward.5} parent=11 // pred_fallthru
        _
    $region12: #{forward.5} parent=5 // pred_fallthru
      _
    %p124 = scmp.lt.s32.totalorder %s9, 2
    // Predicated region
    $region21: #{forward.5} parent=5 // pred_check
      %p125 = pneg %p124
    $region22: #{forward.5} parent=5 // pred_check_branch
      %127 = sbr.rel (%p125) target = $region24
    $region23: #{forward.5} parent=5 // pred_region
      // Predicated region
      $region25: #{forward.5} parent=23 // pred_check
        %p128 = pneg %p29
      $region26: #{forward.5} parent=23 // pred_check_branch
        %130 = sbr.rel (%p128) target = $region28
      $region27: #{forward.5} parent=23 // pred_region
        %s131 = smul.u32 2, %s9
        %p132 = scmp.lt.s32.totalorder %s131, 3
        %s133 = scalar_select %p132, %s131, 3
        %s134 = smul.addr %s133, 4
        %s135 = smul.addr %s134, 4
        %s136 = scalar_lea.vmem %s0, %s135
        %s137 = smul.u32 2, %s9
      $region28: #{forward.5} parent=23 // pred_fallthru
        _
    $region24: #{forward.5} parent=5 // pred_fallthru
      _
    %p138 = scmp.le.s32.totalorder 1, %s9
    %p139 = scmp.lt.s32.totalorder %s9, 3
    %p140 = pnand %p138, %p139
    %p141 = pneg %p140
    // Predicated region
    $region29: #{forward.5} parent=5 // pred_check
      _
    $region30: #{forward.5} parent=5 // pred_check_branch
      %143 = sbr.rel (%p140) target = $region32
    $region31: #{forward.5} parent=5 // pred_region
      %s144 = ssub.s32 %s9, 1
      %s145 = smul.u32 2, %s14
      %p146 = scmp.lt.s32.totalorder %s145, 3
      %s147 = scalar_select %p146, %s145, 3
      %s148 = smul.addr %s147, 4
      %s149 = smul.addr %s148, 4
      %s150 = scalar_lea.vmem %s0, %s149
      %p151 = pneg %p35
      %p152 = pneg %p32
      %p153 = pneg %p56
      %p154 = pneg %p53
      %p155 = pneg %p77
      %p156 = pneg %p74
      %p157 = pneg %p103
      %p158 = pneg %p100
      %s159 = smul.u32 2, %s14
      %p160 = scmp.lt.s32.totalorder %s159, 3
      %s161 = scalar_select %p160, %s159, 3
      %s162 = smul.addr %s161, 4
      %s163 = scalar_lea.vmem %s3, %s162
      %s164 = smul.u32 2, %s14
      %p165 = scmp.lt.s32.totalorder %s164, 3
      %s166 = scalar_select %p165, %s164, 3
      %s167 = smul.addr %s166, 4
      %s168 = smul.addr %s167, 4
      %s169 = scalar_lea.vmem %s0, %s168
      %s170 = smul.u32 2, %s14
      %s171 = smul.u32 2, %s14
      %p172 = scmp.lt.s32.totalorder %s171, 3
      %s173 = scalar_select %p172, %s171, 3
      %s174 = smul.addr %s173, 4
      %s175 = scalar_lea.vmem %s3, %s174
      %s176 = smul.u32 2, %s14
      %v178 = vld [vmem:[%s169] sm:$0xff]
      %v179 = vld [vmem:[%s169 + $0x8] sm:$0xff]
      %v180 = vld [vmem:[%s169 + $0x10] sm:$0xff]
      %v181 = vld [vmem:[%s169 + $0x18] sm:$0xff]
      %v182 = vld [vmem:[%s1] sm:$0xf]
      %v183 = vld [vmem:[%s1 + $0x4] sm:$0xf]
      %v184 = vld [vmem:[%s1 + $0x8] sm:$0xf]
      %v185 = vld [vmem:[%s1 + $0xc] sm:$0xf]
      %v186 = vld [vmem:[%s1 + $0x10] sm:$0xf]
      %v187 = vld [vmem:[%s1 + $0x14] sm:$0xf]
      %v188 = vld [vmem:[%s1 + $0x18] sm:$0xf]
      %v189 = vld [vmem:[%s1 + $0x1c] sm:$0xf]
      %v190 = vld [vmem:[%s1 + $0x20] sm:$0xf]
      %v191 = vld [vmem:[%s1 + $0x24] sm:$0xf]
      %v192 = vld [vmem:[%s1 + $0x28] sm:$0xf]
      %v193 = vld [vmem:[%s1 + $0x2c] sm:$0xf]
      %v194 = vld [vmem:[%s1 + $0x30] sm:$0xf]
      %v195 = vld [vmem:[%s1 + $0x34] sm:$0xf]
      %v196 = vld [vmem:[%s1 + $0x38] sm:$0xf]
      %v197 = vld [vmem:[%s1 + $0x3c] sm:$0xf]
      %v198 = vld [vmem:[%s1 + $0x40] sm:$0xf]
      %v199 = vld [vmem:[%s1 + $0x44] sm:$0xf]
      %v200 = vld [vmem:[%s1 + $0x48] sm:$0xf]
      %v201 = vld [vmem:[%s1 + $0x4c] sm:$0xf]
      %v202 = vld [vmem:[%s1 + $0x50] sm:$0xf]
      %v203 = vld [vmem:[%s1 + $0x54] sm:$0xf]
      %v204 = vld [vmem:[%s1 + $0x58] sm:$0xf]
      %v205 = vld [vmem:[%s1 + $0x5c] sm:$0xf]
      %v206 = vld [vmem:[%s1 + $0x60] sm:$0xf]
      %v207 = vld [vmem:[%s1 + $0x64] sm:$0xf]
      %v208 = vld [vmem:[%s1 + $0x68] sm:$0xf]
      %v209 = vld [vmem:[%s1 + $0x6c] sm:$0xf]
      %v210 = vld [vmem:[%s1 + $0x70] sm:$0xf]
      %v211 = vld [vmem:[%s1 + $0x74] sm:$0xf]
      %v212 = vld [vmem:[%s1 + $0x78] sm:$0xf]
      %v213 = vld [vmem:[%s1 + $0x7c] sm:$0xf]
      %v214 = vld [vmem:[%s1 + $0x80] sm:$0xf]
      %v215 = vld [vmem:[%s1 + $0x84] sm:$0xf]
      %v216 = vld [vmem:[%s1 + $0x88] sm:$0xf]
      %v217 = vld [vmem:[%s1 + $0x8c] sm:$0xf]
      %v218 = vld [vmem:[%s1 + $0x90] sm:$0xf]
      %v219 = vld [vmem:[%s1 + $0x94] sm:$0xf]
      %v220 = vld [vmem:[%s1 + $0x98] sm:$0xf]
      %v221 = vld [vmem:[%s1 + $0x9c] sm:$0xf]
      %v222 = vld [vmem:[%s1 + $0xa0] sm:$0xf]
      %v223 = vld [vmem:[%s1 + $0xa4] sm:$0xf]
      %v224 = vld [vmem:[%s1 + $0xa8] sm:$0xf]
      %v225 = vld [vmem:[%s1 + $0xac] sm:$0xf]
      %v226 = vld [vmem:[%s1 + $0xb0] sm:$0xf]
      %v227 = vld [vmem:[%s1 + $0xb4] sm:$0xf]
      %v228 = vld [vmem:[%s1 + $0xb8] sm:$0xf]
      %v229 = vld [vmem:[%s1 + $0xbc] sm:$0xf]
      %v230 = vld [vmem:[%s1 + $0xc0] sm:$0xf]
      %v231 = vld [vmem:[%s1 + $0xc4] sm:$0xf]
      %v232 = vld [vmem:[%s1 + $0xc8] sm:$0xf]
      %v233 = vld [vmem:[%s1 + $0xcc] sm:$0xf]
      %v234 = vld [vmem:[%s1 + $0xd0] sm:$0xf]
      %v235 = vld [vmem:[%s1 + $0xd4] sm:$0xf]
      %v236 = vld [vmem:[%s1 + $0xd8] sm:$0xf]
      %v237 = vld [vmem:[%s1 + $0xdc] sm:$0xf]
      %v238 = vld [vmem:[%s1 + $0xe0] sm:$0xf]
      %v239 = vld [vmem:[%s1 + $0xe4] sm:$0xf]
      %v240 = vld [vmem:[%s1 + $0xe8] sm:$0xf]
      %v241 = vld [vmem:[%s1 + $0xec] sm:$0xf]
      %v242 = vld [vmem:[%s1 + $0xf0] sm:$0xf]
      %v243 = vld [vmem:[%s1 + $0xf4] sm:$0xf]
      %v244 = vld [vmem:[%s1 + $0xf8] sm:$0xf]
      %v245 = vld [vmem:[%s1 + $0xfc] sm:$0xf]
      %v246 = vld [vmem:[%s2] sm:$0x1]
      %v248 = vlaneseq
      %v249 = vshrl.u32 %v248, 7
      %v250 = vsub.s32 0, %v249
      %v251 = vrot.slane %v246, %v250
      %v257 = vunpack.c.l.b16 %v178
      %v258 = vunpack.c.h.b16 %v178
      %v259 = vunpack.c.l.b16 %v179
      %v260 = vunpack.c.h.b16 %v179
      %v261 = vunpack.c.l.b16 %v180
      %v262 = vunpack.c.h.b16 %v180
      %v263 = vunpack.c.l.b16 %v181
      %v264 = vunpack.c.h.b16 %v181
      %v265 = vpack.c.b16 %v261, %v257
      %v266 = vpack.c.b16 %v262, %v258
      %v267 = vpack.c.b16 %v263, %v259
      %v268 = vpack.c.b16 %v264, %v260
      %v337 = vunpack.c.l.b16 %v182
      %v338 = vunpack.c.l.b16 %v183
      %v339 = vunpack.c.l.b16 %v184
      %v340 = vunpack.c.l.b16 %v185
      %v341 = vunpack.c.l.b16 %v186
      %v342 = vunpack.c.l.b16 %v187
      %v343 = vunpack.c.l.b16 %v188
      %v344 = vunpack.c.l.b16 %v189
      %v345 = vunpack.c.l.b16 %v190
      %v346 = vunpack.c.l.b16 %v191
      %v347 = vunpack.c.l.b16 %v192
      %v348 = vunpack.c.l.b16 %v193
      %v349 = vunpack.c.l.b16 %v194
      %v350 = vunpack.c.l.b16 %v195
      %v351 = vunpack.c.l.b16 %v196
      %v352 = vunpack.c.l.b16 %v197
      %v353 = vunpack.c.l.b16 %v198
      %v354 = vunpack.c.l.b16 %v199
      %v355 = vunpack.c.l.b16 %v200
      %v356 = vunpack.c.l.b16 %v201
      %v357 = vunpack.c.l.b16 %v202
      %v358 = vunpack.c.l.b16 %v203
      %v359 = vunpack.c.l.b16 %v204
      %v360 = vunpack.c.l.b16 %v205
      %v361 = vunpack.c.l.b16 %v206
      %v362 = vunpack.c.l.b16 %v207
      %v363 = vunpack.c.l.b16 %v208
      %v364 = vunpack.c.l.b16 %v209
      %v365 = vunpack.c.l.b16 %v210
      %v366 = vunpack.c.l.b16 %v211
      %v367 = vunpack.c.l.b16 %v212
      %v368 = vunpack.c.l.b16 %v213
      %v369 = vunpack.c.l.b16 %v214
      %v370 = vunpack.c.l.b16 %v215
      %v371 = vunpack.c.l.b16 %v216
      %v372 = vunpack.c.l.b16 %v217
      %v373 = vunpack.c.l.b16 %v218
      %v374 = vunpack.c.l.b16 %v219
      %v375 = vunpack.c.l.b16 %v220
      %v376 = vunpack.c.l.b16 %v221
      %v377 = vunpack.c.l.b16 %v222
      %v378 = vunpack.c.l.b16 %v223
      %v379 = vunpack.c.l.b16 %v224
      %v380 = vunpack.c.l.b16 %v225
      %v381 = vunpack.c.l.b16 %v226
      %v382 = vunpack.c.l.b16 %v227
      %v383 = vunpack.c.l.b16 %v228
      %v384 = vunpack.c.l.b16 %v229
      %v385 = vunpack.c.l.b16 %v230
      %v386 = vunpack.c.l.b16 %v231
      %v387 = vunpack.c.l.b16 %v232
      %v388 = vunpack.c.l.b16 %v233
      %v389 = vunpack.c.l.b16 %v234
      %v390 = vunpack.c.l.b16 %v235
      %v391 = vunpack.c.l.b16 %v236
      %v392 = vunpack.c.l.b16 %v237
      %v393 = vunpack.c.l.b16 %v238
      %v394 = vunpack.c.l.b16 %v239
      %v395 = vunpack.c.l.b16 %v240
      %v396 = vunpack.c.l.b16 %v241
      %v397 = vunpack.c.l.b16 %v242
      %v398 = vunpack.c.l.b16 %v243
      %v399 = vunpack.c.l.b16 %v244
      %v400 = vunpack.c.l.b16 %v245
      %v401 = vpack.c.b16 %v338, %v337
      %v402 = vpack.c.b16 %v340, %v339
      %v403 = vpack.c.b16 %v342, %v341
      %v404 = vpack.c.b16 %v344, %v343
      %v405 = vpack.c.b16 %v346, %v345
      %v406 = vpack.c.b16 %v348, %v347
      %v407 = vpack.c.b16 %v350, %v349
      %v408 = vpack.c.b16 %v352, %v351
      %v409 = vpack.c.b16 %v354, %v353
      %v410 = vpack.c.b16 %v356, %v355
      %v411 = vpack.c.b16 %v358, %v357
      %v412 = vpack.c.b16 %v360, %v359
      %v413 = vpack.c.b16 %v362, %v361
      %v414 = vpack.c.b16 %v364, %v363
      %v415 = vpack.c.b16 %v366, %v365
      %v416 = vpack.c.b16 %v368, %v367
      %v417 = vpack.c.b16 %v370, %v369
      %v418 = vpack.c.b16 %v372, %v371
      %v419 = vpack.c.b16 %v374, %v373
      %v420 = vpack.c.b16 %v376, %v375
      %v421 = vpack.c.b16 %v378, %v377
      %v422 = vpack.c.b16 %v380, %v379
      %v423 = vpack.c.b16 %v382, %v381
      %v424 = vpack.c.b16 %v384, %v383
      %v425 = vpack.c.b16 %v386, %v385
      %v426 = vpack.c.b16 %v388, %v387
      %v427 = vpack.c.b16 %v390, %v389
      %v428 = vpack.c.b16 %v392, %v391
      %v429 = vpack.c.b16 %v394, %v393
      %v430 = vpack.c.b16 %v396, %v395
      %v431 = vpack.c.b16 %v398, %v397
      %v432 = vpack.c.b16 %v400, %v399
      %465 = vmatprep.subr.bf16.mxu0 0
      %466 = vmatpush1.bf16.msra.mxu0 %v401
      %467 = vmatprep.subr.bf16.mxu0 0
      %468 = vmatpush1.bf16.msra.mxu0 %v402
      %469 = vmatprep.subr.bf16.mxu0 0
      %470 = vmatpush1.bf16.msra.mxu0 %v403
      %471 = vmatprep.subr.bf16.mxu0 0
      %472 = vmatpush1.bf16.msra.mxu0 %v404
      %473 = vmatprep.subr.bf16.mxu0 0
      %474 = vmatpush1.bf16.msra.mxu0 %v405
      %475 = vmatprep.subr.bf16.mxu0 0
      %476 = vmatpush1.bf16.msra.mxu0 %v406
      %477 = vmatprep.subr.bf16.mxu0 0
      %478 = vmatpush1.bf16.msra.mxu0 %v407
      %479 = vmatprep.subr.bf16.mxu0 0
      %480 = vmatpush1.bf16.msra.mxu0 %v408
      %481 = vmatprep.subr.bf16.mxu0 0
      %482 = vmatpush1.bf16.msra.mxu0 %v409
      %483 = vmatprep.subr.bf16.mxu0 0
      %484 = vmatpush1.bf16.msra.mxu0 %v410
      %485 = vmatprep.subr.bf16.mxu0 0
      %486 = vmatpush1.bf16.msra.mxu0 %v411
      %487 = vmatprep.subr.bf16.mxu0 0
      %488 = vmatpush1.bf16.msra.mxu0 %v412
      %489 = vmatprep.subr.bf16.mxu0 0
      %490 = vmatpush1.bf16.msra.mxu0 %v413
      %491 = vmatprep.subr.bf16.mxu0 0
      %492 = vmatpush1.bf16.msra.mxu0 %v414
      %493 = vmatprep.subr.bf16.mxu0 0
      %494 = vmatpush1.bf16.msra.mxu0 %v415
      %495 = vmatprep.subr.bf16.mxu0 0
      %496 = vmatpush1.bf16.msra.mxu0 %v416
      %497 = vmatprep.mubr.bf16.mxu0 %v266
      %498 = vmatmul.mubr.bf16.gmra.mrb[0].mxu0 %v265
      %v499 = vpop.f32.mrb[0].mxu0
      %v500 = vadd.f32 %v251, %v499
      %v501 = vpop.f32.mrb[0].mxu0
      %v502 = vpop.f32.mrb[0].mxu0
      %v503 = vadd.f32 %v251, %v502
      %v504 = vpop.f32.mrb[0].mxu0
      %505 = vdwg.mxu0
      %506 = vmatprep.subr.bf16.mxu0 0
      %507 = vmatpush1.bf16.msra.mxu0 %v417
      %508 = vmatprep.subr.bf16.mxu0 0
      %509 = vmatpush1.bf16.msra.mxu0 %v418
      %510 = vmatprep.subr.bf16.mxu0 0
      %511 = vmatpush1.bf16.msra.mxu0 %v419
      %512 = vmatprep.subr.bf16.mxu0 0
      %513 = vmatpush1.bf16.msra.mxu0 %v420
      %514 = vmatprep.subr.bf16.mxu0 0
      %515 = vmatpush1.bf16.msra.mxu0 %v421
      %516 = vmatprep.subr.bf16.mxu0 0
      %517 = vmatpush1.bf16.msra.mxu0 %v422
      %518 = vmatprep.subr.bf16.mxu0 0
      %519 = vmatpush1.bf16.msra.mxu0 %v423
      %520 = vmatprep.subr.bf16.mxu0 0
      %521 = vmatpush1.bf16.msra.mxu0 %v424
      %522 = vmatprep.subr.bf16.mxu0 0
      %523 = vmatpush1.bf16.msra.mxu0 %v425
      %524 = vmatprep.subr.bf16.mxu0 0
      %525 = vmatpush1.bf16.msra.mxu0 %v426
      %526 = vmatprep.subr.bf16.mxu0 0
      %527 = vmatpush1.bf16.msra.mxu0 %v427
      %528 = vmatprep.subr.bf16.mxu0 0
      %529 = vmatpush1.bf16.msra.mxu0 %v428
      %530 = vmatprep.subr.bf16.mxu0 0
      %531 = vmatpush1.bf16.msra.mxu0 %v429
      %532 = vmatprep.subr.bf16.mxu0 0
      %533 = vmatpush1.bf16.msra.mxu0 %v430
      %534 = vmatprep.subr.bf16.mxu0 0
      %535 = vmatpush1.bf16.msra.mxu0 %v431
      %536 = vmatprep.subr.bf16.mxu0 0
      %537 = vmatpush1.bf16.msra.mxu0 %v432
      %538 = vmatprep.mubr.bf16.mxu0 %v268
      %539 = vmatmul.mubr.bf16.gmra.mrb[0].mxu0 %v267
      %v540 = vpop.f32.mrb[0].mxu0
      %v541 = vadd.f32 %v500, %v540
      %v542 = vpop.f32.mrb[0].mxu0
      %v543 = vpop.f32.mrb[0].mxu0
      %v544 = vadd.f32 %v503, %v543
      %v545 = vpop.f32.mrb[0].mxu0
      %546 = vdwg.mxu0
      %v547 = vmax.f32 %v541, 0.0
      %v548 = vmax.f32 %v544, 0.0
      %v549 = vpack.c.bf16 %v548, %v547
      %v551 = vunpack.c.l.b16 %v549
      %v552 = vunpack.c.h.b16 %v549
      %v553 = vpack.c.b16 %v551, %v551
      %v554 = vpack.c.b16 %v552, %v552
      %557 = vst [vmem:[%s175] sm:$0xf] %v553
      %558 = vst [vmem:[%s175 + $0x4] sm:$0xf] %v554
      %s559 = smul.u32 2, %s14
      %p560 = scmp.lt.s32.totalorder %s559, 3
      %s561 = scalar_select %p560, %s559, 3
      %s562 = smul.addr %s561, 4
      %s563 = scalar_lea.vmem %s3, %s562
      // Predicated region
      $region33: #{forward.5} parent=31 // pred_check
        %p564 = pneg %p100
      $region34: #{forward.5} parent=31 // pred_check_branch
        %566 = sbr.rel (%p564) target = $region36
      $region35: #{forward.5} parent=31 // pred_region
        %s567 = smul.u32 2, %s14
      $region36: #{forward.5} parent=31 // pred_fallthru
        _
    $region32: #{forward.5} parent=5 // pred_fallthru
      _
    %p568 = scmp.le.s32.totalorder 2, %s9
    // Predicated region
    $region37: #{forward.5} parent=5 // pred_check
      %p569 = pneg %p568
    $region38: #{forward.5} parent=5 // pred_check_branch
      %571 = sbr.rel (%p569) target = $region40
    $region39: #{forward.5} parent=5 // pred_region
      %s572 = ssub.s32 %s9, 2
      // Predicated region
      $region41: #{forward.5} parent=39 // pred_check
        %p573 = pneg %p106
      $region42: #{forward.5} parent=39 // pred_check_branch
        %575 = sbr.rel (%p573) target = $region44
      $region43: #{forward.5} parent=39 // pred_region
        %s576 = smul.u32 2, %s15
        %p577 = scmp.lt.s32.totalorder %s576, 3
        %s578 = scalar_select %p577, %s576, 3
        %s579 = smul.addr %s578, 4
        %s580 = scalar_lea.vmem %s3, %s579
      $region44: #{forward.5} parent=39 // pred_fallthru
        _
    $region40: #{forward.5} parent=5 // pred_fallthru
      _
  $region6: #{forward.5} parent=0 // loop_footer
    %s13 = sadd.s32 1, %s9
  $region7: #{forward.5} parent=0 // loop_footer_branch
    %8 = sbr.rel target = $region3
  $region8: #{forward.5} parent=0 // loop_exit
    _

// kernel: forward.6
$region0: #{forward.6}
  #allocation0 [shape = 'u32[]', space=smem, size = 0x4, offset = 0x4, fixed_abs, tag = 'smem constant byte address 0x4 - core index']
  #allocation1 [shape = 'u32[144,128]{1,0:T(1,128)}', space=vmem, size = 0x12000, scoped, tag = 'internal scratch']
  %s0 = inlined_call_operand.vmem [shape: bf16[16,640], index: 0, kind: input, shape index: {}]
  %s1 = inlined_call_operand.vmem [shape: bf16[640,128], index: 1, kind: input, shape index: {}]
  %s2 = inlined_call_operand.vmem [shape: f32[1,128], index: 2, kind: input, shape index: {}]
  %s3 = inlined_call_operand.vmem [shape: bf16[16,128], index: 3, kind: output, shape index: {}]
  %s4 = sld [smem:[#allocation0]]
  $region22: #{forward.6} parent=0
    _
  %s6 = ssub.s32 1, %s4
  %s7 = scalar_select 0, %s6, %s4
  // Predicated region
  $region2: #{forward.6} parent=0 // pred_check
    _
  $region3: #{forward.6} parent=0 // pred_check_branch
    %9 = sbr.rel (0) target = $region5
  $region4: #{forward.6} parent=0 // pred_region
    _
  $region5: #{forward.6} parent=0 // pred_fallthru
    _
  // Predicated region
  $region6: #{forward.6} parent=0 // pred_check
    _
  $region7: #{forward.6} parent=0 // pred_check_branch
    %11 = sbr.rel (0) target = $region9
  $region8: #{forward.6} parent=0 // pred_region
    _
  $region9: #{forward.6} parent=0 // pred_fallthru
    _
  // Predicated region
  $region10: #{forward.6} parent=0 // pred_check
    _
  $region11: #{forward.6} parent=0 // pred_check_branch
    %13 = sbr.rel (0) target = $region13
  $region12: #{forward.6} parent=0 // pred_region
    _
  $region13: #{forward.6} parent=0 // pred_fallthru
    _
  %v15 = vld [vmem:[%s0] sm:$0xff]
  %v16 = vld [vmem:[%s0 + $0x8] sm:$0xff]
  %v17 = vld [vmem:[%s0 + $0x10] sm:$0xf]
  %v18 = vld [vmem:[%s0 + $0x14] sm:$0xff]
  %v19 = vld [vmem:[%s0 + $0x1c] sm:$0xff]
  %v20 = vld [vmem:[%s0 + $0x24] sm:$0xf]
  %v21 = vld [vmem:[%s1] sm:$0xf]
  %v22 = vld [vmem:[%s1 + $0x4] sm:$0xf]
  %v23 = vld [vmem:[%s1 + $0x8] sm:$0xf]
  %v24 = vld [vmem:[%s1 + $0xc] sm:$0xf]
  %v25 = vld [vmem:[%s1 + $0x10] sm:$0xf]
  %v26 = vld [vmem:[%s1 + $0x14] sm:$0xf]
  %v27 = vld [vmem:[%s1 + $0x18] sm:$0xf]
  %v28 = vld [vmem:[%s1 + $0x1c] sm:$0xf]
  %v29 = vld [vmem:[%s1 + $0x20] sm:$0xf]
  %v30 = vld [vmem:[%s1 + $0x24] sm:$0xf]
  %v31 = vld [vmem:[%s1 + $0x28] sm:$0xf]
  %v32 = vld [vmem:[%s1 + $0x2c] sm:$0xf]
  %v33 = vld [vmem:[%s1 + $0x30] sm:$0xf]
  %v34 = vld [vmem:[%s1 + $0x34] sm:$0xf]
  %v35 = vld [vmem:[%s1 + $0x38] sm:$0xf]
  %v36 = vld [vmem:[%s1 + $0x3c] sm:$0xf]
  %v37 = vld [vmem:[%s1 + $0x40] sm:$0xf]
  %v38 = vld [vmem:[%s1 + $0x44] sm:$0xf]
  %v39 = vld [vmem:[%s1 + $0x48] sm:$0xf]
  %v40 = vld [vmem:[%s1 + $0x4c] sm:$0xf]
  %v41 = vld [vmem:[%s1 + $0x50] sm:$0xf]
  %v42 = vld [vmem:[%s1 + $0x54] sm:$0xf]
  %v43 = vld [vmem:[%s1 + $0x58] sm:$0xf]
  %v44 = vld [vmem:[%s1 + $0x5c] sm:$0xf]
  %v45 = vld [vmem:[%s1 + $0x60] sm:$0xf]
  %v46 = vld [vmem:[%s1 + $0x64] sm:$0xf]
  %v47 = vld [vmem:[%s1 + $0x68] sm:$0xf]
  %v48 = vld [vmem:[%s1 + $0x6c] sm:$0xf]
  %v49 = vld [vmem:[%s1 + $0x70] sm:$0xf]
  %v50 = vld [vmem:[%s1 + $0x74] sm:$0xf]
  %v51 = vld [vmem:[%s1 + $0x78] sm:$0xf]
  %v52 = vld [vmem:[%s1 + $0x7c] sm:$0xf]
  %v53 = vld [vmem:[%s1 + $0x80] sm:$0xf]
  %v54 = vld [vmem:[%s1 + $0x84] sm:$0xf]
  %v55 = vld [vmem:[%s1 + $0x88] sm:$0xf]
  %v56 = vld [vmem:[%s1 + $0x8c] sm:$0xf]
  %v57 = vld [vmem:[%s1 + $0x90] sm:$0xf]
  %v58 = vld [vmem:[%s1 + $0x94] sm:$0xf]
  %v59 = vld [vmem:[%s1 + $0x98] sm:$0xf]
  %v60 = vld [vmem:[%s1 + $0x9c] sm:$0xf]
  %v61 = vld [vmem:[%s1 + $0xa0] sm:$0xf]
  %v62 = vld [vmem:[%s1 + $0xa4] sm:$0xf]
  %v63 = vld [vmem:[%s1 + $0xa8] sm:$0xf]
  %v64 = vld [vmem:[%s1 + $0xac] sm:$0xf]
  %v65 = vld [vmem:[%s1 + $0xb0] sm:$0xf]
  %v66 = vld [vmem:[%s1 + $0xb4] sm:$0xf]
  %v67 = vld [vmem:[%s1 + $0xb8] sm:$0xf]
  %v68 = vld [vmem:[%s1 + $0xbc] sm:$0xf]
  %v69 = vld [vmem:[%s1 + $0xc0] sm:$0xf]
  %v70 = vld [vmem:[%s1 + $0xc4] sm:$0xf]
  %v71 = vld [vmem:[%s1 + $0xc8] sm:$0xf]
  %v72 = vld [vmem:[%s1 + $0xcc] sm:$0xf]
  %v73 = vld [vmem:[%s1 + $0xd0] sm:$0xf]
  %v74 = vld [vmem:[%s1 + $0xd4] sm:$0xf]
  %v75 = vld [vmem:[%s1 + $0xd8] sm:$0xf]
  %v76 = vld [vmem:[%s1 + $0xdc] sm:$0xf]
  %v77 = vld [vmem:[%s1 + $0xe0] sm:$0xf]
  %v78 = vld [vmem:[%s1 + $0xe4] sm:$0xf]
  %v79 = vld [vmem:[%s1 + $0xe8] sm:$0xf]
  %v80 = vld [vmem:[%s1 + $0xec] sm:$0xf]
  %v81 = vld [vmem:[%s1 + $0xf0] sm:$0xf]
  %v82 = vld [vmem:[%s1 + $0xf4] sm:$0xf]
  %v83 = vld [vmem:[%s1 + $0xf8] sm:$0xf]
  %v84 = vld [vmem:[%s1 + $0xfc] sm:$0xf]
  %v85 = vld [vmem:[%s1 + $0x100] sm:$0xf]
  %v86 = vld [vmem:[%s1 + $0x104] sm:$0xf]
  %v87 = vld [vmem:[%s1 + $0x108] sm:$0xf]
  %v88 = vld [vmem:[%s1 + $0x10c] sm:$0xf]
  %v89 = vld [vmem:[%s1 + $0x110] sm:$0xf]
  %v90 = vld [vmem:[%s1 + $0x114] sm:$0xf]
  %v91 = vld [vmem:[%s1 + $0x118] sm:$0xf]
  %v92 = vld [vmem:[%s1 + $0x11c] sm:$0xf]
  %v93 = vld [vmem:[%s1 + $0x120] sm:$0xf]
  %v94 = vld [vmem:[%s1 + $0x124] sm:$0xf]
  %v95 = vld [vmem:[%s1 + $0x128] sm:$0xf]
  %v96 = vld [vmem:[%s1 + $0x12c] sm:$0xf]
  %v97 = vld [vmem:[%s1 + $0x130] sm:$0xf]
  %v98 = vld [vmem:[%s1 + $0x134] sm:$0xf]
  %v99 = vld [vmem:[%s1 + $0x138] sm:$0xf]
  %v100 = vld [vmem:[%s1 + $0x13c] sm:$0xf]
  %v101 = vld [vmem:[%s2] sm:$0x1]
  %v103 = vlaneseq
  %v104 = vshrl.u32 %v103, 7
  %v105 = vsub.s32 0, %v104
  %v106 = vrot.slane %v101, %v105
  %v114 = vunpack.c.l.b16 %v15
  %v115 = vunpack.c.h.b16 %v15
  %v116 = vunpack.c.l.b16 %v16
  %v117 = vunpack.c.h.b16 %v16
  %v118 = vunpack.c.l.b16 %v17
  %v119 = vunpack.c.l.b16 %v18
  %v120 = vunpack.c.h.b16 %v18
  %v121 = vunpack.c.l.b16 %v19
  %v122 = vunpack.c.h.b16 %v19
  %v123 = vunpack.c.l.b16 %v20
  %v124 = vpack.c.b16 %v119, %v114
  %v125 = vpack.c.b16 %v120, %v115
  %v126 = vpack.c.b16 %v121, %v116
  %v127 = vpack.c.b16 %v122, %v117
  %v128 = vpack.c.b16 %v123, %v118
  %v214 = vunpack.c.l.b16 %v21
  %v215 = vunpack.c.l.b16 %v22
  %v216 = vunpack.c.l.b16 %v23
  %v217 = vunpack.c.l.b16 %v24
  %v218 = vunpack.c.l.b16 %v25
  %v219 = vunpack.c.l.b16 %v26
  %v220 = vunpack.c.l.b16 %v27
  %v221 = vunpack.c.l.b16 %v28
  %v222 = vunpack.c.l.b16 %v29
  %v223 = vunpack.c.l.b16 %v30
  %v224 = vunpack.c.l.b16 %v31
  %v225 = vunpack.c.l.b16 %v32
  %v226 = vunpack.c.l.b16 %v33
  %v227 = vunpack.c.l.b16 %v34
  %v228 = vunpack.c.l.b16 %v35
  %v229 = vunpack.c.l.b16 %v36
  %v230 = vunpack.c.l.b16 %v37
  %v231 = vunpack.c.l.b16 %v38
  %v232 = vunpack.c.l.b16 %v39
  %v233 = vunpack.c.l.b16 %v40
  %v234 = vunpack.c.l.b16 %v41
  %v235 = vunpack.c.l.b16 %v42
  %v236 = vunpack.c.l.b16 %v43
  %v237 = vunpack.c.l.b16 %v44
  %v238 = vunpack.c.l.b16 %v45
  %v239 = vunpack.c.l.b16 %v46
  %v240 = vunpack.c.l.b16 %v47
  %v241 = vunpack.c.l.b16 %v48
  %v242 = vunpack.c.l.b16 %v49
  %v243 = vunpack.c.l.b16 %v50
  %v244 = vunpack.c.l.b16 %v51
  %v245 = vunpack.c.l.b16 %v52
  %v246 = vunpack.c.l.b16 %v53
  %v247 = vunpack.c.l.b16 %v54
  %v248 = vunpack.c.l.b16 %v55
  %v249 = vunpack.c.l.b16 %v56
  %v250 = vunpack.c.l.b16 %v57
  %v251 = vunpack.c.l.b16 %v58
  %v252 = vunpack.c.l.b16 %v59
  %v253 = vunpack.c.l.b16 %v60
  %v254 = vunpack.c.l.b16 %v61
  %v255 = vunpack.c.l.b16 %v62
  %v256 = vunpack.c.l.b16 %v63
  %v257 = vunpack.c.l.b16 %v64
  %v258 = vunpack.c.l.b16 %v65
  %v259 = vunpack.c.l.b16 %v66
  %v260 = vunpack.c.l.b16 %v67
  %v261 = vunpack.c.l.b16 %v68
  %v262 = vunpack.c.l.b16 %v69
  %v263 = vunpack.c.l.b16 %v70
  %v264 = vunpack.c.l.b16 %v71
  %v265 = vunpack.c.l.b16 %v72
  %v266 = vunpack.c.l.b16 %v73
  %v267 = vunpack.c.l.b16 %v74
  %v268 = vunpack.c.l.b16 %v75
  %v269 = vunpack.c.l.b16 %v76
  %v270 = vunpack.c.l.b16 %v77
  %v271 = vunpack.c.l.b16 %v78
  %v272 = vunpack.c.l.b16 %v79
  %v273 = vunpack.c.l.b16 %v80
  %v274 = vunpack.c.l.b16 %v81
  %v275 = vunpack.c.l.b16 %v82
  %v276 = vunpack.c.l.b16 %v83
  %v277 = vunpack.c.l.b16 %v84
  %v278 = vunpack.c.l.b16 %v85
  %v279 = vunpack.c.l.b16 %v86
  %v280 = vunpack.c.l.b16 %v87
  %v281 = vunpack.c.l.b16 %v88
  %v282 = vunpack.c.l.b16 %v89
  %v283 = vunpack.c.l.b16 %v90
  %v284 = vunpack.c.l.b16 %v91
  %v285 = vunpack.c.l.b16 %v92
  %v286 = vunpack.c.l.b16 %v93
  %v287 = vunpack.c.l.b16 %v94
  %v288 = vunpack.c.l.b16 %v95
  %v289 = vunpack.c.l.b16 %v96
  %v290 = vunpack.c.l.b16 %v97
  %v291 = vunpack.c.l.b16 %v98
  %v292 = vunpack.c.l.b16 %v99
  %v293 = vunpack.c.l.b16 %v100
  %v294 = vpack.c.b16 %v215, %v214
  %v295 = vpack.c.b16 %v217, %v216
  %v296 = vpack.c.b16 %v219, %v218
  %v297 = vpack.c.b16 %v221, %v220
  %v298 = vpack.c.b16 %v223, %v222
  %v299 = vpack.c.b16 %v225, %v224
  %v300 = vpack.c.b16 %v227, %v226
  %v301 = vpack.c.b16 %v229, %v228
  %v302 = vpack.c.b16 %v231, %v230
  %v303 = vpack.c.b16 %v233, %v232
  %v304 = vpack.c.b16 %v235, %v234
  %v305 = vpack.c.b16 %v237, %v236
  %v306 = vpack.c.b16 %v239, %v238
  %v307 = vpack.c.b16 %v241, %v240
  %v308 = vpack.c.b16 %v243, %v242
  %v309 = vpack.c.b16 %v245, %v244
  %v310 = vpack.c.b16 %v247, %v246
  %v311 = vpack.c.b16 %v249, %v248
  %v312 = vpack.c.b16 %v251, %v250
  %v313 = vpack.c.b16 %v253, %v252
  %v314 = vpack.c.b16 %v255, %v254
  %v315 = vpack.c.b16 %v257, %v256
  %v316 = vpack.c.b16 %v259, %v258
  %v317 = vpack.c.b16 %v261, %v260
  %v318 = vpack.c.b16 %v263, %v262
  %v319 = vpack.c.b16 %v265, %v264
  %v320 = vpack.c.b16 %v267, %v266
  %v321 = vpack.c.b16 %v269, %v268
  %v322 = vpack.c.b16 %v271, %v270
  %v323 = vpack.c.b16 %v273, %v272
  %v324 = vpack.c.b16 %v275, %v274
  %v325 = vpack.c.b16 %v277, %v276
  %v326 = vpack.c.b16 %v279, %v278
  %v327 = vpack.c.b16 %v281, %v280
  %v328 = vpack.c.b16 %v283, %v282
  %v329 = vpack.c.b16 %v285, %v284
  %v330 = vpack.c.b16 %v287, %v286
  %v331 = vpack.c.b16 %v289, %v288
  %v332 = vpack.c.b16 %v291, %v290
  %v333 = vpack.c.b16 %v293, %v292
  %374 = vmatprep.subr.bf16.mxu0 0
  %375 = vmatpush1.bf16.msra.mxu0 %v294
  %376 = vmatprep.subr.bf16.mxu0 0
  %377 = vmatpush1.bf16.msra.mxu0 %v295
  %378 = vmatprep.subr.bf16.mxu0 0
  %379 = vmatpush1.bf16.msra.mxu0 %v296
  %380 = vmatprep.subr.bf16.mxu0 0
  %381 = vmatpush1.bf16.msra.mxu0 %v297
  %382 = vmatprep.subr.bf16.mxu0 0
  %383 = vmatpush1.bf16.msra.mxu0 %v298
  %384 = vmatprep.subr.bf16.mxu0 0
  %385 = vmatpush1.bf16.msra.mxu0 %v299
  %386 = vmatprep.subr.bf16.mxu0 0
  %387 = vmatpush1.bf16.msra.mxu0 %v300
  %388 = vmatprep.subr.bf16.mxu0 0
  %389 = vmatpush1.bf16.msra.mxu0 %v301
  %390 = vmatprep.subr.bf16.mxu0 0
  %391 = vmatpush1.bf16.msra.mxu0 %v302
  %392 = vmatprep.subr.bf16.mxu0 0
  %393 = vmatpush1.bf16.msra.mxu0 %v303
  %394 = vmatprep.subr.bf16.mxu0 0
  %395 = vmatpush1.bf16.msra.mxu0 %v304
  %396 = vmatprep.subr.bf16.mxu0 0
  %397 = vmatpush1.bf16.msra.mxu0 %v305
  %398 = vmatprep.subr.bf16.mxu0 0
  %399 = vmatpush1.bf16.msra.mxu0 %v306
  %400 = vmatprep.subr.bf16.mxu0 0
  %401 = vmatpush1.bf16.msra.mxu0 %v307
  %402 = vmatprep.subr.bf16.mxu0 0
  %403 = vmatpush1.bf16.msra.mxu0 %v308
  %404 = vmatprep.subr.bf16.mxu0 0
  %405 = vmatpush1.bf16.msra.mxu0 %v309
  %406 = vmatprep.mubr.bf16.mxu0 %v125
  %407 = vmatmul.mubr.bf16.gmra.mrb[0].mxu0 %v124
  %v408 = vpop.f32.mrb[0].mxu0
  %v409 = vadd.f32 %v106, %v408
  %v410 = vpop.f32.mrb[0].mxu0
  %v411 = vpop.f32.mrb[0].mxu0
  %v412 = vadd.f32 %v106, %v411
  %v413 = vpop.f32.mrb[0].mxu0
  %414 = vdwg.mxu0
  %415 = vmatprep.subr.bf16.mxu0 0
  %416 = vmatpush1.bf16.msra.mxu0 %v310
  %417 = vmatprep.subr.bf16.mxu0 0
  %418 = vmatpush1.bf16.msra.mxu0 %v311
  %419 = vmatprep.subr.bf16.mxu0 0
  %420 = vmatpush1.bf16.msra.mxu0 %v312
  %421 = vmatprep.subr.bf16.mxu0 0
  %422 = vmatpush1.bf16.msra.mxu0 %v313
  %423 = vmatprep.subr.bf16.mxu0 0
  %424 = vmatpush1.bf16.msra.mxu0 %v314
  %425 = vmatprep.subr.bf16.mxu0 0
  %426 = vmatpush1.bf16.msra.mxu0 %v315
  %427 = vmatprep.subr.bf16.mxu0 0
  %428 = vmatpush1.bf16.msra.mxu0 %v316
  %429 = vmatprep.subr.bf16.mxu0 0
  %430 = vmatpush1.bf16.msra.mxu0 %v317
  %431 = vmatprep.subr.bf16.mxu0 0
  %432 = vmatpush1.bf16.msra.mxu0 %v318
  %433 = vmatprep.subr.bf16.mxu0 0
  %434 = vmatpush1.bf16.msra.mxu0 %v319
  %435 = vmatprep.subr.bf16.mxu0 0
  %436 = vmatpush1.bf16.msra.mxu0 %v320
  %437 = vmatprep.subr.bf16.mxu0 0
  %438 = vmatpush1.bf16.msra.mxu0 %v321
  %439 = vmatprep.subr.bf16.mxu0 0
  %440 = vmatpush1.bf16.msra.mxu0 %v322
  %441 = vmatprep.subr.bf16.mxu0 0
  %442 = vmatpush1.bf16.msra.mxu0 %v323
  %443 = vmatprep.subr.bf16.mxu0 0
  %444 = vmatpush1.bf16.msra.mxu0 %v324
  %445 = vmatprep.subr.bf16.mxu0 0
  %446 = vmatpush1.bf16.msra.mxu0 %v325
  %447 = vmatprep.mubr.bf16.mxu0 %v127
  %448 = vmatmul.mubr.bf16.gmra.mrb[0].mxu0 %v126
  %v449 = vpop.f32.mrb[0].mxu0
  %v450 = vadd.f32 %v409, %v449
  %v451 = vpop.f32.mrb[0].mxu0
  %v452 = vpop.f32.mrb[0].mxu0
  %v453 = vadd.f32 %v412, %v452
  %v454 = vpop.f32.mrb[0].mxu0
  %455 = vdwg.mxu0
  %456 = vmatprep.subr.bf16.mxu0 0
  %457 = vmatpush1.bf16.msra.mxu0 %v326
  %458 = vmatprep.subr.bf16.mxu0 0
  %459 = vmatpush1.bf16.msra.mxu0 %v327
  %460 = vmatprep.subr.bf16.mxu0 0
  %461 = vmatpush1.bf16.msra.mxu0 %v328
  %462 = vmatprep.subr.bf16.mxu0 0
  %463 = vmatpush1.bf16.msra.mxu0 %v329
  %464 = vmatprep.subr.bf16.mxu0 0
  %465 = vmatpush1.bf16.msra.mxu0 %v330
  %466 = vmatprep.subr.bf16.mxu0 0
  %467 = vmatpush1.bf16.msra.mxu0 %v331
  %468 = vmatprep.subr.bf16.mxu0 0
  %469 = vmatpush1.bf16.msra.mxu0 %v332
  %470 = vmatprep.subr.bf16.mxu0 0
  %471 = vmatpush1.bf16.msra.mxu0 %v333
  %472 = vmatprep.subr.bf16.mxu0 0
  %473 = vmatpush1.bf16.msra.mxu0 0
  %474 = vmatprep.subr.bf16.mxu0 0
  %475 = vmatpush1.bf16.msra.mxu0 0
  %476 = vmatprep.subr.bf16.mxu0 0
  %477 = vmatpush1.bf16.msra.mxu0 0
  %478 = vmatprep.subr.bf16.mxu0 0
  %479 = vmatpush1.bf16.msra.mxu0 0
  %480 = vmatprep.subr.bf16.mxu0 0
  %481 = vmatpush1.bf16.msra.mxu0 0
  %482 = vmatprep.subr.bf16.mxu0 0
  %483 = vmatpush1.bf16.msra.mxu0 0
  %484 = vmatprep.subr.bf16.mxu0 0
  %485 = vmatpush1.bf16.msra.mxu0 0
  %486 = vmatprep.subr.bf16.mxu0 0
  %487 = vmatpush1.bf16.msra.mxu0 0
  %488 = vmatprep.mubr.bf16.mxu0 0
  %489 = vmatmul.mubr.bf16.gmra.mrb[0].mxu0 %v128
  %v490 = vpop.f32.mrb[0].mxu0
  %v491 = vadd.f32 %v450, %v490
  %v492 = vpop.f32.mrb[0].mxu0
  %v493 = vpop.f32.mrb[0].mxu0
  %v494 = vadd.f32 %v453, %v493
  %v495 = vpop.f32.mrb[0].mxu0
  %496 = vdwg.mxu0
  %v497 = vmax.f32 %v491, 0.0
  %v498 = vmax.f32 %v494, 0.0
  %v499 = vpack.c.bf16 %v498, %v497
  %v501 = vunpack.c.l.b16 %v499
  %v502 = vunpack.c.h.b16 %v499
  %v503 = vpack.c.b16 %v501, %v501
  %v504 = vpack.c.b16 %v502, %v502
  %507 = vst [vmem:[%s3] sm:$0xf] %v503
  %508 = vst [vmem:[%s3 + $0x4] sm:$0xf] %v504
  // Predicated region
  $region14: #{forward.6} parent=0 // pred_check
    _
  $region15: #{forward.6} parent=0 // pred_check_branch
    %510 = sbr.rel (0) target = $region17
  $region16: #{forward.6} parent=0 // pred_region
    _
  $region17: #{forward.6} parent=0 // pred_fallthru
    _
  // Predicated region
  $region18: #{forward.6} parent=0 // pred_check
    _
  $region19: #{forward.6} parent=0 // pred_check_branch
    %512 = sbr.rel (0) target = $region21
  $region20: #{forward.6} parent=0 // pred_region
    _
  $region21: #{forward.6} parent=0 // pred_fallthru
    _

// kernel: forward.7
$region0: #{forward.7}
  #allocation0 [shape = 'u32[]', space=smem, size = 0x4, offset = 0x4, fixed_abs, tag = 'smem constant byte address 0x4 - core index']
  #allocation1 [shape = 'u32[144,128]{1,0:T(1,128)}', space=vmem, size = 0x12000, scoped, tag = 'internal scratch']
  %s0 = inlined_call_operand.vmem [shape: bf16[16,256], index: 0, kind: input, shape index: {}]
  %s1 = inlined_call_operand.vmem [shape: bf16[256,1024], index: 1, kind: input, shape index: {}]
  %s2 = inlined_call_operand.vmem [shape: f32[1,1024], index: 2, kind: input, shape index: {}]
  %s3 = inlined_call_operand.vmem [shape: bf16[1024,128], index: 3, kind: input, shape index: {}]
  %s4 = inlined_call_operand.vmem [shape: f32[1,128], index: 4, kind: input, shape index: {}]
  %s5 = inlined_call_operand.vmem [shape: f32[16,128], index: 5, kind: output, shape index: {}]
  %s6 = sld [smem:[#allocation0]]
  $region30: #{forward.7} parent=0
    _
  %s8 = ssub.s32 1, %s6
  %s9 = scalar_select 0, %s8, %s6
  // Predicated region
  $region2: #{forward.7} parent=0 // pred_check
    _
  $region3: #{forward.7} parent=0 // pred_check_branch
    %11 = sbr.rel (0) target = $region5
  $region4: #{forward.7} parent=0 // pred_region
    _
  $region5: #{forward.7} parent=0 // pred_fallthru
    _
  // Predicated region
  $region6: #{forward.7} parent=0 // pred_check
    _
  $region7: #{forward.7} parent=0 // pred_check_branch
    %13 = sbr.rel (0) target = $region9
  $region8: #{forward.7} parent=0 // pred_region
    _
  $region9: #{forward.7} parent=0 // pred_fallthru
    _
  // Predicated region
  $region10: #{forward.7} parent=0 // pred_check
    _
  $region11: #{forward.7} parent=0 // pred_check_branch
    %15 = sbr.rel (0) target = $region13
  $region12: #{forward.7} parent=0 // pred_region
    _
  $region13: #{forward.7} parent=0 // pred_fallthru
    _
  // Predicated region
  $region14: #{forward.7} parent=0 // pred_check
    _
  $region15: #{forward.7} parent=0 // pred_check_branch
    %17 = sbr.rel (0) target = $region17
  $region16: #{forward.7} parent=0 // pred_region
    _
  $region17: #{forward.7} parent=0 // pred_fallthru
    _
  // Predicated region
  $region18: #{forward.7} parent=0 // pred_check
    _
  $region19: #{forward.7} parent=0 // pred_check_branch
    %19 = sbr.rel (0) target = $region21
  $region20: #{forward.7} parent=0 // pred_region
    _
  $region21: #{forward.7} parent=0 // pred_fallthru
    _
  %v21 = vld [vmem:[%s0] sm:$0xff]
  %v22 = vld [vmem:[%s0 + $0x8] sm:$0xff]
  %v23 = vld [vmem:[%s1] sm:$0xff]
  %v24 = vld [vmem:[%s1 + $0x8] sm:$0xff]
  %v25 = vld [vmem:[%s1 + $0x10] sm:$0xff]
  %v26 = vld [vmem:[%s1 + $0x18] sm:$0xff]
  %v27 = vld [vmem:[%s1 + $0x20] sm:$0xff]
  %v28 = vld [vmem:[%s1 + $0x28] sm:$0xff]
  %v29 = vld [vmem:[%s1 + $0x30] sm:$0xff]
  %v30 = vld [vmem:[%s1 + $0x38] sm:$0xff]
  %v31 = vld [vmem:[%s1 + $0x40] sm:$0xff]
  %v32 = vld [vmem:[%s1 + $0x48] sm:$0xff]
  %v33 = vld [vmem:[%s1 + $0x50] sm:$0xff]
  %v34 = vld [vmem:[%s1 + $0x58] sm:$0xff]
  %v35 = vld [vmem:[%s1 + $0x60] sm:$0xff]
  %v36 = vld [vmem:[%s1 + $0x68] sm:$0xff]
  %v37 = vld [vmem:[%s1 + $0x70] sm:$0xff]
  %v38 = vld [vmem:[%s1 + $0x78] sm:$0xff]
  %v39 = vld [vmem:[%s1 + $0x80] sm:$0xff]
  %v40 = vld [vmem:[%s1 + $0x88] sm:$0xff]
  %v41 = vld [vmem:[%s1 + $0x90] sm:$0xff]
  %v42 = vld [vmem:[%s1 + $0x98] sm:$0xff]
  %v43 = vld [vmem:[%s1 + $0xa0] sm:$0xff]
  %v44 = vld [vmem:[%s1 + $0xa8] sm:$0xff]
  %v45 = vld [vmem:[%s1 + $0xb0] sm:$0xff]
  %v46 = vld [vmem:[%s1 + $0xb8] sm:$0xff]
  %v47 = vld [vmem:[%s1 + $0xc0] sm:$0xff]
  %v48 = vld [vmem:[%s1 + $0xc8] sm:$0xff]
  %v49 = vld [vmem:[%s1 + $0xd0] sm:$0xff]
  %v50 = vld [vmem:[%s1 + $0xd8] sm:$0xff]
  %v51 = vld [vmem:[%s1 + $0xe0] sm:$0xff]
  %v52 = vld [vmem:[%s1 + $0xe8] sm:$0xff]
  %v53 = vld [vmem:[%s1 + $0xf0] sm:$0xff]
  %v54 = vld [vmem:[%s1 + $0xf8] sm:$0xff]
  %v55 = vld [vmem:[%s1 + $0x100] sm:$0xff]
  %v56 = vld [vmem:[%s1 + $0x108] sm:$0xff]
  %v57 = vld [vmem:[%s1 + $0x110] sm:$0xff]
  %v58 = vld [vmem:[%s1 + $0x118] sm:$0xff]
  %v59 = vld [vmem:[%s1 + $0x120] sm:$0xff]
  %v60 = vld [vmem:[%s1 + $0x128] sm:$0xff]
  %v61 = vld [vmem:[%s1 + $0x130] sm:$0xff]
  %v62 = vld [vmem:[%s1 + $0x138] sm:$0xff]
  %v63 = vld [vmem:[%s1 + $0x140] sm:$0xff]
  %v64 = vld [vmem:[%s1 + $0x148] sm:$0xff]
  %v65 = vld [vmem:[%s1 + $0x150] sm:$0xff]
  %v66 = vld [vmem:[%s1 + $0x158] sm:$0xff]
  %v67 = vld [vmem:[%s1 + $0x160] sm:$0xff]
  %v68 = vld [vmem:[%s1 + $0x168] sm:$0xff]
  %v69 = vld [vmem:[%s1 + $0x170] sm:$0xff]
  %v70 = vld [vmem:[%s1 + $0x178] sm:$0xff]
  %v71 = vld [vmem:[%s1 + $0x180] sm:$0xff]
  %v72 = vld [vmem:[%s1 + $0x188] sm:$0xff]
  %v73 = vld [vmem:[%s1 + $0x190] sm:$0xff]
  %v74 = vld [vmem:[%s1 + $0x198] sm:$0xff]
  %v75 = vld [vmem:[%s1 + $0x1a0] sm:$0xff]
  %v76 = vld [vmem:[%s1 + $0x1a8] sm:$0xff]
  %v77 = vld [vmem:[%s1 + $0x1b0] sm:$0xff]
  %v78 = vld [vmem:[%s1 + $0x1b8] sm:$0xff]
  %v79 = vld [vmem:[%s1 + $0x1c0] sm:$0xff]
  %v80 = vld [vmem:[%s1 + $0x1c8] sm:$0xff]
  %v81 = vld [vmem:[%s1 + $0x1d0] sm:$0xff]
  %v82 = vld [vmem:[%s1 + $0x1d8] sm:$0xff]
  %v83 = vld [vmem:[%s1 + $0x1e0] sm:$0xff]
  %v84 = vld [vmem:[%s1 + $0x1e8] sm:$0xff]
  %v85 = vld [vmem:[%s1 + $0x1f0] sm:$0xff]
  %v86 = vld [vmem:[%s1 + $0x1f8] sm:$0xff]
  %v87 = vld [vmem:[%s1 + $0x200] sm:$0xff]
  %v88 = vld [vmem:[%s1 + $0x208] sm:$0xff]
  %v89 = vld [vmem:[%s1 + $0x210] sm:$0xff]
  %v90 = vld [vmem:[%s1 + $0x218] sm:$0xff]
  %v91 = vld [vmem:[%s1 + $0x220] sm:$0xff]
  %v92 = vld [vmem:[%s1 + $0x228] sm:$0xff]
  %v93 = vld [vmem:[%s1 + $0x230] sm:$0xff]
  %v94 = vld [vmem:[%s1 + $0x238] sm:$0xff]
  %v95 = vld [vmem:[%s1 + $0x240] sm:$0xff]
  %v96 = vld [vmem:[%s1 + $0x248] sm:$0xff]
  %v97 = vld [vmem:[%s1 + $0x250] sm:$0xff]
  %v98 = vld [vmem:[%s1 + $0x258] sm:$0xff]
  %v99 = vld [vmem:[%s1 + $0x260] sm:$0xff]
  %v100 = vld [vmem:[%s1 + $0x268] sm:$0xff]
  %v101 = vld [vmem:[%s1 + $0x270] sm:$0xff]
  %v102 = vld [vmem:[%s1 + $0x278] sm:$0xff]
  %v103 = vld [vmem:[%s1 + $0x280] sm:$0xff]
  %v104 = vld [vmem:[%s1 + $0x288] sm:$0xff]
  %v105 = vld [vmem:[%s1 + $0x290] sm:$0xff]
  %v106 = vld [vmem:[%s1 + $0x298] sm:$0xff]
  %v107 = vld [vmem:[%s1 + $0x2a0] sm:$0xff]
  %v108 = vld [vmem:[%s1 + $0x2a8] sm:$0xff]
  %v109 = vld [vmem:[%s1 + $0x2b0] sm:$0xff]
  %v110 = vld [vmem:[%s1 + $0x2b8] sm:$0xff]
  %v111 = vld [vmem:[%s1 + $0x2c0] sm:$0xff]
  %v112 = vld [vmem:[%s1 + $0x2c8] sm:$0xff]
  %v113 = vld [vmem:[%s1 + $0x2d0] sm:$0xff]
  %v114 = vld [vmem:[%s1 + $0x2d8] sm:$0xff]
  %v115 = vld [vmem:[%s1 + $0x2e0] sm:$0xff]
  %v116 = vld [vmem:[%s1 + $0x2e8] sm:$0xff]
  %v117 = vld [vmem:[%s1 + $0x2f0] sm:$0xff]
  %v118 = vld [vmem:[%s1 + $0x2f8] sm:$0xff]
  %v119 = vld [vmem:[%s1 + $0x300] sm:$0xff]
  %v120 = vld [vmem:[%s1 + $0x308] sm:$0xff]
  %v121 = vld [vmem:[%s1 + $0x310] sm:$0xff]
  %v122 = vld [vmem:[%s1 + $0x318] sm:$0xff]
  %v123 = vld [vmem:[%s1 + $0x320] sm:$0xff]
  %v124 = vld [vmem:[%s1 + $0x328] sm:$0xff]
  %v125 = vld [vmem:[%s1 + $0x330] sm:$0xff]
  %v126 = vld [vmem:[%s1 + $0x338] sm:$0xff]
  %v127 = vld [vmem:[%s1 + $0x340] sm:$0xff]
  %v128 = vld [vmem:[%s1 + $0x348] sm:$0xff]
  %v129 = vld [vmem:[%s1 + $0x350] sm:$0xff]
  %v130 = vld [vmem:[%s1 + $0x358] sm:$0xff]
  %v131 = vld [vmem:[%s1 + $0x360] sm:$0xff]
  %v132 = vld [vmem:[%s1 + $0x368] sm:$0xff]
  %v133 = vld [vmem:[%s1 + $0x370] sm:$0xff]
  %v134 = vld [vmem:[%s1 + $0x378] sm:$0xff]
  %v135 = vld [vmem:[%s1 + $0x380] sm:$0xff]
  %v136 = vld [vmem:[%s1 + $0x388] sm:$0xff]
  %v137 = vld [vmem:[%s1 + $0x390] sm:$0xff]
  %v138 = vld [vmem:[%s1 + $0x398] sm:$0xff]
  %v139 = vld [vmem:[%s1 + $0x3a0] sm:$0xff]
  %v140 = vld [vmem:[%s1 + $0x3a8] sm:$0xff]
  %v141 = vld [vmem:[%s1 + $0x3b0] sm:$0xff]
  %v142 = vld [vmem:[%s1 + $0x3b8] sm:$0xff]
  %v143 = vld [vmem:[%s1 + $0x3c0] sm:$0xff]
  %v144 = vld [vmem:[%s1 + $0x3c8] sm:$0xff]
  %v145 = vld [vmem:[%s1 + $0x3d0] sm:$0xff]
  %v146 = vld [vmem:[%s1 + $0x3d8] sm:$0xff]
  %v147 = vld [vmem:[%s1 + $0x3e0] sm:$0xff]
  %v148 = vld [vmem:[%s1 + $0x3e8] sm:$0xff]
  %v149 = vld [vmem:[%s1 + $0x3f0] sm:$0xff]
  %v150 = vld [vmem:[%s1 + $0x3f8] sm:$0xff]
  %v151 = vld [vmem:[%s2] sm:$0xff]
  %v153 = vlaneseq
  %v154 = vshrl.u32 %v153, 7
  %v155 = vsub.s32 0, %v154
  %v156 = vrot.slane %v151, %v155
  %v157 = vlaneseq
  %v158 = vshrl.u32 %v157, 7
  %v159 = vsub.s32 1, %v158
  %v160 = vrot.slane %v151, %v159
  %v161 = vlaneseq
  %v162 = vshrl.u32 %v161, 7
  %v163 = vsub.s32 2, %v162
  %v164 = vrot.slane %v151, %v163
  %v165 = vlaneseq
  %v166 = vshrl.u32 %v165, 7
  %v167 = vsub.s32 3, %v166
  %v168 = vrot.slane %v151, %v167
  %v169 = vlaneseq
  %v170 = vshrl.u32 %v169, 7
  %v171 = vsub.s32 4, %v170
  %v172 = vrot.slane %v151, %v171
  %v173 = vlaneseq
  %v174 = vshrl.u32 %v173, 7
  %v175 = vsub.s32 5, %v174
  %v176 = vrot.slane %v151, %v175
  %v177 = vlaneseq
  %v178 = vshrl.u32 %v177, 7
  %v179 = vsub.s32 6, %v178
  %v180 = vrot.slane %v151, %v179
  %v181 = vlaneseq
  %v182 = vshrl.u32 %v181, 7
  %v183 = vsub.s32 7, %v182
  %v184 = vrot.slane %v151, %v183
  %v195 = vunpack.c.l.b16 %v21
  %v196 = vunpack.c.h.b16 %v21
  %v197 = vunpack.c.l.b16 %v22
  %v198 = vunpack.c.h.b16 %v22
  %v199 = vpack.c.b16 %v197, %v195
  %v200 = vpack.c.b16 %v198, %v196
  %v331 = vunpack.c.l.b16 %v23
  %v332 = vunpack.c.h.b16 %v23
  %v333 = vunpack.c.l.b16 %v24
  %v334 = vunpack.c.h.b16 %v24
  %v335 = vunpack.c.l.b16 %v25
  %v336 = vunpack.c.h.b16 %v25
  %v337 = vunpack.c.l.b16 %v26
  %v338 = vunpack.c.h.b16 %v26
  %v339 = vunpack.c.l.b16 %v27
  %v340 = vunpack.c.h.b16 %v27
  %v341 = vunpack.c.l.b16 %v28
  %v342 = vunpack.c.h.b16 %v28
  %v343 = vunpack.c.l.b16 %v29
  %v344 = vunpack.c.h.b16 %v29
  %v345 = vunpack.c.l.b16 %v30
  %v346 = vunpack.c.h.b16 %v30
  %v347 = vunpack.c.l.b16 %v31
  %v348 = vunpack.c.h.b16 %v31
  %v349 = vunpack.c.l.b16 %v32
  %v350 = vunpack.c.h.b16 %v32
  %v351 = vunpack.c.l.b16 %v33
  %v352 = vunpack.c.h.b16 %v33
  %v353 = vunpack.c.l.b16 %v34
  %v354 = vunpack.c.h.b16 %v34
  %v355 = vunpack.c.l.b16 %v35
  %v356 = vunpack.c.h.b16 %v35
  %v357 = vunpack.c.l.b16 %v36
  %v358 = vunpack.c.h.b16 %v36
  %v359 = vunpack.c.l.b16 %v37
  %v360 = vunpack.c.h.b16 %v37
  %v361 = vunpack.c.l.b16 %v38
  %v362 = vunpack.c.h.b16 %v38
  %v363 = vunpack.c.l.b16 %v39
  %v364 = vunpack.c.h.b16 %v39
  %v365 = vunpack.c.l.b16 %v40
  %v366 = vunpack.c.h.b16 %v40
  %v367 = vunpack.c.l.b16 %v41
  %v368 = vunpack.c.h.b16 %v41
  %v369 = vunpack.c.l.b16 %v42
  %v370 = vunpack.c.h.b16 %v42
  %v371 = vunpack.c.l.b16 %v43
  %v372 = vunpack.c.h.b16 %v43
  %v373 = vunpack.c.l.b16 %v44
  %v374 = vunpack.c.h.b16 %v44
  %v375 = vunpack.c.l.b16 %v45
  %v376 = vunpack.c.h.b16 %v45
  %v377 = vunpack.c.l.b16 %v46
  %v378 = vunpack.c.h.b16 %v46
  %v379 = vunpack.c.l.b16 %v47
  %v380 = vunpack.c.h.b16 %v47
  %v381 = vunpack.c.l.b16 %v48
  %v382 = vunpack.c.h.b16 %v48
  %v383 = vunpack.c.l.b16 %v49
  %v384 = vunpack.c.h.b16 %v49
  %v385 = vunpack.c.l.b16 %v50
  %v386 = vunpack.c.h.b16 %v50
  %v387 = vunpack.c.l.b16 %v51
  %v388 = vunpack.c.h.b16 %v51
  %v389 = vunpack.c.l.b16 %v52
  %v390 = vunpack.c.h.b16 %v52
  %v391 = vunpack.c.l.b16 %v53
  %v392 = vunpack.c.h.b16 %v53
  %v393 = vunpack.c.l.b16 %v54
  %v394 = vunpack.c.h.b16 %v54
  %v395 = vunpack.c.l.b16 %v55
  %v396 = vunpack.c.h.b16 %v55
  %v397 = vunpack.c.l.b16 %v56
  %v398 = vunpack.c.h.b16 %v56
  %v399 = vunpack.c.l.b16 %v57
  %v400 = vunpack.c.h.b16 %v57
  %v401 = vunpack.c.l.b16 %v58
  %v402 = vunpack.c.h.b16 %v58
  %v403 = vunpack.c.l.b16 %v59
  %v404 = vunpack.c.h.b16 %v59
  %v405 = vunpack.c.l.b16 %v60
  %v406 = vunpack.c.h.b16 %v60
  %v407 = vunpack.c.l.b16 %v61
  %v408 = vunpack.c.h.b16 %v61
  %v409 = vunpack.c.l.b16 %v62
  %v410 = vunpack.c.h.b16 %v62
  %v411 = vunpack.c.l.b16 %v63
  %v412 = vunpack.c.h.b16 %v63
  %v413 = vunpack.c.l.b16 %v64
  %v414 = vunpack.c.h.b16 %v64
  %v415 = vunpack.c.l.b16 %v65
  %v416 = vunpack.c.h.b16 %v65
  %v417 = vunpack.c.l.b16 %v66
  %v418 = vunpack.c.h.b16 %v66
  %v419 = vunpack.c.l.b16 %v67
  %v420 = vunpack.c.h.b16 %v67
  %v421 = vunpack.c.l.b16 %v68
  %v422 = vunpack.c.h.b16 %v68
  %v423 = vunpack.c.l.b16 %v69
  %v424 = vunpack.c.h.b16 %v69
  %v425 = vunpack.c.l.b16 %v70
  %v426 = vunpack.c.h.b16 %v70
  %v427 = vunpack.c.l.b16 %v71
  %v428 = vunpack.c.h.b16 %v71
  %v429 = vunpack.c.l.b16 %v72
  %v430 = vunpack.c.h.b16 %v72
  %v431 = vunpack.c.l.b16 %v73
  %v432 = vunpack.c.h.b16 %v73
  %v433 = vunpack.c.l.b16 %v74
  %v434 = vunpack.c.h.b16 %v74
  %v435 = vunpack.c.l.b16 %v75
  %v436 = vunpack.c.h.b16 %v75
  %v437 = vunpack.c.l.b16 %v76
  %v438 = vunpack.c.h.b16 %v76
  %v439 = vunpack.c.l.b16 %v77
  %v440 = vunpack.c.h.b16 %v77
  %v441 = vunpack.c.l.b16 %v78
  %v442 = vunpack.c.h.b16 %v78
  %v443 = vunpack.c.l.b16 %v79
  %v444 = vunpack.c.h.b16 %v79
  %v445 = vunpack.c.l.b16 %v80
  %v446 = vunpack.c.h.b16 %v80
  %v447 = vunpack.c.l.b16 %v81
  %v448 = vunpack.c.h.b16 %v81
  %v449 = vunpack.c.l.b16 %v82
  %v450 = vunpack.c.h.b16 %v82
  %v451 = vunpack.c.l.b16 %v83
  %v452 = vunpack.c.h.b16 %v83
  %v453 = vunpack.c.l.b16 %v84
  %v454 = vunpack.c.h.b16 %v84
  %v455 = vunpack.c.l.b16 %v85
  %v456 = vunpack.c.h.b16 %v85
  %v457 = vunpack.c.l.b16 %v86
  %v458 = vunpack.c.h.b16 %v86
  %v459 = vunpack.c.l.b16 %v87
  %v460 = vunpack.c.h.b16 %v87
  %v461 = vunpack.c.l.b16 %v88
  %v462 = vunpack.c.h.b16 %v88
  %v463 = vunpack.c.l.b16 %v89
  %v464 = vunpack.c.h.b16 %v89
  %v465 = vunpack.c.l.b16 %v90
  %v466 = vunpack.c.h.b16 %v90
  %v467 = vunpack.c.l.b16 %v91
  %v468 = vunpack.c.h.b16 %v91
  %v469 = vunpack.c.l.b16 %v92
  %v470 = vunpack.c.h.b16 %v92
  %v471 = vunpack.c.l.b16 %v93
  %v472 = vunpack.c.h.b16 %v93
  %v473 = vunpack.c.l.b16 %v94
  %v474 = vunpack.c.h.b16 %v94
  %v475 = vunpack.c.l.b16 %v95
  %v476 = vunpack.c.h.b16 %v95
  %v477 = vunpack.c.l.b16 %v96
  %v478 = vunpack.c.h.b16 %v96
  %v479 = vunpack.c.l.b16 %v97
  %v480 = vunpack.c.h.b16 %v97
  %v481 = vunpack.c.l.b16 %v98
  %v482 = vunpack.c.h.b16 %v98
  %v483 = vunpack.c.l.b16 %v99
  %v484 = vunpack.c.h.b16 %v99
  %v485 = vunpack.c.l.b16 %v100
  %v486 = vunpack.c.h.b16 %v100
  %v487 = vunpack.c.l.b16 %v101
  %v488 = vunpack.c.h.b16 %v101
  %v489 = vunpack.c.l.b16 %v102
  %v490 = vunpack.c.h.b16 %v102
  %v491 = vunpack.c.l.b16 %v103
  %v492 = vunpack.c.h.b16 %v103
  %v493 = vunpack.c.l.b16 %v104
  %v494 = vunpack.c.h.b16 %v104
  %v495 = vunpack.c.l.b16 %v105
  %v496 = vunpack.c.h.b16 %v105
  %v497 = vunpack.c.l.b16 %v106
  %v498 = vunpack.c.h.b16 %v106
  %v499 = vunpack.c.l.b16 %v107
  %v500 = vunpack.c.h.b16 %v107
  %v501 = vunpack.c.l.b16 %v108
  %v502 = vunpack.c.h.b16 %v108
  %v503 = vunpack.c.l.b16 %v109
  %v504 = vunpack.c.h.b16 %v109
  %v505 = vunpack.c.l.b16 %v110
  %v506 = vunpack.c.h.b16 %v110
  %v507 = vunpack.c.l.b16 %v111
  %v508 = vunpack.c.h.b16 %v111
  %v509 = vunpack.c.l.b16 %v112
  %v510 = vunpack.c.h.b16 %v112
  %v511 = vunpack.c.l.b16 %v113
  %v512 = vunpack.c.h.b16 %v113
  %v513 = vunpack.c.l.b16 %v114
  %v514 = vunpack.c.h.b16 %v114
  %v515 = vunpack.c.l.b16 %v115
  %v516 = vunpack.c.h.b16 %v115
  %v517 = vunpack.c.l.b16 %v116
  %v518 = vunpack.c.h.b16 %v116
  %v519 = vunpack.c.l.b16 %v117
  %v520 = vunpack.c.h.b16 %v117
  %v521 = vunpack.c.l.b16 %v118
  %v522 = vunpack.c.h.b16 %v118
  %v523 = vunpack.c.l.b16 %v119
  %v524 = vunpack.c.h.b16 %v119
  %v525 = vunpack.c.l.b16 %v120
  %v526 = vunpack.c.h.b16 %v120
  %v527 = vunpack.c.l.b16 %v121
  %v528 = vunpack.c.h.b16 %v121
  %v529 = vunpack.c.l.b16 %v122
  %v530 = vunpack.c.h.b16 %v122
  %v531 = vunpack.c.l.b16 %v123
  %v532 = vunpack.c.h.b16 %v123
  %v533 = vunpack.c.l.b16 %v124
  %v534 = vunpack.c.h.b16 %v124
  %v535 = vunpack.c.l.b16 %v125
  %v536 = vunpack.c.h.b16 %v125
  %v537 = vunpack.c.l.b16 %v126
  %v538 = vunpack.c.h.b16 %v126
  %v539 = vunpack.c.l.b16 %v127
  %v540 = vunpack.c.h.b16 %v127
  %v541 = vunpack.c.l.b16 %v128
  %v542 = vunpack.c.h.b16 %v128
  %v543 = vunpack.c.l.b16 %v129
  %v544 = vunpack.c.h.b16 %v129
  %v545 = vunpack.c.l.b16 %v130
  %v546 = vunpack.c.h.b16 %v130
  %v547 = vunpack.c.l.b16 %v131
  %v548 = vunpack.c.h.b16 %v131
  %v549 = vunpack.c.l.b16 %v132
  %v550 = vunpack.c.h.b16 %v132
  %v551 = vunpack.c.l.b16 %v133
  %v552 = vunpack.c.h.b16 %v133
  %v553 = vunpack.c.l.b16 %v134
  %v554 = vunpack.c.h.b16 %v134
  %v555 = vunpack.c.l.b16 %v135
  %v556 = vunpack.c.h.b16 %v135
  %v557 = vunpack.c.l.b16 %v136
  %v558 = vunpack.c.h.b16 %v136
  %v559 = vunpack.c.l.b16 %v137
  %v560 = vunpack.c.h.b16 %v137
  %v561 = vunpack.c.l.b16 %v138
  %v562 = vunpack.c.h.b16 %v138
  %v563 = vunpack.c.l.b16 %v139
  %v564 = vunpack.c.h.b16 %v139
  %v565 = vunpack.c.l.b16 %v140
  %v566 = vunpack.c.h.b16 %v140
  %v567 = vunpack.c.l.b16 %v141
  %v568 = vunpack.c.h.b16 %v141
  %v569 = vunpack.c.l.b16 %v142
  %v570 = vunpack.c.h.b16 %v142
  %v571 = vunpack.c.l.b16 %v143
  %v572 = vunpack.c.h.b16 %v143
  %v573 = vunpack.c.l.b16 %v144
  %v574 = vunpack.c.h.b16 %v144
  %v575 = vunpack.c.l.b16 %v145
  %v576 = vunpack.c.h.b16 %v145
  %v577 = vunpack.c.l.b16 %v146
  %v578 = vunpack.c.h.b16 %v146
  %v579 = vunpack.c.l.b16 %v147
  %v580 = vunpack.c.h.b16 %v147
  %v581 = vunpack.c.l.b16 %v148
  %v582 = vunpack.c.h.b16 %v148
  %v583 = vunpack.c.l.b16 %v149
  %v584 = vunpack.c.h.b16 %v149
  %v585 = vunpack.c.l.b16 %v150
  %v586 = vunpack.c.h.b16 %v150
  %v587 = vpack.c.b16 %v339, %v331
  %v588 = vpack.c.b16 %v340, %v332
  %v589 = vpack.c.b16 %v341, %v333
  %v590 = vpack.c.b16 %v342, %v334
  %v591 = vpack.c.b16 %v343, %v335
  %v592 = vpack.c.b16 %v344, %v336
  %v593 = vpack.c.b16 %v345, %v337
  %v594 = vpack.c.b16 %v346, %v338
  %v595 = vpack.c.b16 %v355, %v347
  %v596 = vpack.c.b16 %v356, %v348
  %v597 = vpack.c.b16 %v357, %v349
  %v598 = vpack.c.b16 %v358, %v350
  %v599 = vpack.c.b16 %v359, %v351
  %v600 = vpack.c.b16 %v360, %v352
  %v601 = vpack.c.b16 %v361, %v353
  %v602 = vpack.c.b16 %v362, %v354
  %v603 = vpack.c.b16 %v371, %v363
  %v604 = vpack.c.b16 %v372, %v364
  %v605 = vpack.c.b16 %v373, %v365
  %v606 = vpack.c.b16 %v374, %v366
  %v607 = vpack.c.b16 %v375, %v367
  %v608 = vpack.c.b16 %v376, %v368
  %v609 = vpack.c.b16 %v377, %v369
  %v610 = vpack.c.b16 %v378, %v370
  %v611 = vpack.c.b16 %v387, %v379
  %v612 = vpack.c.b16 %v388, %v380
  %v613 = vpack.c.b16 %v389, %v381
  %v614 = vpack.c.b16 %v390, %v382
  %v615 = vpack.c.b16 %v391, %v383
  %v616 = vpack.c.b16 %v392, %v384
  %v617 = vpack.c.b16 %v393, %v385
  %v618 = vpack.c.b16 %v394, %v386
  %v619 = vpack.c.b16 %v403, %v395
  %v620 = vpack.c.b16 %v404, %v396
  %v621 = vpack.c.b16 %v405, %v397
  %v622 = vpack.c.b16 %v406, %v398
  %v623 = vpack.c.b16 %v407, %v399
  %v624 = vpack.c.b16 %v408, %v400
  %v625 = vpack.c.b16 %v409, %v401
  %v626 = vpack.c.b16 %v410, %v402
  %v627 = vpack.c.b16 %v419, %v411
  %v628 = vpack.c.b16 %v420, %v412
  %v629 = vpack.c.b16 %v421, %v413
  %v630 = vpack.c.b16 %v422, %v414
  %v631 = vpack.c.b16 %v423, %v415
  %v632 = vpack.c.b16 %v424, %v416
  %v633 = vpack.c.b16 %v425, %v417
  %v634 = vpack.c.b16 %v426, %v418
  %v635 = vpack.c.b16 %v435, %v427
  %v636 = vpack.c.b16 %v436, %v428
  %v637 = vpack.c.b16 %v437, %v429
  %v638 = vpack.c.b16 %v438, %v430
  %v639 = vpack.c.b16 %v439, %v431
  %v640 = vpack.c.b16 %v440, %v432
  %v641 = vpack.c.b16 %v441, %v433
  %v642 = vpack.c.b16 %v442, %v434
  %v643 = vpack.c.b16 %v451, %v443
  %v644 = vpack.c.b16 %v452, %v444
  %v645 = vpack.c.b16 %v453, %v445
  %v646 = vpack.c.b16 %v454, %v446
  %v647 = vpack.c.b16 %v455, %v447
  %v648 = vpack.c.b16 %v456, %v448
  %v649 = vpack.c.b16 %v457, %v449
  %v650 = vpack.c.b16 %v458, %v450
  %v651 = vpack.c.b16 %v467, %v459
  %v652 = vpack.c.b16 %v468, %v460
  %v653 = vpack.c.b16 %v469, %v461
  %v654 = vpack.c.b16 %v470, %v462
  %v655 = vpack.c.b16 %v471, %v463
  %v656 = vpack.c.b16 %v472, %v464
  %v657 = vpack.c.b16 %v473, %v465
  %v658 = vpack.c.b16 %v474, %v466
  %v659 = vpack.c.b16 %v483, %v475
  %v660 = vpack.c.b16 %v484, %v476
  %v661 = vpack.c.b16 %v485, %v477
  %v662 = vpack.c.b16 %v486, %v478
  %v663 = vpack.c.b16 %v487, %v479
  %v664 = vpack.c.b16 %v488, %v480
  %v665 = vpack.c.b16 %v489, %v481
  %v666 = vpack.c.b16 %v490, %v482
  %v667 = vpack.c.b16 %v499, %v491
  %v668 = vpack.c.b16 %v500, %v492
  %v669 = vpack.c.b16 %v501, %v493
  %v670 = vpack.c.b16 %v502, %v494
  %v671 = vpack.c.b16 %v503, %v495
  %v672 = vpack.c.b16 %v504, %v496
  %v673 = vpack.c.b16 %v505, %v497
  %v674 = vpack.c.b16 %v506, %v498
  %v675 = vpack.c.b16 %v515, %v507
  %v676 = vpack.c.b16 %v516, %v508
  %v677 = vpack.c.b16 %v517, %v509
  %v678 = vpack.c.b16 %v518, %v510
  %v679 = vpack.c.b16 %v519, %v511
  %v680 = vpack.c.b16 %v520, %v512
  %v681 = vpack.c.b16 %v521, %v513
  %v682 = vpack.c.b16 %v522, %v514
  %v683 = vpack.c.b16 %v531, %v523
  %v684 = vpack.c.b16 %v532, %v524
  %v685 = vpack.c.b16 %v533, %v525
  %v686 = vpack.c.b16 %v534, %v526
  %v687 = vpack.c.b16 %v535, %v527
  %v688 = vpack.c.b16 %v536, %v528
  %v689 = vpack.c.b16 %v537, %v529
  %v690 = vpack.c.b16 %v538, %v530
  %v691 = vpack.c.b16 %v547, %v539
  %v692 = vpack.c.b16 %v548, %v540
  %v693 = vpack.c.b16 %v549, %v541
  %v694 = vpack.c.b16 %v550, %v542
  %v695 = vpack.c.b16 %v551, %v543
  %v696 = vpack.c.b16 %v552, %v544
  %v697 = vpack.c.b16 %v553, %v545
  %v698 = vpack.c.b16 %v554, %v546
  %v699 = vpack.c.b16 %v563, %v555
  %v700 = vpack.c.b16 %v564, %v556
  %v701 = vpack.c.b16 %v565, %v557
  %v702 = vpack.c.b16 %v566, %v558
  %v703 = vpack.c.b16 %v567, %v559
  %v704 = vpack.c.b16 %v568, %v560
  %v705 = vpack.c.b16 %v569, %v561
  %v706 = vpack.c.b16 %v570, %v562
  %v707 = vpack.c.b16 %v579, %v571
  %v708 = vpack.c.b16 %v580, %v572
  %v709 = vpack.c.b16 %v581, %v573
  %v710 = vpack.c.b16 %v582, %v574
  %v711 = vpack.c.b16 %v583, %v575
  %v712 = vpack.c.b16 %v584, %v576
  %v713 = vpack.c.b16 %v585, %v577
  %v714 = vpack.c.b16 %v586, %v578
  %843 = vmatprep.subr.bf16.mxu0 %v588
  %844 = vmatpush1.bf16.msra.mxu0 %v587
  %845 = vmatprep.subr.bf16.mxu0 %v596
  %846 = vmatpush1.bf16.msra.mxu0 %v595
  %847 = vmatprep.subr.bf16.mxu0 %v604
  %848 = vmatpush1.bf16.msra.mxu0 %v603
  %849 = vmatprep.subr.bf16.mxu0 %v612
  %850 = vmatpush1.bf16.msra.mxu0 %v611
  %851 = vmatprep.subr.bf16.mxu0 %v620
  %852 = vmatpush1.bf16.msra.mxu0 %v619
  %853 = vmatprep.subr.bf16.mxu0 %v628
  %854 = vmatpush1.bf16.msra.mxu0 %v627
  %855 = vmatprep.subr.bf16.mxu0 %v636
  %856 = vmatpush1.bf16.msra.mxu0 %v635
  %857 = vmatprep.subr.bf16.mxu0 %v644
  %858 = vmatpush1.bf16.msra.mxu0 %v643
  %859 = vmatprep.subr.bf16.mxu0 %v652
  %860 = vmatpush1.bf16.msra.mxu0 %v651
  %861 = vmatprep.subr.bf16.mxu0 %v660
  %862 = vmatpush1.bf16.msra.mxu0 %v659
  %863 = vmatprep.subr.bf16.mxu0 %v668
  %864 = vmatpush1.bf16.msra.mxu0 %v667
  %865 = vmatprep.subr.bf16.mxu0 %v676
  %866 = vmatpush1.bf16.msra.mxu0 %v675
  %867 = vmatprep.subr.bf16.mxu0 %v684
  %868 = vmatpush1.bf16.msra.mxu0 %v683
  %869 = vmatprep.subr.bf16.mxu0 %v692
  %870 = vmatpush1.bf16.msra.mxu0 %v691
  %871 = vmatprep.subr.bf16.mxu0 %v700
  %872 = vmatpush1.bf16.msra.mxu0 %v699
  %873 = vmatprep.subr.bf16.mxu0 %v708
  %874 = vmatpush1.bf16.msra.mxu0 %v707
  %875 = vmatprep.mubr.bf16.mxu0 %v200
  %876 = vmatmul.mubr.bf16.gmra.mrb[0].mxu0 %v199
  %v877 = vpop.f32.mrb[0].mxu0
  %v878 = vadd.f32 %v156, %v877
  %v879 = vpop.f32.mrb[0].mxu0
  %v880 = vadd.f32 %v160, %v879
  %v881 = vpop.f32.mrb[0].mxu0
  %v882 = vadd.f32 %v156, %v881
  %v883 = vpop.f32.mrb[0].mxu0
  %v884 = vadd.f32 %v160, %v883
  %885 = vdwg.mxu0
  %886 = vmatprep.subr.bf16.mxu0 %v590
  %887 = vmatpush1.bf16.msra.mxu0 %v589
  %888 = vmatprep.subr.bf16.mxu0 %v598
  %889 = vmatpush1.bf16.msra.mxu0 %v597
  %890 = vmatprep.subr.bf16.mxu0 %v606
  %891 = vmatpush1.bf16.msra.mxu0 %v605
  %892 = vmatprep.subr.bf16.mxu0 %v614
  %893 = vmatpush1.bf16.msra.mxu0 %v613
  %894 = vmatprep.subr.bf16.mxu0 %v622
  %895 = vmatpush1.bf16.msra.mxu0 %v621
  %896 = vmatprep.subr.bf16.mxu0 %v630
  %897 = vmatpush1.bf16.msra.mxu0 %v629
  %898 = vmatprep.subr.bf16.mxu0 %v638
  %899 = vmatpush1.bf16.msra.mxu0 %v637
  %900 = vmatprep.subr.bf16.mxu0 %v646
  %901 = vmatpush1.bf16.msra.mxu0 %v645
  %902 = vmatprep.subr.bf16.mxu0 %v654
  %903 = vmatpush1.bf16.msra.mxu0 %v653
  %904 = vmatprep.subr.bf16.mxu0 %v662
  %905 = vmatpush1.bf16.msra.mxu0 %v661
  %906 = vmatprep.subr.bf16.mxu0 %v670
  %907 = vmatpush1.bf16.msra.mxu0 %v669
  %908 = vmatprep.subr.bf16.mxu0 %v678
  %909 = vmatpush1.bf16.msra.mxu0 %v677
  %910 = vmatprep.subr.bf16.mxu0 %v686
  %911 = vmatpush1.bf16.msra.mxu0 %v685
  %912 = vmatprep.subr.bf16.mxu0 %v694
  %913 = vmatpush1.bf16.msra.mxu0 %v693
  %914 = vmatprep.subr.bf16.mxu0 %v702
  %915 = vmatpush1.bf16.msra.mxu0 %v701
  %916 = vmatprep.subr.bf16.mxu0 %v710
  %917 = vmatpush1.bf16.msra.mxu0 %v709
  %918 = vmatprep.mubr.bf16.mxu0 %v200
  %919 = vmatmul.mubr.bf16.gmra.mrb[0].mxu0 %v199
  %v920 = vpop.f32.mrb[0].mxu0
  %v921 = vadd.f32 %v164, %v920
  %v922 = vpop.f32.mrb[0].mxu0
  %v923 = vadd.f32 %v168, %v922
  %v924 = vpop.f32.mrb[0].mxu0
  %v925 = vadd.f32 %v164, %v924
  %v926 = vpop.f32.mrb[0].mxu0
  %v927 = vadd.f32 %v168, %v926
  %928 = vdwg.mxu0
  %929 = vmatprep.subr.bf16.mxu0 %v592
  %930 = vmatpush1.bf16.msra.mxu0 %v591
  %931 = vmatprep.subr.bf16.mxu0 %v600
  %932 = vmatpush1.bf16.msra.mxu0 %v599
  %933 = vmatprep.subr.bf16.mxu0 %v608
  %934 = vmatpush1.bf16.msra.mxu0 %v607
  %935 = vmatprep.subr.bf16.mxu0 %v616
  %936 = vmatpush1.bf16.msra.mxu0 %v615
  %937 = vmatprep.subr.bf16.mxu0 %v624
  %938 = vmatpush1.bf16.msra.mxu0 %v623
  %939 = vmatprep.subr.bf16.mxu0 %v632
  %940 = vmatpush1.bf16.msra.mxu0 %v631
  %941 = vmatprep.subr.bf16.mxu0 %v640
  %942 = vmatpush1.bf16.msra.mxu0 %v639
  %943 = vmatprep.subr.bf16.mxu0 %v648
  %944 = vmatpush1.bf16.msra.mxu0 %v647
  %945 = vmatprep.subr.bf16.mxu0 %v656
  %946 = vmatpush1.bf16.msra.mxu0 %v655
  %947 = vmatprep.subr.bf16.mxu0 %v664
  %948 = vmatpush1.bf16.msra.mxu0 %v663
  %949 = vmatprep.subr.bf16.mxu0 %v672
  %950 = vmatpush1.bf16.msra.mxu0 %v671
  %951 = vmatprep.subr.bf16.mxu0 %v680
  %952 = vmatpush1.bf16.msra.mxu0 %v679
  %953 = vmatprep.subr.bf16.mxu0 %v688
  %954 = vmatpush1.bf16.msra.mxu0 %v687
  %955 = vmatprep.subr.bf16.mxu0 %v696
  %956 = vmatpush1.bf16.msra.mxu0 %v695
  %957 = vmatprep.subr.bf16.mxu0 %v704
  %958 = vmatpush1.bf16.msra.mxu0 %v703
  %959 = vmatprep.subr.bf16.mxu0 %v712
  %960 = vmatpush1.bf16.msra.mxu0 %v711
  %961 = vmatprep.mubr.bf16.mxu0 %v200
  %962 = vmatmul.mubr.bf16.gmra.mrb[0].mxu0 %v199
  %v963 = vpop.f32.mrb[0].mxu0
  %v964 = vadd.f32 %v172, %v963
  %v965 = vpop.f32.mrb[0].mxu0
  %v966 = vadd.f32 %v176, %v965
  %v967 = vpop.f32.mrb[0].mxu0
  %v968 = vadd.f32 %v172, %v967
  %v969 = vpop.f32.mrb[0].mxu0
  %v970 = vadd.f32 %v176, %v969
  %971 = vdwg.mxu0
  %972 = vmatprep.subr.bf16.mxu0 %v594
  %973 = vmatpush1.bf16.msra.mxu0 %v593
  %974 = vmatprep.subr.bf16.mxu0 %v602
  %975 = vmatpush1.bf16.msra.mxu0 %v601
  %976 = vmatprep.subr.bf16.mxu0 %v610
  %977 = vmatpush1.bf16.msra.mxu0 %v609
  %978 = vmatprep.subr.bf16.mxu0 %v618
  %979 = vmatpush1.bf16.msra.mxu0 %v617
  %980 = vmatprep.subr.bf16.mxu0 %v626
  %981 = vmatpush1.bf16.msra.mxu0 %v625
  %982 = vmatprep.subr.bf16.mxu0 %v634
  %983 = vmatpush1.bf16.msra.mxu0 %v633
  %984 = vmatprep.subr.bf16.mxu0 %v642
  %985 = vmatpush1.bf16.msra.mxu0 %v641
  %986 = vmatprep.subr.bf16.mxu0 %v650
  %987 = vmatpush1.bf16.msra.mxu0 %v649
  %988 = vmatprep.subr.bf16.mxu0 %v658
  %989 = vmatpush1.bf16.msra.mxu0 %v657
  %990 = vmatprep.subr.bf16.mxu0 %v666
  %991 = vmatpush1.bf16.msra.mxu0 %v665
  %992 = vmatprep.subr.bf16.mxu0 %v674
  %993 = vmatpush1.bf16.msra.mxu0 %v673
  %994 = vmatprep.subr.bf16.mxu0 %v682
  %995 = vmatpush1.bf16.msra.mxu0 %v681
  %996 = vmatprep.subr.bf16.mxu0 %v690
  %997 = vmatpush1.bf16.msra.mxu0 %v689
  %998 = vmatprep.subr.bf16.mxu0 %v698
  %999 = vmatpush1.bf16.msra.mxu0 %v697
  %1000 = vmatprep.subr.bf16.mxu0 %v706
  %1001 = vmatpush1.bf16.msra.mxu0 %v705
  %1002 = vmatprep.subr.bf16.mxu0 %v714
  %1003 = vmatpush1.bf16.msra.mxu0 %v713
  %1004 = vmatprep.mubr.bf16.mxu0 %v200
  %1005 = vmatmul.mubr.bf16.gmra.mrb[0].mxu0 %v199
  %v1006 = vpop.f32.mrb[0].mxu0
  %v1007 = vadd.f32 %v180, %v1006
  %v1008 = vpop.f32.mrb[0].mxu0
  %v1009 = vadd.f32 %v184, %v1008
  %v1010 = vpop.f32.mrb[0].mxu0
  %v1011 = vadd.f32 %v180, %v1010
  %v1012 = vpop.f32.mrb[0].mxu0
  %v1013 = vadd.f32 %v184, %v1012
  %1014 = vdwg.mxu0
  %v1015 = vmax.f32 %v878, 0.0
  %v1016 = vmax.f32 %v880, 0.0
  %v1017 = vmax.f32 %v921, 0.0
  %v1018 = vmax.f32 %v923, 0.0
  %v1019 = vmax.f32 %v964, 0.0
  %v1020 = vmax.f32 %v966, 0.0
  %v1021 = vmax.f32 %v1007, 0.0
  %v1022 = vmax.f32 %v1009, 0.0
  %v1023 = vmax.f32 %v882, 0.0
  %v1024 = vmax.f32 %v884, 0.0
  %v1025 = vmax.f32 %v925, 0.0
  %v1026 = vmax.f32 %v927, 0.0
  %v1027 = vmax.f32 %v968, 0.0
  %v1028 = vmax.f32 %v970, 0.0
  %v1029 = vmax.f32 %v1011, 0.0
  %v1030 = vmax.f32 %v1013, 0.0
  %v1031 = vpack.c.bf16 %v1023, %v1015
  %v1032 = vpack.c.bf16 %v1024, %v1016
  %v1033 = vpack.c.bf16 %v1025, %v1017
  %v1034 = vpack.c.bf16 %v1026, %v1018
  %v1035 = vpack.c.bf16 %v1027, %v1019
  %v1036 = vpack.c.bf16 %v1028, %v1020
  %v1037 = vpack.c.bf16 %v1029, %v1021
  %v1038 = vpack.c.bf16 %v1030, %v1022
  %v1039 = vld [vmem:[%s3] sm:$0xf]
  %v1040 = vld [vmem:[%s3 + $0x4] sm:$0xf]
  %v1041 = vld [vmem:[%s3 + $0x8] sm:$0xf]
  %v1042 = vld [vmem:[%s3 + $0xc] sm:$0xf]
  %v1043 = vld [vmem:[%s3 + $0x10] sm:$0xf]
  %v1044 = vld [vmem:[%s3 + $0x14] sm:$0xf]
  %v1045 = vld [vmem:[%s3 + $0x18] sm:$0xf]
  %v1046 = vld [vmem:[%s3 + $0x1c] sm:$0xf]
  %v1047 = vld [vmem:[%s3 + $0x20] sm:$0xf]
  %v1048 = vld [vmem:[%s3 + $0x24] sm:$0xf]
  %v1049 = vld [vmem:[%s3 + $0x28] sm:$0xf]
  %v1050 = vld [vmem:[%s3 + $0x2c] sm:$0xf]
  %v1051 = vld [vmem:[%s3 + $0x30] sm:$0xf]
  %v1052 = vld [vmem:[%s3 + $0x34] sm:$0xf]
  %v1053 = vld [vmem:[%s3 + $0x38] sm:$0xf]
  %v1054 = vld [vmem:[%s3 + $0x3c] sm:$0xf]
  %v1055 = vld [vmem:[%s3 + $0x40] sm:$0xf]
  %v1056 = vld [vmem:[%s3 + $0x44] sm:$0xf]
  %v1057 = vld [vmem:[%s3 + $0x48] sm:$0xf]
  %v1058 = vld [vmem:[%s3 + $0x4c] sm:$0xf]
  %v1059 = vld [vmem:[%s3 + $0x50] sm:$0xf]
  %v1060 = vld [vmem:[%s3 + $0x54] sm:$0xf]
  %v1061 = vld [vmem:[%s3 + $0x58] sm:$0xf]
  %v1062 = vld [vmem:[%s3 + $0x5c] sm:$0xf]
  %v1063 = vld [vmem:[%s3 + $0x60] sm:$0xf]
  %v1064 = vld [vmem:[%s3 + $0x64] sm:$0xf]
  %v1065 = vld [vmem:[%s3 + $0x68] sm:$0xf]
  %v1066 = vld [vmem:[%s3 + $0x6c] sm:$0xf]
  %v1067 = vld [vmem:[%s3 + $0x70] sm:$0xf]
  %v1068 = vld [vmem:[%s3 + $0x74] sm:$0xf]
  %v1069 = vld [vmem:[%s3 + $0x78] sm:$0xf]
  %v1070 = vld [vmem:[%s3 + $0x7c] sm:$0xf]
  %v1071 = vld [vmem:[%s3 + $0x80] sm:$0xf]
  %v1072 = vld [vmem:[%s3 + $0x84] sm:$0xf]
  %v1073 = vld [vmem:[%s3 + $0x88] sm:$0xf]
  %v1074 = vld [vmem:[%s3 + $0x8c] sm:$0xf]
  %v1075 = vld [vmem:[%s3 + $0x90] sm:$0xf]
  %v1076 = vld [vmem:[%s3 + $0x94] sm:$0xf]
  %v1077 = vld [vmem:[%s3 + $0x98] sm:$0xf]
  %v1078 = vld [vmem:[%s3 + $0x9c] sm:$0xf]
  %v1079 = vld [vmem:[%s3 + $0xa0] sm:$0xf]
  %v1080 = vld [vmem:[%s3 + $0xa4] sm:$0xf]
  %v1081 = vld [vmem:[%s3 + $0xa8] sm:$0xf]
  %v1082 = vld [vmem:[%s3 + $0xac] sm:$0xf]
  %v1083 = vld [vmem:[%s3 + $0xb0] sm:$0xf]
  %v1084 = vld [vmem:[%s3 + $0xb4] sm:$0xf]
  %v1085 = vld [vmem:[%s3 + $0xb8] sm:$0xf]
  %v1086 = vld [vmem:[%s3 + $0xbc] sm:$0xf]
  %v1087 = vld [vmem:[%s3 + $0xc0] sm:$0xf]
  %v1088 = vld [vmem:[%s3 + $0xc4] sm:$0xf]
  %v1089 = vld [vmem:[%s3 + $0xc8] sm:$0xf]
  %v1090 = vld [vmem:[%s3 + $0xcc] sm:$0xf]
  %v1091 = vld [vmem:[%s3 + $0xd0] sm:$0xf]
  %v1092 = vld [vmem:[%s3 + $0xd4] sm:$0xf]
  %v1093 = vld [vmem:[%s3 + $0xd8] sm:$0xf]
  %v1094 = vld [vmem:[%s3 + $0xdc] sm:$0xf]
  %v1095 = vld [vmem:[%s3 + $0xe0] sm:$0xf]
  %v1096 = vld [vmem:[%s3 + $0xe4] sm:$0xf]
  %v1097 = vld [vmem:[%s3 + $0xe8] sm:$0xf]
  %v1098 = vld [vmem:[%s3 + $0xec] sm:$0xf]
  %v1099 = vld [vmem:[%s3 + $0xf0] sm:$0xf]
  %v1100 = vld [vmem:[%s3 + $0xf4] sm:$0xf]
  %v1101 = vld [vmem:[%s3 + $0xf8] sm:$0xf]
  %v1102 = vld [vmem:[%s3 + $0xfc] sm:$0xf]
  %v1103 = vld [vmem:[%s3 + $0x100] sm:$0xf]
  %v1104 = vld [vmem:[%s3 + $0x104] sm:$0xf]
  %v1105 = vld [vmem:[%s3 + $0x108] sm:$0xf]
  %v1106 = vld [vmem:[%s3 + $0x10c] sm:$0xf]
  %v1107 = vld [vmem:[%s3 + $0x110] sm:$0xf]
  %v1108 = vld [vmem:[%s3 + $0x114] sm:$0xf]
  %v1109 = vld [vmem:[%s3 + $0x118] sm:$0xf]
  %v1110 = vld [vmem:[%s3 + $0x11c] sm:$0xf]
  %v1111 = vld [vmem:[%s3 + $0x120] sm:$0xf]
  %v1112 = vld [vmem:[%s3 + $0x124] sm:$0xf]
  %v1113 = vld [vmem:[%s3 + $0x128] sm:$0xf]
  %v1114 = vld [vmem:[%s3 + $0x12c] sm:$0xf]
  %v1115 = vld [vmem:[%s3 + $0x130] sm:$0xf]
  %v1116 = vld [vmem:[%s3 + $0x134] sm:$0xf]
  %v1117 = vld [vmem:[%s3 + $0x138] sm:$0xf]
  %v1118 = vld [vmem:[%s3 + $0x13c] sm:$0xf]
  %v1119 = vld [vmem:[%s3 + $0x140] sm:$0xf]
  %v1120 = vld [vmem:[%s3 + $0x144] sm:$0xf]
  %v1121 = vld [vmem:[%s3 + $0x148] sm:$0xf]
  %v1122 = vld [vmem:[%s3 + $0x14c] sm:$0xf]
  %v1123 = vld [vmem:[%s3 + $0x150] sm:$0xf]
  %v1124 = vld [vmem:[%s3 + $0x154] sm:$0xf]
  %v1125 = vld [vmem:[%s3 + $0x158] sm:$0xf]
  %v1126 = vld [vmem:[%s3 + $0x15c] sm:$0xf]
  %v1127 = vld [vmem:[%s3 + $0x160] sm:$0xf]
  %v1128 = vld [vmem:[%s3 + $0x164] sm:$0xf]
  %v1129 = vld [vmem:[%s3 + $0x168] sm:$0xf]
  %v1130 = vld [vmem:[%s3 + $0x16c] sm:$0xf]
  %v1131 = vld [vmem:[%s3 + $0x170] sm:$0xf]
  %v1132 = vld [vmem:[%s3 + $0x174] sm:$0xf]
  %v1133 = vld [vmem:[%s3 + $0x178] sm:$0xf]
  %v1134 = vld [vmem:[%s3 + $0x17c] sm:$0xf]
  %v1135 = vld [vmem:[%s3 + $0x180] sm:$0xf]
  %v1136 = vld [vmem:[%s3 + $0x184] sm:$0xf]
  %v1137 = vld [vmem:[%s3 + $0x188] sm:$0xf]
  %v1138 = vld [vmem:[%s3 + $0x18c] sm:$0xf]
  %v1139 = vld [vmem:[%s3 + $0x190] sm:$0xf]
  %v1140 = vld [vmem:[%s3 + $0x194] sm:$0xf]
  %v1141 = vld [vmem:[%s3 + $0x198] sm:$0xf]
  %v1142 = vld [vmem:[%s3 + $0x19c] sm:$0xf]
  %v1143 = vld [vmem:[%s3 + $0x1a0] sm:$0xf]
  %v1144 = vld [vmem:[%s3 + $0x1a4] sm:$0xf]
  %v1145 = vld [vmem:[%s3 + $0x1a8] sm:$0xf]
  %v1146 = vld [vmem:[%s3 + $0x1ac] sm:$0xf]
  %v1147 = vld [vmem:[%s3 + $0x1b0] sm:$0xf]
  %v1148 = vld [vmem:[%s3 + $0x1b4] sm:$0xf]
  %v1149 = vld [vmem:[%s3 + $0x1b8] sm:$0xf]
  %v1150 = vld [vmem:[%s3 + $0x1bc] sm:$0xf]
  %v1151 = vld [vmem:[%s3 + $0x1c0] sm:$0xf]
  %v1152 = vld [vmem:[%s3 + $0x1c4] sm:$0xf]
  %v1153 = vld [vmem:[%s3 + $0x1c8] sm:$0xf]
  %v1154 = vld [vmem:[%s3 + $0x1cc] sm:$0xf]
  %v1155 = vld [vmem:[%s3 + $0x1d0] sm:$0xf]
  %v1156 = vld [vmem:[%s3 + $0x1d4] sm:$0xf]
  %v1157 = vld [vmem:[%s3 + $0x1d8] sm:$0xf]
  %v1158 = vld [vmem:[%s3 + $0x1dc] sm:$0xf]
  %v1159 = vld [vmem:[%s3 + $0x1e0] sm:$0xf]
  %v1160 = vld [vmem:[%s3 + $0x1e4] sm:$0xf]
  %v1161 = vld [vmem:[%s3 + $0x1e8] sm:$0xf]
  %v1162 = vld [vmem:[%s3 + $0x1ec] sm:$0xf]
  %v1163 = vld [vmem:[%s3 + $0x1f0] sm:$0xf]
  %v1164 = vld [vmem:[%s3 + $0x1f4] sm:$0xf]
  %v1165 = vld [vmem:[%s3 + $0x1f8] sm:$0xf]
  %v1166 = vld [vmem:[%s3 + $0x1fc] sm:$0xf]
  %v1167 = vld [vmem:[%s4] sm:$0x1]
  %v1169 = vlaneseq
  %v1170 = vshrl.u32 %v1169, 7
  %v1171 = vsub.s32 0, %v1170
  %v1172 = vrot.slane %v1167, %v1171
  %v1302 = vunpack.c.l.b16 %v1039
  %v1303 = vunpack.c.l.b16 %v1040
  %v1304 = vunpack.c.l.b16 %v1041
  %v1305 = vunpack.c.l.b16 %v1042
  %v1306 = vunpack.c.l.b16 %v1043
  %v1307 = vunpack.c.l.b16 %v1044
  %v1308 = vunpack.c.l.b16 %v1045
  %v1309 = vunpack.c.l.b16 %v1046
  %v1310 = vunpack.c.l.b16 %v1047
  %v1311 = vunpack.c.l.b16 %v1048
  %v1312 = vunpack.c.l.b16 %v1049
  %v1313 = vunpack.c.l.b16 %v1050
  %v1314 = vunpack.c.l.b16 %v1051
  %v1315 = vunpack.c.l.b16 %v1052
  %v1316 = vunpack.c.l.b16 %v1053
  %v1317 = vunpack.c.l.b16 %v1054
  %v1318 = vunpack.c.l.b16 %v1055
  %v1319 = vunpack.c.l.b16 %v1056
  %v1320 = vunpack.c.l.b16 %v1057
  %v1321 = vunpack.c.l.b16 %v1058
  %v1322 = vunpack.c.l.b16 %v1059
  %v1323 = vunpack.c.l.b16 %v1060
  %v1324 = vunpack.c.l.b16 %v1061
  %v1325 = vunpack.c.l.b16 %v1062
  %v1326 = vunpack.c.l.b16 %v1063
  %v1327 = vunpack.c.l.b16 %v1064
  %v1328 = vunpack.c.l.b16 %v1065
  %v1329 = vunpack.c.l.b16 %v1066
  %v1330 = vunpack.c.l.b16 %v1067
  %v1331 = vunpack.c.l.b16 %v1068
  %v1332 = vunpack.c.l.b16 %v1069
  %v1333 = vunpack.c.l.b16 %v1070
  %v1334 = vunpack.c.l.b16 %v1071
  %v1335 = vunpack.c.l.b16 %v1072
  %v1336 = vunpack.c.l.b16 %v1073
  %v1337 = vunpack.c.l.b16 %v1074
  %v1338 = vunpack.c.l.b16 %v1075
  %v1339 = vunpack.c.l.b16 %v1076
  %v1340 = vunpack.c.l.b16 %v1077
  %v1341 = vunpack.c.l.b16 %v1078
  %v1342 = vunpack.c.l.b16 %v1079
  %v1343 = vunpack.c.l.b16 %v1080
  %v1344 = vunpack.c.l.b16 %v1081
  %v1345 = vunpack.c.l.b16 %v1082
  %v1346 = vunpack.c.l.b16 %v1083
  %v1347 = vunpack.c.l.b16 %v1084
  %v1348 = vunpack.c.l.b16 %v1085
  %v1349 = vunpack.c.l.b16 %v1086
  %v1350 = vunpack.c.l.b16 %v1087
  %v1351 = vunpack.c.l.b16 %v1088
  %v1352 = vunpack.c.l.b16 %v1089
  %v1353 = vunpack.c.l.b16 %v1090
  %v1354 = vunpack.c.l.b16 %v1091
  %v1355 = vunpack.c.l.b16 %v1092
  %v1356 = vunpack.c.l.b16 %v1093
  %v1357 = vunpack.c.l.b16 %v1094
  %v1358 = vunpack.c.l.b16 %v1095
  %v1359 = vunpack.c.l.b16 %v1096
  %v1360 = vunpack.c.l.b16 %v1097
  %v1361 = vunpack.c.l.b16 %v1098
  %v1362 = vunpack.c.l.b16 %v1099
  %v1363 = vunpack.c.l.b16 %v1100
  %v1364 = vunpack.c.l.b16 %v1101
  %v1365 = vunpack.c.l.b16 %v1102
  %v1366 = vunpack.c.l.b16 %v1103
  %v1367 = vunpack.c.l.b16 %v1104
  %v1368 = vunpack.c.l.b16 %v1105
  %v1369 = vunpack.c.l.b16 %v1106
  %v1370 = vunpack.c.l.b16 %v1107
  %v1371 = vunpack.c.l.b16 %v1108
  %v1372 = vunpack.c.l.b16 %v1109
  %v1373 = vunpack.c.l.b16 %v1110
  %v1374 = vunpack.c.l.b16 %v1111
  %v1375 = vunpack.c.l.b16 %v1112
  %v1376 = vunpack.c.l.b16 %v1113
  %v1377 = vunpack.c.l.b16 %v1114
  %v1378 = vunpack.c.l.b16 %v1115
  %v1379 = vunpack.c.l.b16 %v1116
  %v1380 = vunpack.c.l.b16 %v1117
  %v1381 = vunpack.c.l.b16 %v1118
  %v1382 = vunpack.c.l.b16 %v1119
  %v1383 = vunpack.c.l.b16 %v1120
  %v1384 = vunpack.c.l.b16 %v1121
  %v1385 = vunpack.c.l.b16 %v1122
  %v1386 = vunpack.c.l.b16 %v1123
  %v1387 = vunpack.c.l.b16 %v1124
  %v1388 = vunpack.c.l.b16 %v1125
  %v1389 = vunpack.c.l.b16 %v1126
  %v1390 = vunpack.c.l.b16 %v1127
  %v1391 = vunpack.c.l.b16 %v1128
  %v1392 = vunpack.c.l.b16 %v1129
  %v1393 = vunpack.c.l.b16 %v1130
  %v1394 = vunpack.c.l.b16 %v1131
  %v1395 = vunpack.c.l.b16 %v1132
  %v1396 = vunpack.c.l.b16 %v1133
  %v1397 = vunpack.c.l.b16 %v1134
  %v1398 = vunpack.c.l.b16 %v1135
  %v1399 = vunpack.c.l.b16 %v1136
  %v1400 = vunpack.c.l.b16 %v1137
  %v1401 = vunpack.c.l.b16 %v1138
  %v1402 = vunpack.c.l.b16 %v1139
  %v1403 = vunpack.c.l.b16 %v1140
  %v1404 = vunpack.c.l.b16 %v1141
  %v1405 = vunpack.c.l.b16 %v1142
  %v1406 = vunpack.c.l.b16 %v1143
  %v1407 = vunpack.c.l.b16 %v1144
  %v1408 = vunpack.c.l.b16 %v1145
  %v1409 = vunpack.c.l.b16 %v1146
  %v1410 = vunpack.c.l.b16 %v1147
  %v1411 = vunpack.c.l.b16 %v1148
  %v1412 = vunpack.c.l.b16 %v1149
  %v1413 = vunpack.c.l.b16 %v1150
  %v1414 = vunpack.c.l.b16 %v1151
  %v1415 = vunpack.c.l.b16 %v1152
  %v1416 = vunpack.c.l.b16 %v1153
  %v1417 = vunpack.c.l.b16 %v1154
  %v1418 = vunpack.c.l.b16 %v1155
  %v1419 = vunpack.c.l.b16 %v1156
  %v1420 = vunpack.c.l.b16 %v1157
  %v1421 = vunpack.c.l.b16 %v1158
  %v1422 = vunpack.c.l.b16 %v1159
  %v1423 = vunpack.c.l.b16 %v1160
  %v1424 = vunpack.c.l.b16 %v1161
  %v1425 = vunpack.c.l.b16 %v1162
  %v1426 = vunpack.c.l.b16 %v1163
  %v1427 = vunpack.c.l.b16 %v1164
  %v1428 = vunpack.c.l.b16 %v1165
  %v1429 = vunpack.c.l.b16 %v1166
  %v1430 = vpack.c.b16 %v1303, %v1302
  %v1431 = vpack.c.b16 %v1305, %v1304
  %v1432 = vpack.c.b16 %v1307, %v1306
  %v1433 = vpack.c.b16 %v1309, %v1308
  %v1434 = vpack.c.b16 %v1311, %v1310
  %v1435 = vpack.c.b16 %v1313, %v1312
  %v1436 = vpack.c.b16 %v1315, %v1314
  %v1437 = vpack.c.b16 %v1317, %v1316
  %v1438 = vpack.c.b16 %v1319, %v1318
  %v1439 = vpack.c.b16 %v1321, %v1320
  %v1440 = vpack.c.b16 %v1323, %v1322
  %v1441 = vpack.c.b16 %v1325, %v1324
  %v1442 = vpack.c.b16 %v1327, %v1326
  %v1443 = vpack.c.b16 %v1329, %v1328
  %v1444 = vpack.c.b16 %v1331, %v1330
  %v1445 = vpack.c.b16 %v1333, %v1332
  %v1446 = vpack.c.b16 %v1335, %v1334
  %v1447 = vpack.c.b16 %v1337, %v1336
  %v1448 = vpack.c.b16 %v1339, %v1338
  %v1449 = vpack.c.b16 %v1341, %v1340
  %v1450 = vpack.c.b16 %v1343, %v1342
  %v1451 = vpack.c.b16 %v1345, %v1344
  %v1452 = vpack.c.b16 %v1347, %v1346
  %v1453 = vpack.c.b16 %v1349, %v1348
  %v1454 = vpack.c.b16 %v1351, %v1350
  %v1455 = vpack.c.b16 %v1353, %v1352
  %v1456 = vpack.c.b16 %v1355, %v1354
  %v1457 = vpack.c.b16 %v1357, %v1356
  %v1458 = vpack.c.b16 %v1359, %v1358
  %v1459 = vpack.c.b16 %v1361, %v1360
  %v1460 = vpack.c.b16 %v1363, %v1362
  %v1461 = vpack.c.b16 %v1365, %v1364
  %v1462 = vpack.c.b16 %v1367, %v1366
  %v1463 = vpack.c.b16 %v1369, %v1368
  %v1464 = vpack.c.b16 %v1371, %v1370
  %v1465 = vpack.c.b16 %v1373, %v1372
  %v1466 = vpack.c.b16 %v1375, %v1374
  %v1467 = vpack.c.b16 %v1377, %v1376
  %v1468 = vpack.c.b16 %v1379, %v1378
  %v1469 = vpack.c.b16 %v1381, %v1380
  %v1470 = vpack.c.b16 %v1383, %v1382
  %v1471 = vpack.c.b16 %v1385, %v1384
  %v1472 = vpack.c.b16 %v1387, %v1386
  %v1473 = vpack.c.b16 %v1389, %v1388
  %v1474 = vpack.c.b16 %v1391, %v1390
  %v1475 = vpack.c.b16 %v1393, %v1392
  %v1476 = vpack.c.b16 %v1395, %v1394
  %v1477 = vpack.c.b16 %v1397, %v1396
  %v1478 = vpack.c.b16 %v1399, %v1398
  %v1479 = vpack.c.b16 %v1401, %v1400
  %v1480 = vpack.c.b16 %v1403, %v1402
  %v1481 = vpack.c.b16 %v1405, %v1404
  %v1482 = vpack.c.b16 %v1407, %v1406
  %v1483 = vpack.c.b16 %v1409, %v1408
  %v1484 = vpack.c.b16 %v1411, %v1410
  %v1485 = vpack.c.b16 %v1413, %v1412
  %v1486 = vpack.c.b16 %v1415, %v1414
  %v1487 = vpack.c.b16 %v1417, %v1416
  %v1488 = vpack.c.b16 %v1419, %v1418
  %v1489 = vpack.c.b16 %v1421, %v1420
  %v1490 = vpack.c.b16 %v1423, %v1422
  %v1491 = vpack.c.b16 %v1425, %v1424
  %v1492 = vpack.c.b16 %v1427, %v1426
  %v1493 = vpack.c.b16 %v1429, %v1428
  %1558 = vmatprep.subr.bf16.mxu0 0
  %1559 = vmatpush1.bf16.msra.mxu0 %v1430
  %1560 = vmatprep.subr.bf16.mxu0 0
  %1561 = vmatpush1.bf16.msra.mxu0 %v1431
  %1562 = vmatprep.subr.bf16.mxu0 0
  %1563 = vmatpush1.bf16.msra.mxu0 %v1432
  %1564 = vmatprep.subr.bf16.mxu0 0
  %1565 = vmatpush1.bf16.msra.mxu0 %v1433
  %1566 = vmatprep.subr.bf16.mxu0 0
  %1567 = vmatpush1.bf16.msra.mxu0 %v1434
  %1568 = vmatprep.subr.bf16.mxu0 0
  %1569 = vmatpush1.bf16.msra.mxu0 %v1435
  %1570 = vmatprep.subr.bf16.mxu0 0
  %1571 = vmatpush1.bf16.msra.mxu0 %v1436
  %1572 = vmatprep.subr.bf16.mxu0 0
  %1573 = vmatpush1.bf16.msra.mxu0 %v1437
  %1574 = vmatprep.subr.bf16.mxu0 0
  %1575 = vmatpush1.bf16.msra.mxu0 %v1438
  %1576 = vmatprep.subr.bf16.mxu0 0
  %1577 = vmatpush1.bf16.msra.mxu0 %v1439
  %1578 = vmatprep.subr.bf16.mxu0 0
  %1579 = vmatpush1.bf16.msra.mxu0 %v1440
  %1580 = vmatprep.subr.bf16.mxu0 0
  %1581 = vmatpush1.bf16.msra.mxu0 %v1441
  %1582 = vmatprep.subr.bf16.mxu0 0
  %1583 = vmatpush1.bf16.msra.mxu0 %v1442
  %1584 = vmatprep.subr.bf16.mxu0 0
  %1585 = vmatpush1.bf16.msra.mxu0 %v1443
  %1586 = vmatprep.subr.bf16.mxu0 0
  %1587 = vmatpush1.bf16.msra.mxu0 %v1444
  %1588 = vmatprep.subr.bf16.mxu0 0
  %1589 = vmatpush1.bf16.msra.mxu0 %v1445
  %1590 = vmatprep.mubr.bf16.mxu0 %v1032
  %1591 = vmatmul.mubr.bf16.gmra.mrb[0].mxu0 %v1031
  %v1592 = vpop.f32.mrb[0].mxu0
  %v1593 = vadd.f32 %v1172, %v1592
  %v1594 = vpop.f32.mrb[0].mxu0
  %v1595 = vpop.f32.mrb[0].mxu0
  %v1596 = vadd.f32 %v1172, %v1595
  %v1597 = vpop.f32.mrb[0].mxu0
  %1598 = vdwg.mxu0
  %1599 = vmatprep.subr.bf16.mxu0 0
  %1600 = vmatpush1.bf16.msra.mxu0 %v1446
  %1601 = vmatprep.subr.bf16.mxu0 0
  %1602 = vmatpush1.bf16.msra.mxu0 %v1447
  %1603 = vmatprep.subr.bf16.mxu0 0
  %1604 = vmatpush1.bf16.msra.mxu0 %v1448
  %1605 = vmatprep.subr.bf16.mxu0 0
  %1606 = vmatpush1.bf16.msra.mxu0 %v1449
  %1607 = vmatprep.subr.bf16.mxu0 0
  %1608 = vmatpush1.bf16.msra.mxu0 %v1450
  %1609 = vmatprep.subr.bf16.mxu0 0
  %1610 = vmatpush1.bf16.msra.mxu0 %v1451
  %1611 = vmatprep.subr.bf16.mxu0 0
  %1612 = vmatpush1.bf16.msra.mxu0 %v1452
  %1613 = vmatprep.subr.bf16.mxu0 0
  %1614 = vmatpush1.bf16.msra.mxu0 %v1453
  %1615 = vmatprep.subr.bf16.mxu0 0
  %1616 = vmatpush1.bf16.msra.mxu0 %v1454
  %1617 = vmatprep.subr.bf16.mxu0 0
  %1618 = vmatpush1.bf16.msra.mxu0 %v1455
  %1619 = vmatprep.subr.bf16.mxu0 0
  %1620 = vmatpush1.bf16.msra.mxu0 %v1456
  %1621 = vmatprep.subr.bf16.mxu0 0
  %1622 = vmatpush1.bf16.msra.mxu0 %v1457
  %1623 = vmatprep.subr.bf16.mxu0 0
  %1624 = vmatpush1.bf16.msra.mxu0 %v1458
  %1625 = vmatprep.subr.bf16.mxu0 0
  %1626 = vmatpush1.bf16.msra.mxu0 %v1459
  %1627 = vmatprep.subr.bf16.mxu0 0
  %1628 = vmatpush1.bf16.msra.mxu0 %v1460
  %1629 = vmatprep.subr.bf16.mxu0 0
  %1630 = vmatpush1.bf16.msra.mxu0 %v1461
  %1631 = vmatprep.mubr.bf16.mxu0 %v1034
  %1632 = vmatmul.mubr.bf16.gmra.mrb[0].mxu0 %v1033
  %v1633 = vpop.f32.mrb[0].mxu0
  %v1634 = vadd.f32 %v1593, %v1633
  %v1635 = vpop.f32.mrb[0].mxu0
  %v1636 = vpop.f32.mrb[0].mxu0
  %v1637 = vadd.f32 %v1596, %v1636
  %v1638 = vpop.f32.mrb[0].mxu0
  %1639 = vdwg.mxu0
  %1640 = vmatprep.subr.bf16.mxu0 0
  %1641 = vmatpush1.bf16.msra.mxu0 %v1462
  %1642 = vmatprep.subr.bf16.mxu0 0
  %1643 = vmatpush1.bf16.msra.mxu0 %v1463
  %1644 = vmatprep.subr.bf16.mxu0 0
  %1645 = vmatpush1.bf16.msra.mxu0 %v1464
  %1646 = vmatprep.subr.bf16.mxu0 0
  %1647 = vmatpush1.bf16.msra.mxu0 %v1465
  %1648 = vmatprep.subr.bf16.mxu0 0
  %1649 = vmatpush1.bf16.msra.mxu0 %v1466
  %1650 = vmatprep.subr.bf16.mxu0 0
  %1651 = vmatpush1.bf16.msra.mxu0 %v1467
  %1652 = vmatprep.subr.bf16.mxu0 0
  %1653 = vmatpush1.bf16.msra.mxu0 %v1468
  %1654 = vmatprep.subr.bf16.mxu0 0
  %1655 = vmatpush1.bf16.msra.mxu0 %v1469
  %1656 = vmatprep.subr.bf16.mxu0 0
  %1657 = vmatpush1.bf16.msra.mxu0 %v1470
  %1658 = vmatprep.subr.bf16.mxu0 0
  %1659 = vmatpush1.bf16.msra.mxu0 %v1471
  %1660 = vmatprep.subr.bf16.mxu0 0
  %1661 = vmatpush1.bf16.msra.mxu0 %v1472
  %1662 = vmatprep.subr.bf16.mxu0 0
  %1663 = vmatpush1.bf16.msra.mxu0 %v1473
  %1664 = vmatprep.subr.bf16.mxu0 0
  %1665 = vmatpush1.bf16.msra.mxu0 %v1474
  %1666 = vmatprep.subr.bf16.mxu0 0
  %1667 = vmatpush1.bf16.msra.mxu0 %v1475
  %1668 = vmatprep.subr.bf16.mxu0 0
  %1669 = vmatpush1.bf16.msra.mxu0 %v1476
  %1670 = vmatprep.subr.bf16.mxu0 0
  %1671 = vmatpush1.bf16.msra.mxu0 %v1477
  %1672 = vmatprep.mubr.bf16.mxu0 %v1036
  %1673 = vmatmul.mubr.bf16.gmra.mrb[0].mxu0 %v1035
  %v1674 = vpop.f32.mrb[0].mxu0
  %v1675 = vadd.f32 %v1634, %v1674
  %v1676 = vpop.f32.mrb[0].mxu0
  %v1677 = vpop.f32.mrb[0].mxu0
  %v1678 = vadd.f32 %v1637, %v1677
  %v1679 = vpop.f32.mrb[0].mxu0
  %1680 = vdwg.mxu0
  %1681 = vmatprep.subr.bf16.mxu0 0
  %1682 = vmatpush1.bf16.msra.mxu0 %v1478
  %1683 = vmatprep.subr.bf16.mxu0 0
  %1684 = vmatpush1.bf16.msra.mxu0 %v1479
  %1685 = vmatprep.subr.bf16.mxu0 0
  %1686 = vmatpush1.bf16.msra.mxu0 %v1480
  %1687 = vmatprep.subr.bf16.mxu0 0
  %1688 = vmatpush1.bf16.msra.mxu0 %v1481
  %1689 = vmatprep.subr.bf16.mxu0 0
  %1690 = vmatpush1.bf16.msra.mxu0 %v1482
  %1691 = vmatprep.subr.bf16.mxu0 0
  %1692 = vmatpush1.bf16.msra.mxu0 %v1483
  %1693 = vmatprep.subr.bf16.mxu0 0
  %1694 = vmatpush1.bf16.msra.mxu0 %v1484
  %1695 = vmatprep.subr.bf16.mxu0 0
  %1696 = vmatpush1.bf16.msra.mxu0 %v1485
  %1697 = vmatprep.subr.bf16.mxu0 0
  %1698 = vmatpush1.bf16.msra.mxu0 %v1486
  %1699 = vmatprep.subr.bf16.mxu0 0
  %1700 = vmatpush1.bf16.msra.mxu0 %v1487
  %1701 = vmatprep.subr.bf16.mxu0 0
  %1702 = vmatpush1.bf16.msra.mxu0 %v1488
  %1703 = vmatprep.subr.bf16.mxu0 0
  %1704 = vmatpush1.bf16.msra.mxu0 %v1489
  %1705 = vmatprep.subr.bf16.mxu0 0
  %1706 = vmatpush1.bf16.msra.mxu0 %v1490
  %1707 = vmatprep.subr.bf16.mxu0 0
  %1708 = vmatpush1.bf16.msra.mxu0 %v1491
  %1709 = vmatprep.subr.bf16.mxu0 0
  %1710 = vmatpush1.bf16.msra.mxu0 %v1492
  %1711 = vmatprep.subr.bf16.mxu0 0
  %1712 = vmatpush1.bf16.msra.mxu0 %v1493
  %1713 = vmatprep.mubr.bf16.mxu0 %v1038
  %1714 = vmatmul.mubr.bf16.gmra.mrb[0].mxu0 %v1037
  %v1715 = vpop.f32.mrb[0].mxu0
  %v1716 = vadd.f32 %v1675, %v1715
  %v1717 = vpop.f32.mrb[0].mxu0
  %v1718 = vpop.f32.mrb[0].mxu0
  %v1719 = vadd.f32 %v1678, %v1718
  %v1720 = vpop.f32.mrb[0].mxu0
  %1721 = vdwg.mxu0
  %1722 = vst [vmem:[%s5] sm:$0xff] %v1716
  %1723 = vst [vmem:[%s5 + $0x8] sm:$0xff] %v1719
  // Predicated region
  $region22: #{forward.7} parent=0 // pred_check
    _
  $region23: #{forward.7} parent=0 // pred_check_branch
    %1725 = sbr.rel (0) target = $region25
  $region24: #{forward.7} parent=0 // pred_region
    _
  $region25: #{forward.7} parent=0 // pred_fallthru
    _
  // Predicated region
  $region26: #{forward.7} parent=0 // pred_check
    _
  $region27: #{forward.7} parent=0 // pred_check_branch
    %1727 = sbr.rel (0) target = $region29
  $region28: #{forward.7} parent=0 // pred_region
    _
  $region29: #{forward.7} parent=0 // pred_fallthru
    _

</llo_original>
